<compile_context>
chip_gen: v7x
topology: tpu7x:2x2x1
jax: 0.10.0
libtpu: 0.0.40
codegen_flags: <defaults>
</compile_context>

<pallas_src>
import math
import functools

import jax
import jax.numpy as jnp
from jax import lax
from jax.experimental import pallas as pl
from jax.experimental.pallas import tpu as pltpu


# ---------------------------------------------------------------------------
# Fused encoder-layer kernel: one (batch, query-tile) block per grid step.
# ---------------------------------------------------------------------------
def _encoder_layer_kernel(
        x_ref, p_ref,
        g1_ref, b1_ref, g2_ref, b2_ref, g3_ref, b3_ref,
        sa_wq_ref, sa_bq_ref, sa_wkv_ref, sa_bkv_ref, sa_wo_ref, sa_bo_ref,
        pa_wq_ref, pa_bq_ref, pa_wkv_ref, pa_bkv_ref, pa_wo_ref, pa_bo_ref,
        f_w1_ref, f_b1_ref, f_w2_ref, f_b2_ref,
        o_ref, *, nhead, q_tile):
    L = x_ref.shape[1]
    D = x_ref.shape[2]
    dh = D // nhead
    cd = sa_wq_ref.dtype                      # compute dtype (bf16)

    q0 = pl.multiple_of(pl.program_id(1) * q_tile, q_tile)
    x_full = x_ref[0]                         # (L, D)  f32
    x_q = x_ref[0, pl.ds(q0, q_tile), :]      # (Tq, D) f32
    p_full = p_ref[0]                         # (L, D)  f32

    def layer_norm(v, g_ref, b_ref):
        mu = jnp.mean(v, axis=-1, keepdims=True)
        var = jnp.mean(v * v, axis=-1, keepdims=True) - mu * mu
        return (v - mu) * lax.rsqrt(var + 1e-5) * g_ref[...] + b_ref[...]

    def project(inp_b, w_ref, b_ref):
        # (Lx, D) bf16 @ (D, F) bf16 -> (Lx, F) f32 (+ f32 bias)
        return (jnp.dot(inp_b, w_ref[...], preferred_element_type=jnp.float32)
                + b_ref[...])

    def attention(q_b, kv_b, wo_ref, bo_ref):
        # q_b: (Tq, D) bf16 (softmax scale pre-folded into the Q projection)
        # kv_b: (Lk, 2D) bf16, lane layout [K | V] (D-aligned halves).
        k_b = kv_b[:, :D]
        v_b = kv_b[:, D:]
        ctx_heads = []
        for h in range(nhead):                      # static, unrolled
            sl = slice(h * dh, (h + 1) * dh)
            s = jnp.einsum('qd,kd->qk', q_b[:, sl], k_b[:, sl],
                           preferred_element_type=jnp.float32)     # (Tq, Lk)
            m = jnp.max(s, axis=-1, keepdims=True)
            e = jnp.exp(s - m)
            prob = (e * pl.reciprocal(jnp.sum(e, axis=-1, keepdims=True),
                                      approx=True)).astype(cd)
            ctx_heads.append(jnp.dot(prob, v_b[:, sl],
                                     preferred_element_type=jnp.float32))
        ctx = jnp.concatenate(ctx_heads, axis=-1).astype(cd)        # (Tq, D)
        # Merged-head output projection: one K=D matmul, no head-sum.
        return (jnp.dot(ctx, wo_ref[...], preferred_element_type=jnp.float32)
                + bo_ref[...])

    # ---- self-attention sublayer (pre-norm, residual) ----------------------
    n1_full_b = layer_norm(x_full, g1_ref, b1_ref).astype(cd)   # keys/values
    n1_q_b = layer_norm(x_q, g1_ref, b1_ref).astype(cd)         # queries
    q1 = project(n1_q_b, sa_wq_ref, sa_bq_ref).astype(cd)       # (Tq, D)
    kv1 = project(n1_full_b, sa_wkv_ref, sa_bkv_ref).astype(cd) # (L, 2D)
    x_t = x_q + attention(q1, kv1, sa_wo_ref, sa_bo_ref)

    # ---- pitch cross-attention sublayer ------------------------------------
    n2_b = layer_norm(x_t, g2_ref, b2_ref).astype(cd)
    q2 = project(n2_b, pa_wq_ref, pa_bq_ref).astype(cd)         # (Tq, D)
    p_b = p_full.astype(cd)
    kv2 = project(p_b, pa_wkv_ref, pa_bkv_ref).astype(cd)       # (L, 2D)
    x_t = x_t + attention(q2, kv2, pa_wo_ref, pa_bo_ref)

    # ---- FFN sublayer -------------------------------------------------------
    n3_b = layer_norm(x_t, g3_ref, b3_ref).astype(cd)
    h = project(n3_b, f_w1_ref, f_b1_ref)
    h = jnp.maximum(h, 0.0).astype(cd)
    y = project(h, f_w2_ref, f_b2_ref)

    o_ref[0] = (x_t + y).astype(o_ref.dtype)


# ---------------------------------------------------------------------------
# Wrapper
# ---------------------------------------------------------------------------
_WEIGHT_ORDER = (
    'g1', 'b1', 'g2', 'b2', 'g3', 'b3',
    'sa_wq', 'sa_bq', 'sa_wkv', 'sa_bkv', 'sa_wo', 'sa_bo',
    'pa_wq', 'pa_bq', 'pa_wkv', 'pa_bkv', 'pa_wo', 'pa_bo',
    'ffn_w1', 'ffn_b1', 'ffn_w2', 'ffn_b2',
)


def _full_spec(a):
    rank = a.ndim
    return pl.BlockSpec(tuple(a.shape), lambda b, q, _r=rank: (0,) * _r)


def encoder_layer_with_pitch(packed, x, p_enc, *, nhead, q_tile=None,
                             vmem_limit_bytes=48 * 1024 * 1024):
    """Fused pre-norm encoder layer with pitch attention (eval mode)."""
    B, L, D = x.shape
    if q_tile is None or q_tile > L:
        q_tile = L
    assert L % q_tile == 0, "q_tile must divide the sequence length"
    n_q = L // q_tile
    w_args = [packed[k] for k in _WEIGHT_ORDER]

    full_seq = pl.BlockSpec((1, L, D), lambda b, q: (b, 0, 0))
    in_specs = [full_seq, full_seq] + [_full_spec(a) for a in w_args]
    out_spec = pl.BlockSpec((1, q_tile, D), lambda b, q: (b, q, 0))

    kernel = functools.partial(_encoder_layer_kernel, nhead=nhead,
                               q_tile=q_tile)
    return pl.pallas_call(
        kernel,
        out_shape=jax.ShapeDtypeStruct((B, L, D), x.dtype),
        grid=(B, n_q),
        in_specs=in_specs,
        out_specs=out_spec,
        compiler_params=pltpu.CompilerParams(
            dimension_semantics=("parallel", "parallel"),
            vmem_limit_bytes=vmem_limit_bytes),
    )(x, p_enc, *w_args)


# ---------------------------------------------------------------------------
# Parameter construction / packing.  Raw weights use PyTorch-equivalent
# layouts but are stored pre-transposed as (in, out) so the kernel computes
# x @ W + b.  Packing merges heads along the output/lane dim, concatenates
# [K|V], and folds the 1/sqrt(dh) softmax scale into Wq / bq.
# ---------------------------------------------------------------------------
def init_raw_params(key, d_model, dim_ff, scale=0.1):
    ks = iter(jax.random.split(key, 64))

    def rnd(shape, s=scale):
        return jax.random.normal(next(ks), shape, jnp.float32) * s

    def attn():
        return dict(wq=rnd((d_model, d_model)), bq=rnd((d_model,), 0.01),
                    wk=rnd((d_model, d_model)), bk=rnd((d_model,), 0.01),
                    wv=rnd((d_model, d_model)), bv=rnd((d_model,), 0.01),
                    wo=rnd((d_model, d_model)), bo=rnd((d_model,), 0.01))

    def norm():
        return dict(g=jnp.ones((d_model,), jnp.float32) + rnd((d_model,), 0.01),
                    b=rnd((d_model,), 0.01))

    return dict(
        self_attn=attn(), pitch_attn=attn(),
        ffn=dict(w1=rnd((d_model, dim_ff)), b1=rnd((dim_ff,), 0.01),
                 w2=rnd((dim_ff, d_model)), b2=rnd((d_model,), 0.01)),
        norm1=norm(), norm2=norm(), norm3=norm())


def pack_params(raw, nhead, compute_dtype=jnp.bfloat16):
    cd = compute_dtype
    d_model = raw['self_attn']['wq'].shape[0]
    dh = d_model // nhead
    scale = 1.0 / math.sqrt(dh)

    def row(v):
        return v.reshape(1, -1)

    sa, pa, f = raw['self_attn'], raw['pitch_attn'], raw['ffn']
    return dict(
        g1=row(raw['norm1']['g']), b1=row(raw['norm1']['b']),
        g2=row(raw['norm2']['g']), b2=row(raw['norm2']['b']),
        g3=row(raw['norm3']['g']), b3=row(raw['norm3']['b']),
        # scale folded into the Q projection (weights and bias)
        sa_wq=(sa['wq'] * scale).astype(cd), sa_bq=row(sa['bq'] * scale),
        sa_wkv=jnp.concatenate([sa['wk'], sa['wv']], axis=-1).astype(cd),
        sa_bkv=row(jnp.concatenate([sa['bk'], sa['bv']], axis=-1)),
        sa_wo=sa['wo'].astype(cd), sa_bo=row(sa['bo']),
        pa_wq=(pa['wq'] * scale).astype(cd), pa_bq=row(pa['bq'] * scale),
        pa_wkv=jnp.concatenate([pa['wk'], pa['wv']], axis=-1).astype(cd),
        pa_bkv=row(jnp.concatenate([pa['bk'], pa['bv']], axis=-1)),
        pa_wo=pa['wo'].astype(cd), pa_bo=row(pa['bo']),
        ffn_w1=f['w1'].astype(cd), ffn_b1=row(f['b1']),
        ffn_w2=f['w2'].astype(cd), ffn_b2=row(f['b2']),
    )


# ---------------------------------------------------------------------------
# Pure-JAX f32 reference (PyTorch eval-mode semantics) for validation.
# ---------------------------------------------------------------------------
def _layer_norm_ref(v, g, b, eps=1e-5):
    mu = v.mean(-1, keepdims=True)
    var = ((v - mu) ** 2).mean(-1, keepdims=True)
    return (v - mu) / jnp.sqrt(var + eps) * g + b


def _mha_ref(q_in, k_in, v_in, p, nhead):
    B, Lq, D = q_in.shape
    Lk = k_in.shape[1]
    dh = D // nhead
    q = q_in @ p['wq'] + p['bq']
    k = k_in @ p['wk'] + p['bk']
    v = v_in @ p['wv'] + p['bv']
    qh = q.reshape(B, Lq, nhead, dh).transpose(0, 2, 1, 3)
    kh = k.reshape(B, Lk, nhead, dh).transpose(0, 2, 1, 3)
    vh = v.reshape(B, Lk, nhead, dh).transpose(0, 2, 1, 3)
    s = jnp.einsum('bhqd,bhkd->bhqk', qh, kh) / math.sqrt(dh)
    w = jax.nn.softmax(s, axis=-1)
    ctx = jnp.einsum('bhqk,bhkd->bhqd', w, vh)
    ctx = ctx.transpose(0, 2, 1, 3).reshape(B, Lq, D)
    return ctx @ p['wo'] + p['bo']


def encoder_layer_ref(raw, x, p_enc, nhead):
    n1 = _layer_norm_ref(x, raw['norm1']['g'], raw['norm1']['b'])
    x = x + _mha_ref(n1, n1, n1, raw['self_attn'], nhead)
    n2 = _layer_norm_ref(x, raw['norm2']['g'], raw['norm2']['b'])
    x = x + _mha_ref(n2, p_enc, p_enc, raw['pitch_attn'], nhead)
    n3 = _layer_norm_ref(x, raw['norm3']['g'], raw['norm3']['b'])
    f = raw['ffn']
    h = jax.nn.relu(n3 @ f['w1'] + f['b1'])
    return x + h @ f['w2'] + f['b2']


# ---------------------------------------------------------------------------
if __name__ == "__main__":
    D_MODEL, NHEAD, DIM_FF = 32, 4, 64
    B, L = 2, 16
    Q_TILE = 8            # 2 query tiles per batch element (exercises the grid)

    key = jax.random.PRNGKey(0)
    k_param, k_x, k_p = jax.random.split(key, 3)

    raw = init_raw_params(k_param, D_MODEL, DIM_FF)
    x = jax.random.normal(k_x, (B, L, D_MODEL), jnp.float32)
    p_enc = jax.random.normal(k_p, (B, L, D_MODEL), jnp.float32)

    packed = pack_params(raw, NHEAD, compute_dtype=jnp.bfloat16)

    fwd = jax.jit(functools.partial(encoder_layer_with_pitch,
                                    nhead=NHEAD, q_tile=Q_TILE))
    out = fwd(packed, x, p_enc)
    out = jax.block_until_ready(out)

    # Sanity check vs the f32 reference (bf16 matmuls => loose tolerance).
    ref = encoder_layer_ref(raw, x, p_enc, NHEAD)
    max_err = float(jnp.max(jnp.abs(out - ref)))
    assert max_err < 5e-2, f"max abs error vs reference too large: {max_err}"

    print("KERNEL_OK")
</pallas_src>

<mosaic_0001>
module attributes {stable_mosaic.version = 11 : i64} {
  func.func @_encoder_layer_kernel(%arg0: i32, %arg1: i32, %arg2: memref<1x16x32xf32, #tpu.memory_space<vmem>>, %arg3: memref<1x16x32xf32, #tpu.memory_space<vmem>>, %arg4: memref<1x32xf32, #tpu.memory_space<vmem>>, %arg5: memref<1x32xf32, #tpu.memory_space<vmem>>, %arg6: memref<1x32xf32, #tpu.memory_space<vmem>>, %arg7: memref<1x32xf32, #tpu.memory_space<vmem>>, %arg8: memref<1x32xf32, #tpu.memory_space<vmem>>, %arg9: memref<1x32xf32, #tpu.memory_space<vmem>>, %arg10: memref<32x32xbf16, #tpu.memory_space<vmem>>, %arg11: memref<1x32xf32, #tpu.memory_space<vmem>>, %arg12: memref<32x64xbf16, #tpu.memory_space<vmem>>, %arg13: memref<1x64xf32, #tpu.memory_space<vmem>>, %arg14: memref<32x32xbf16, #tpu.memory_space<vmem>>, %arg15: memref<1x32xf32, #tpu.memory_space<vmem>>, %arg16: memref<32x32xbf16, #tpu.memory_space<vmem>>, %arg17: memref<1x32xf32, #tpu.memory_space<vmem>>, %arg18: memref<32x64xbf16, #tpu.memory_space<vmem>>, %arg19: memref<1x64xf32, #tpu.memory_space<vmem>>, %arg20: memref<32x32xbf16, #tpu.memory_space<vmem>>, %arg21: memref<1x32xf32, #tpu.memory_space<vmem>>, %arg22: memref<32x64xbf16, #tpu.memory_space<vmem>>, %arg23: memref<1x64xf32, #tpu.memory_space<vmem>>, %arg24: memref<64x32xbf16, #tpu.memory_space<vmem>>, %arg25: memref<1x32xf32, #tpu.memory_space<vmem>>, %arg26: memref<1x8x32xf32, #tpu.memory_space<vmem>>) attributes {dimension_semantics = [#tpu.dimension_semantics<parallel>, #tpu.dimension_semantics<parallel>], iteration_bounds = array<i64: 2, 2>, scalar_prefetch = 0 : i64, scratch_operands = 0 : i64, tpu.core_type = #tpu.core_type<tc>, window_params = [{transform_indices = @transform_0, window_bounds = array<i64: 1, 16, 32>}, {transform_indices = @transform_1, window_bounds = array<i64: 1, 16, 32>}, {pipeline_mode = #tpu.pipeline_mode<synchronous>, transform_indices = @transform_2, window_bounds = array<i64: 1, 32>}, {pipeline_mode = #tpu.pipeline_mode<synchronous>, transform_indices = @transform_3, window_bounds = array<i64: 1, 32>}, {pipeline_mode = #tpu.pipeline_mode<synchronous>, transform_indices = @transform_4, window_bounds = array<i64: 1, 32>}, {pipeline_mode = #tpu.pipeline_mode<synchronous>, transform_indices = @transform_5, window_bounds = array<i64: 1, 32>}, {pipeline_mode = #tpu.pipeline_mode<synchronous>, transform_indices = @transform_6, window_bounds = array<i64: 1, 32>}, {pipeline_mode = #tpu.pipeline_mode<synchronous>, transform_indices = @transform_7, window_bounds = array<i64: 1, 32>}, {pipeline_mode = #tpu.pipeline_mode<synchronous>, transform_indices = @transform_8, window_bounds = array<i64: 32, 32>}, {pipeline_mode = #tpu.pipeline_mode<synchronous>, transform_indices = @transform_9, window_bounds = array<i64: 1, 32>}, {pipeline_mode = #tpu.pipeline_mode<synchronous>, transform_indices = @transform_10, window_bounds = array<i64: 32, 64>}, {pipeline_mode = #tpu.pipeline_mode<synchronous>, transform_indices = @transform_11, window_bounds = array<i64: 1, 64>}, {pipeline_mode = #tpu.pipeline_mode<synchronous>, transform_indices = @transform_12, window_bounds = array<i64: 32, 32>}, {pipeline_mode = #tpu.pipeline_mode<synchronous>, transform_indices = @transform_13, window_bounds = array<i64: 1, 32>}, {pipeline_mode = #tpu.pipeline_mode<synchronous>, transform_indices = @transform_14, window_bounds = array<i64: 32, 32>}, {pipeline_mode = #tpu.pipeline_mode<synchronous>, transform_indices = @transform_15, window_bounds = array<i64: 1, 32>}, {pipeline_mode = #tpu.pipeline_mode<synchronous>, transform_indices = @transform_16, window_bounds = array<i64: 32, 64>}, {pipeline_mode = #tpu.pipeline_mode<synchronous>, transform_indices = @transform_17, window_bounds = array<i64: 1, 64>}, {pipeline_mode = #tpu.pipeline_mode<synchronous>, transform_indices = @transform_18, window_bounds = array<i64: 32, 32>}, {pipeline_mode = #tpu.pipeline_mode<synchronous>, transform_indices = @transform_19, window_bounds = array<i64: 1, 32>}, {pipeline_mode = #tpu.pipeline_mode<synchronous>, transform_indices = @transform_20, window_bounds = array<i64: 32, 64>}, {pipeline_mode = #tpu.pipeline_mode<synchronous>, transform_indices = @transform_21, window_bounds = array<i64: 1, 64>}, {pipeline_mode = #tpu.pipeline_mode<synchronous>, transform_indices = @transform_22, window_bounds = array<i64: 64, 32>}, {pipeline_mode = #tpu.pipeline_mode<synchronous>, transform_indices = @transform_23, window_bounds = array<i64: 1, 32>}, {transform_indices = @transform_24, window_bounds = array<i64: 1, 8, 32>}]} {
    %c8_i32 = arith.constant 8 : i32
    %0 = arith.muli %arg1, %c8_i32 : i32
    %1 = tpu.assume_multiple %0, 8 : i32
    %c0 = arith.constant 0 : index
    %c0_0 = arith.constant 0 : index
    %c0_1 = arith.constant 0 : index
    %2 = vector.load %arg2[%c0, %c0_0, %c0_1] : memref<1x16x32xf32, #tpu.memory_space<vmem>>, vector<1x16x32xf32>
    %3 = vector.shape_cast %2 : vector<1x16x32xf32> to vector<16x32xf32>
    %c0_2 = arith.constant 0 : index
    %4 = arith.index_cast %1 : i32 to index
    %c0_3 = arith.constant 0 : index
    %5 = vector.load %arg2[%c0_2, %4, %c0_3] : memref<1x16x32xf32, #tpu.memory_space<vmem>>, vector<1x8x32xf32>
    %6 = vector.shape_cast %5 : vector<1x8x32xf32> to vector<8x32xf32>
    %c0_4 = arith.constant 0 : index
    %c0_5 = arith.constant 0 : index
    %c0_6 = arith.constant 0 : index
    %7 = vector.load %arg3[%c0_4, %c0_5, %c0_6] : memref<1x16x32xf32, #tpu.memory_space<vmem>>, vector<1x16x32xf32>
    %8 = vector.shape_cast %7 : vector<1x16x32xf32> to vector<16x32xf32>
    %cst = arith.constant dense<0.000000e+00> : vector<16xf32>
    %9 = vector.multi_reduction <add>, %3, %cst [1] : vector<16x32xf32> to vector<16xf32>
    %10 = vector.shape_cast %9 : vector<16xf32> to vector<16x1xf32>
    %cst_7 = arith.constant 3.200000e+01 : f32
    %11 = vector.broadcast %cst_7 : f32 to vector<16x1xf32>
    %12 = arith.divf %10, %11 : vector<16x1xf32>
    %13 = arith.mulf %3, %3 : vector<16x32xf32>
    %cst_8 = arith.constant dense<0.000000e+00> : vector<16xf32>
    %14 = vector.multi_reduction <add>, %13, %cst_8 [1] : vector<16x32xf32> to vector<16xf32>
    %15 = vector.shape_cast %14 : vector<16xf32> to vector<16x1xf32>
    %cst_9 = arith.constant 3.200000e+01 : f32
    %16 = vector.broadcast %cst_9 : f32 to vector<16x1xf32>
    %17 = arith.divf %15, %16 : vector<16x1xf32>
    %18 = arith.mulf %12, %12 : vector<16x1xf32>
    %19 = arith.subf %17, %18 : vector<16x1xf32>
    %20 = vector.broadcast %12 : vector<16x1xf32> to vector<16x32xf32>
    %21 = arith.subf %3, %20 : vector<16x32xf32>
    %cst_10 = arith.constant 9.99999974E-6 : f32
    %22 = vector.broadcast %cst_10 : f32 to vector<16x1xf32>
    %23 = arith.addf %19, %22 : vector<16x1xf32>
    %24 = math.rsqrt %23 : vector<16x1xf32>
    %25 = vector.broadcast %24 : vector<16x1xf32> to vector<16x32xf32>
    %26 = arith.mulf %21, %25 : vector<16x32xf32>
    %c0_11 = arith.constant 0 : index
    %c0_12 = arith.constant 0 : index
    %27 = vector.load %arg4[%c0_11, %c0_12] : memref<1x32xf32, #tpu.memory_space<vmem>>, vector<1x32xf32>
    %28 = vector.broadcast %27 : vector<1x32xf32> to vector<16x32xf32>
    %29 = arith.mulf %26, %28 : vector<16x32xf32>
    %c0_13 = arith.constant 0 : index
    %c0_14 = arith.constant 0 : index
    %30 = vector.load %arg5[%c0_13, %c0_14] : memref<1x32xf32, #tpu.memory_space<vmem>>, vector<1x32xf32>
    %31 = vector.broadcast %30 : vector<1x32xf32> to vector<16x32xf32>
    %32 = arith.addf %29, %31 : vector<16x32xf32>
    %33 = arith.truncf %32 : vector<16x32xf32> to vector<16x32xbf16>
    %cst_15 = arith.constant dense<0.000000e+00> : vector<8xf32>
    %34 = vector.multi_reduction <add>, %6, %cst_15 [1] : vector<8x32xf32> to vector<8xf32>
    %35 = vector.shape_cast %34 : vector<8xf32> to vector<8x1xf32>
    %cst_16 = arith.constant 3.200000e+01 : f32
    %36 = vector.broadcast %cst_16 : f32 to vector<8x1xf32>
    %37 = arith.divf %35, %36 : vector<8x1xf32>
    %38 = arith.mulf %6, %6 : vector<8x32xf32>
    %cst_17 = arith.constant dense<0.000000e+00> : vector<8xf32>
    %39 = vector.multi_reduction <add>, %38, %cst_17 [1] : vector<8x32xf32> to vector<8xf32>
    %40 = vector.shape_cast %39 : vector<8xf32> to vector<8x1xf32>
    %cst_18 = arith.constant 3.200000e+01 : f32
    %41 = vector.broadcast %cst_18 : f32 to vector<8x1xf32>
    %42 = arith.divf %40, %41 : vector<8x1xf32>
    %43 = arith.mulf %37, %37 : vector<8x1xf32>
    %44 = arith.subf %42, %43 : vector<8x1xf32>
    %45 = vector.broadcast %37 : vector<8x1xf32> to vector<8x32xf32>
    %46 = arith.subf %6, %45 : vector<8x32xf32>
    %cst_19 = arith.constant 9.99999974E-6 : f32
    %47 = vector.broadcast %cst_19 : f32 to vector<8x1xf32>
    %48 = arith.addf %44, %47 : vector<8x1xf32>
    %49 = math.rsqrt %48 : vector<8x1xf32>
    %50 = vector.broadcast %49 : vector<8x1xf32> to vector<8x32xf32>
    %51 = arith.mulf %46, %50 : vector<8x32xf32>
    %c0_20 = arith.constant 0 : index
    %c0_21 = arith.constant 0 : index
    %52 = vector.load %arg4[%c0_20, %c0_21] : memref<1x32xf32, #tpu.memory_space<vmem>>, vector<1x32xf32>
    %53 = vector.broadcast %52 : vector<1x32xf32> to vector<8x32xf32>
    %54 = arith.mulf %51, %53 : vector<8x32xf32>
    %c0_22 = arith.constant 0 : index
    %c0_23 = arith.constant 0 : index
    %55 = vector.load %arg5[%c0_22, %c0_23] : memref<1x32xf32, #tpu.memory_space<vmem>>, vector<1x32xf32>
    %56 = vector.broadcast %55 : vector<1x32xf32> to vector<8x32xf32>
    %57 = arith.addf %54, %56 : vector<8x32xf32>
    %58 = arith.truncf %57 : vector<8x32xf32> to vector<8x32xbf16>
    %c0_24 = arith.constant 0 : index
    %c0_25 = arith.constant 0 : index
    %59 = vector.load %arg10[%c0_24, %c0_25] : memref<32x32xbf16, #tpu.memory_space<vmem>>, vector<32x32xbf16>
    %cst_26 = arith.constant dense<0.000000e+00> : vector<8x32xf32>
    %60 = tpu.matmul %58, %59, %cst_26 {dimension_numbers = #tpu.dot_dimension_numbers<[1], [0], [0], [1], [0, 0, 1, 1], [], []>} : vector<8x32xbf16>, vector<32x32xbf16>, vector<8x32xf32> -> vector<8x32xf32>
    %c0_27 = arith.constant 0 : index
    %c0_28 = arith.constant 0 : index
    %61 = vector.load %arg11[%c0_27, %c0_28] : memref<1x32xf32, #tpu.memory_space<vmem>>, vector<1x32xf32>
    %62 = vector.broadcast %61 : vector<1x32xf32> to vector<8x32xf32>
    %63 = arith.addf %60, %62 : vector<8x32xf32>
    %64 = arith.truncf %63 : vector<8x32xf32> to vector<8x32xbf16>
    %c0_29 = arith.constant 0 : index
    %c0_30 = arith.constant 0 : index
    %65 = vector.load %arg12[%c0_29, %c0_30] : memref<32x64xbf16, #tpu.memory_space<vmem>>, vector<32x64xbf16>
    %cst_31 = arith.constant dense<0.000000e+00> : vector<16x64xf32>
    %66 = tpu.matmul %33, %65, %cst_31 {dimension_numbers = #tpu.dot_dimension_numbers<[1], [0], [0], [1], [0, 0, 1, 1], [], []>} : vector<16x32xbf16>, vector<32x64xbf16>, vector<16x64xf32> -> vector<16x64xf32>
    %c0_32 = arith.constant 0 : index
    %c0_33 = arith.constant 0 : index
    %67 = vector.load %arg13[%c0_32, %c0_33] : memref<1x64xf32, #tpu.memory_space<vmem>>, vector<1x64xf32>
    %68 = vector.broadcast %67 : vector<1x64xf32> to vector<16x64xf32>
    %69 = arith.addf %66, %68 : vector<16x64xf32>
    %70 = arith.truncf %69 : vector<16x64xf32> to vector<16x64xbf16>
    %71 = vector.extract_strided_slice %70 {offsets = [0, 0], sizes = [16, 32], strides = [1, 1]} : vector<16x64xbf16> to vector<16x32xbf16>
    %72 = vector.extract_strided_slice %70 {offsets = [0, 32], sizes = [16, 32], strides = [1, 1]} : vector<16x64xbf16> to vector<16x32xbf16>
    %73 = vector.extract_strided_slice %64 {offsets = [0, 0], sizes = [8, 8], strides = [1, 1]} : vector<8x32xbf16> to vector<8x8xbf16>
    %74 = vector.extract_strided_slice %71 {offsets = [0, 0], sizes = [16, 8], strides = [1, 1]} : vector<16x32xbf16> to vector<16x8xbf16>
    "tpu.trace_start"() <{level = 10 : i32, message = "qd,kd->qk"}> : () -> ()
    %cst_34 = arith.constant dense<0.000000e+00> : vector<8x16xf32>
    %75 = tpu.matmul %73, %74, %cst_34 {dimension_numbers = #tpu.dot_dimension_numbers<[1], [1], [0], [0], [0, 0, 1, 0], [], []>} : vector<8x8xbf16>, vector<16x8xbf16>, vector<8x16xf32> -> vector<8x16xf32>
    "tpu.trace_stop"() : () -> ()
    %cst_35 = arith.constant dense<0xFF800000> : vector<8xf32>
    %76 = vector.multi_reduction <maximumf>, %75, %cst_35 [1] : vector<8x16xf32> to vector<8xf32>
    %77 = vector.shape_cast %76 : vector<8xf32> to vector<8x1xf32>
    %78 = vector.broadcast %77 : vector<8x1xf32> to vector<8x16xf32>
    %79 = arith.subf %75, %78 : vector<8x16xf32>
    %80 = math.exp %79 : vector<8x16xf32>
    %cst_36 = arith.constant dense<0.000000e+00> : vector<8xf32>
    %81 = vector.multi_reduction <add>, %80, %cst_36 [1] : vector<8x16xf32> to vector<8xf32>
    %82 = vector.shape_cast %81 : vector<8xf32> to vector<8x1xf32>
    %83 = tpu.reciprocal %82 {approx = true} : vector<8x1xf32> -> vector<8x1xf32>
    %84 = vector.broadcast %83 : vector<8x1xf32> to vector<8x16xf32>
    %85 = arith.mulf %80, %84 : vector<8x16xf32>
    %86 = arith.truncf %85 : vector<8x16xf32> to vector<8x16xbf16>
    %87 = vector.extract_strided_slice %72 {offsets = [0, 0], sizes = [16, 8], strides = [1, 1]} : vector<16x32xbf16> to vector<16x8xbf16>
    %cst_37 = arith.constant dense<0.000000e+00> : vector<8x8xf32>
    %88 = tpu.matmul %86, %87, %cst_37 {dimension_numbers = #tpu.dot_dimension_numbers<[1], [0], [0], [1], [0, 0, 1, 1], [], []>} : vector<8x16xbf16>, vector<16x8xbf16>, vector<8x8xf32> -> vector<8x8xf32>
    %89 = vector.extract_strided_slice %64 {offsets = [0, 8], sizes = [8, 8], strides = [1, 1]} : vector<8x32xbf16> to vector<8x8xbf16>
    %90 = vector.extract_strided_slice %71 {offsets = [0, 8], sizes = [16, 8], strides = [1, 1]} : vector<16x32xbf16> to vector<16x8xbf16>
    "tpu.trace_start"() <{level = 10 : i32, message = "qd,kd->qk"}> : () -> ()
    %cst_38 = arith.constant dense<0.000000e+00> : vector<8x16xf32>
    %91 = tpu.matmul %89, %90, %cst_38 {dimension_numbers = #tpu.dot_dimension_numbers<[1], [1], [0], [0], [0, 0, 1, 0], [], []>} : vector<8x8xbf16>, vector<16x8xbf16>, vector<8x16xf32> -> vector<8x16xf32>
    "tpu.trace_stop"() : () -> ()
    %cst_39 = arith.constant dense<0xFF800000> : vector<8xf32>
    %92 = vector.multi_reduction <maximumf>, %91, %cst_39 [1] : vector<8x16xf32> to vector<8xf32>
    %93 = vector.shape_cast %92 : vector<8xf32> to vector<8x1xf32>
    %94 = vector.broadcast %93 : vector<8x1xf32> to vector<8x16xf32>
    %95 = arith.subf %91, %94 : vector<8x16xf32>
    %96 = math.exp %95 : vector<8x16xf32>
    %cst_40 = arith.constant dense<0.000000e+00> : vector<8xf32>
    %97 = vector.multi_reduction <add>, %96, %cst_40 [1] : vector<8x16xf32> to vector<8xf32>
    %98 = vector.shape_cast %97 : vector<8xf32> to vector<8x1xf32>
    %99 = tpu.reciprocal %98 {approx = true} : vector<8x1xf32> -> vector<8x1xf32>
    %100 = vector.broadcast %99 : vector<8x1xf32> to vector<8x16xf32>
    %101 = arith.mulf %96, %100 : vector<8x16xf32>
    %102 = arith.truncf %101 : vector<8x16xf32> to vector<8x16xbf16>
    %103 = vector.extract_strided_slice %72 {offsets = [0, 8], sizes = [16, 8], strides = [1, 1]} : vector<16x32xbf16> to vector<16x8xbf16>
    %cst_41 = arith.constant dense<0.000000e+00> : vector<8x8xf32>
    %104 = tpu.matmul %102, %103, %cst_41 {dimension_numbers = #tpu.dot_dimension_numbers<[1], [0], [0], [1], [0, 0, 1, 1], [], []>} : vector<8x16xbf16>, vector<16x8xbf16>, vector<8x8xf32> -> vector<8x8xf32>
    %105 = vector.extract_strided_slice %64 {offsets = [0, 16], sizes = [8, 8], strides = [1, 1]} : vector<8x32xbf16> to vector<8x8xbf16>
    %106 = vector.extract_strided_slice %71 {offsets = [0, 16], sizes = [16, 8], strides = [1, 1]} : vector<16x32xbf16> to vector<16x8xbf16>
    "tpu.trace_start"() <{level = 10 : i32, message = "qd,kd->qk"}> : () -> ()
    %cst_42 = arith.constant dense<0.000000e+00> : vector<8x16xf32>
    %107 = tpu.matmul %105, %106, %cst_42 {dimension_numbers = #tpu.dot_dimension_numbers<[1], [1], [0], [0], [0, 0, 1, 0], [], []>} : vector<8x8xbf16>, vector<16x8xbf16>, vector<8x16xf32> -> vector<8x16xf32>
    "tpu.trace_stop"() : () -> ()
    %cst_43 = arith.constant dense<0xFF800000> : vector<8xf32>
    %108 = vector.multi_reduction <maximumf>, %107, %cst_43 [1] : vector<8x16xf32> to vector<8xf32>
    %109 = vector.shape_cast %108 : vector<8xf32> to vector<8x1xf32>
    %110 = vector.broadcast %109 : vector<8x1xf32> to vector<8x16xf32>
    %111 = arith.subf %107, %110 : vector<8x16xf32>
    %112 = math.exp %111 : vector<8x16xf32>
    %cst_44 = arith.constant dense<0.000000e+00> : vector<8xf32>
    %113 = vector.multi_reduction <add>, %112, %cst_44 [1] : vector<8x16xf32> to vector<8xf32>
    %114 = vector.shape_cast %113 : vector<8xf32> to vector<8x1xf32>
    %115 = tpu.reciprocal %114 {approx = true} : vector<8x1xf32> -> vector<8x1xf32>
    %116 = vector.broadcast %115 : vector<8x1xf32> to vector<8x16xf32>
    %117 = arith.mulf %112, %116 : vector<8x16xf32>
    %118 = arith.truncf %117 : vector<8x16xf32> to vector<8x16xbf16>
    %119 = vector.extract_strided_slice %72 {offsets = [0, 16], sizes = [16, 8], strides = [1, 1]} : vector<16x32xbf16> to vector<16x8xbf16>
    %cst_45 = arith.constant dense<0.000000e+00> : vector<8x8xf32>
    %120 = tpu.matmul %118, %119, %cst_45 {dimension_numbers = #tpu.dot_dimension_numbers<[1], [0], [0], [1], [0, 0, 1, 1], [], []>} : vector<8x16xbf16>, vector<16x8xbf16>, vector<8x8xf32> -> vector<8x8xf32>
    %121 = vector.extract_strided_slice %64 {offsets = [0, 24], sizes = [8, 8], strides = [1, 1]} : vector<8x32xbf16> to vector<8x8xbf16>
    %122 = vector.extract_strided_slice %71 {offsets = [0, 24], sizes = [16, 8], strides = [1, 1]} : vector<16x32xbf16> to vector<16x8xbf16>
    "tpu.trace_start"() <{level = 10 : i32, message = "qd,kd->qk"}> : () -> ()
    %cst_46 = arith.constant dense<0.000000e+00> : vector<8x16xf32>
    %123 = tpu.matmul %121, %122, %cst_46 {dimension_numbers = #tpu.dot_dimension_numbers<[1], [1], [0], [0], [0, 0, 1, 0], [], []>} : vector<8x8xbf16>, vector<16x8xbf16>, vector<8x16xf32> -> vector<8x16xf32>
    "tpu.trace_stop"() : () -> ()
    %cst_47 = arith.constant dense<0xFF800000> : vector<8xf32>
    %124 = vector.multi_reduction <maximumf>, %123, %cst_47 [1] : vector<8x16xf32> to vector<8xf32>
    %125 = vector.shape_cast %124 : vector<8xf32> to vector<8x1xf32>
    %126 = vector.broadcast %125 : vector<8x1xf32> to vector<8x16xf32>
    %127 = arith.subf %123, %126 : vector<8x16xf32>
    %128 = math.exp %127 : vector<8x16xf32>
    %cst_48 = arith.constant dense<0.000000e+00> : vector<8xf32>
    %129 = vector.multi_reduction <add>, %128, %cst_48 [1] : vector<8x16xf32> to vector<8xf32>
    %130 = vector.shape_cast %129 : vector<8xf32> to vector<8x1xf32>
    %131 = tpu.reciprocal %130 {approx = true} : vector<8x1xf32> -> vector<8x1xf32>
    %132 = vector.broadcast %131 : vector<8x1xf32> to vector<8x16xf32>
    %133 = arith.mulf %128, %132 : vector<8x16xf32>
    %134 = arith.truncf %133 : vector<8x16xf32> to vector<8x16xbf16>
    %135 = vector.extract_strided_slice %72 {offsets = [0, 24], sizes = [16, 8], strides = [1, 1]} : vector<16x32xbf16> to vector<16x8xbf16>
    %cst_49 = arith.constant dense<0.000000e+00> : vector<8x8xf32>
    %136 = tpu.matmul %134, %135, %cst_49 {dimension_numbers = #tpu.dot_dimension_numbers<[1], [0], [0], [1], [0, 0, 1, 1], [], []>} : vector<8x16xbf16>, vector<16x8xbf16>, vector<8x8xf32> -> vector<8x8xf32>
    %137 = tpu.concatenate %88, %104, %120, %136 in 1 : vector<8x8xf32>, vector<8x8xf32>, vector<8x8xf32>, vector<8x8xf32> -> vector<8x32xf32>
    %138 = arith.truncf %137 : vector<8x32xf32> to vector<8x32xbf16>
    %c0_50 = arith.constant 0 : index
    %c0_51 = arith.constant 0 : index
    %139 = vector.load %arg14[%c0_50, %c0_51] : memref<32x32xbf16, #tpu.memory_space<vmem>>, vector<32x32xbf16>
    %cst_52 = arith.constant dense<0.000000e+00> : vector<8x32xf32>
    %140 = tpu.matmul %138, %139, %cst_52 {dimension_numbers = #tpu.dot_dimension_numbers<[1], [0], [0], [1], [0, 0, 1, 1], [], []>} : vector<8x32xbf16>, vector<32x32xbf16>, vector<8x32xf32> -> vector<8x32xf32>
    %c0_53 = arith.constant 0 : index
    %c0_54 = arith.constant 0 : index
    %141 = vector.load %arg15[%c0_53, %c0_54] : memref<1x32xf32, #tpu.memory_space<vmem>>, vector<1x32xf32>
    %142 = vector.broadcast %141 : vector<1x32xf32> to vector<8x32xf32>
    %143 = arith.addf %140, %142 : vector<8x32xf32>
    %144 = arith.addf %6, %143 : vector<8x32xf32>
    %cst_55 = arith.constant dense<0.000000e+00> : vector<8xf32>
    %145 = vector.multi_reduction <add>, %144, %cst_55 [1] : vector<8x32xf32> to vector<8xf32>
    %146 = vector.shape_cast %145 : vector<8xf32> to vector<8x1xf32>
    %cst_56 = arith.constant 3.200000e+01 : f32
    %147 = vector.broadcast %cst_56 : f32 to vector<8x1xf32>
    %148 = arith.divf %146, %147 : vector<8x1xf32>
    %149 = arith.mulf %144, %144 : vector<8x32xf32>
    %cst_57 = arith.constant dense<0.000000e+00> : vector<8xf32>
    %150 = vector.multi_reduction <add>, %149, %cst_57 [1] : vector<8x32xf32> to vector<8xf32>
    %151 = vector.shape_cast %150 : vector<8xf32> to vector<8x1xf32>
    %cst_58 = arith.constant 3.200000e+01 : f32
    %152 = vector.broadcast %cst_58 : f32 to vector<8x1xf32>
    %153 = arith.divf %151, %152 : vector<8x1xf32>
    %154 = arith.mulf %148, %148 : vector<8x1xf32>
    %155 = arith.subf %153, %154 : vector<8x1xf32>
    %156 = vector.broadcast %148 : vector<8x1xf32> to vector<8x32xf32>
    %157 = arith.subf %144, %156 : vector<8x32xf32>
    %cst_59 = arith.constant 9.99999974E-6 : f32
    %158 = vector.broadcast %cst_59 : f32 to vector<8x1xf32>
    %159 = arith.addf %155, %158 : vector<8x1xf32>
    %160 = math.rsqrt %159 : vector<8x1xf32>
    %161 = vector.broadcast %160 : vector<8x1xf32> to vector<8x32xf32>
    %162 = arith.mulf %157, %161 : vector<8x32xf32>
    %c0_60 = arith.constant 0 : index
    %c0_61 = arith.constant 0 : index
    %163 = vector.load %arg6[%c0_60, %c0_61] : memref<1x32xf32, #tpu.memory_space<vmem>>, vector<1x32xf32>
    %164 = vector.broadcast %163 : vector<1x32xf32> to vector<8x32xf32>
    %165 = arith.mulf %162, %164 : vector<8x32xf32>
    %c0_62 = arith.constant 0 : index
    %c0_63 = arith.constant 0 : index
    %166 = vector.load %arg7[%c0_62, %c0_63] : memref<1x32xf32, #tpu.memory_space<vmem>>, vector<1x32xf32>
    %167 = vector.broadcast %166 : vector<1x32xf32> to vector<8x32xf32>
    %168 = arith.addf %165, %167 : vector<8x32xf32>
    %169 = arith.truncf %168 : vector<8x32xf32> to vector<8x32xbf16>
    %c0_64 = arith.constant 0 : index
    %c0_65 = arith.constant 0 : index
    %170 = vector.load %arg16[%c0_64, %c0_65] : memref<32x32xbf16, #tpu.memory_space<vmem>>, vector<32x32xbf16>
    %cst_66 = arith.constant dense<0.000000e+00> : vector<8x32xf32>
    %171 = tpu.matmul %169, %170, %cst_66 {dimension_numbers = #tpu.dot_dimension_numbers<[1], [0], [0], [1], [0, 0, 1, 1], [], []>} : vector<8x32xbf16>, vector<32x32xbf16>, vector<8x32xf32> -> vector<8x32xf32>
    %c0_67 = arith.constant 0 : index
    %c0_68 = arith.constant 0 : index
    %172 = vector.load %arg17[%c0_67, %c0_68] : memref<1x32xf32, #tpu.memory_space<vmem>>, vector<1x32xf32>
    %173 = vector.broadcast %172 : vector<1x32xf32> to vector<8x32xf32>
    %174 = arith.addf %171, %173 : vector<8x32xf32>
    %175 = arith.truncf %174 : vector<8x32xf32> to vector<8x32xbf16>
    %176 = arith.truncf %8 : vector<16x32xf32> to vector<16x32xbf16>
    %c0_69 = arith.constant 0 : index
    %c0_70 = arith.constant 0 : index
    %177 = vector.load %arg18[%c0_69, %c0_70] : memref<32x64xbf16, #tpu.memory_space<vmem>>, vector<32x64xbf16>
    %cst_71 = arith.constant dense<0.000000e+00> : vector<16x64xf32>
    %178 = tpu.matmul %176, %177, %cst_71 {dimension_numbers = #tpu.dot_dimension_numbers<[1], [0], [0], [1], [0, 0, 1, 1], [], []>} : vector<16x32xbf16>, vector<32x64xbf16>, vector<16x64xf32> -> vector<16x64xf32>
    %c0_72 = arith.constant 0 : index
    %c0_73 = arith.constant 0 : index
    %179 = vector.load %arg19[%c0_72, %c0_73] : memref<1x64xf32, #tpu.memory_space<vmem>>, vector<1x64xf32>
    %180 = vector.broadcast %179 : vector<1x64xf32> to vector<16x64xf32>
    %181 = arith.addf %178, %180 : vector<16x64xf32>
    %182 = arith.truncf %181 : vector<16x64xf32> to vector<16x64xbf16>
    %183 = vector.extract_strided_slice %182 {offsets = [0, 0], sizes = [16, 32], strides = [1, 1]} : vector<16x64xbf16> to vector<16x32xbf16>
    %184 = vector.extract_strided_slice %182 {offsets = [0, 32], sizes = [16, 32], strides = [1, 1]} : vector<16x64xbf16> to vector<16x32xbf16>
    %185 = vector.extract_strided_slice %175 {offsets = [0, 0], sizes = [8, 8], strides = [1, 1]} : vector<8x32xbf16> to vector<8x8xbf16>
    %186 = vector.extract_strided_slice %183 {offsets = [0, 0], sizes = [16, 8], strides = [1, 1]} : vector<16x32xbf16> to vector<16x8xbf16>
    "tpu.trace_start"() <{level = 10 : i32, message = "qd,kd->qk"}> : () -> ()
    %cst_74 = arith.constant dense<0.000000e+00> : vector<8x16xf32>
    %187 = tpu.matmul %185, %186, %cst_74 {dimension_numbers = #tpu.dot_dimension_numbers<[1], [1], [0], [0], [0, 0, 1, 0], [], []>} : vector<8x8xbf16>, vector<16x8xbf16>, vector<8x16xf32> -> vector<8x16xf32>
    "tpu.trace_stop"() : () -> ()
    %cst_75 = arith.constant dense<0xFF800000> : vector<8xf32>
    %188 = vector.multi_reduction <maximumf>, %187, %cst_75 [1] : vector<8x16xf32> to vector<8xf32>
    %189 = vector.shape_cast %188 : vector<8xf32> to vector<8x1xf32>
    %190 = vector.broadcast %189 : vector<8x1xf32> to vector<8x16xf32>
    %191 = arith.subf %187, %190 : vector<8x16xf32>
    %192 = math.exp %191 : vector<8x16xf32>
    %cst_76 = arith.constant dense<0.000000e+00> : vector<8xf32>
    %193 = vector.multi_reduction <add>, %192, %cst_76 [1] : vector<8x16xf32> to vector<8xf32>
    %194 = vector.shape_cast %193 : vector<8xf32> to vector<8x1xf32>
    %195 = tpu.reciprocal %194 {approx = true} : vector<8x1xf32> -> vector<8x1xf32>
    %196 = vector.broadcast %195 : vector<8x1xf32> to vector<8x16xf32>
    %197 = arith.mulf %192, %196 : vector<8x16xf32>
    %198 = arith.truncf %197 : vector<8x16xf32> to vector<8x16xbf16>
    %199 = vector.extract_strided_slice %184 {offsets = [0, 0], sizes = [16, 8], strides = [1, 1]} : vector<16x32xbf16> to vector<16x8xbf16>
    %cst_77 = arith.constant dense<0.000000e+00> : vector<8x8xf32>
    %200 = tpu.matmul %198, %199, %cst_77 {dimension_numbers = #tpu.dot_dimension_numbers<[1], [0], [0], [1], [0, 0, 1, 1], [], []>} : vector<8x16xbf16>, vector<16x8xbf16>, vector<8x8xf32> -> vector<8x8xf32>
    %201 = vector.extract_strided_slice %175 {offsets = [0, 8], sizes = [8, 8], strides = [1, 1]} : vector<8x32xbf16> to vector<8x8xbf16>
    %202 = vector.extract_strided_slice %183 {offsets = [0, 8], sizes = [16, 8], strides = [1, 1]} : vector<16x32xbf16> to vector<16x8xbf16>
    "tpu.trace_start"() <{level = 10 : i32, message = "qd,kd->qk"}> : () -> ()
    %cst_78 = arith.constant dense<0.000000e+00> : vector<8x16xf32>
    %203 = tpu.matmul %201, %202, %cst_78 {dimension_numbers = #tpu.dot_dimension_numbers<[1], [1], [0], [0], [0, 0, 1, 0], [], []>} : vector<8x8xbf16>, vector<16x8xbf16>, vector<8x16xf32> -> vector<8x16xf32>
    "tpu.trace_stop"() : () -> ()
    %cst_79 = arith.constant dense<0xFF800000> : vector<8xf32>
    %204 = vector.multi_reduction <maximumf>, %203, %cst_79 [1] : vector<8x16xf32> to vector<8xf32>
    %205 = vector.shape_cast %204 : vector<8xf32> to vector<8x1xf32>
    %206 = vector.broadcast %205 : vector<8x1xf32> to vector<8x16xf32>
    %207 = arith.subf %203, %206 : vector<8x16xf32>
    %208 = math.exp %207 : vector<8x16xf32>
    %cst_80 = arith.constant dense<0.000000e+00> : vector<8xf32>
    %209 = vector.multi_reduction <add>, %208, %cst_80 [1] : vector<8x16xf32> to vector<8xf32>
    %210 = vector.shape_cast %209 : vector<8xf32> to vector<8x1xf32>
    %211 = tpu.reciprocal %210 {approx = true} : vector<8x1xf32> -> vector<8x1xf32>
    %212 = vector.broadcast %211 : vector<8x1xf32> to vector<8x16xf32>
    %213 = arith.mulf %208, %212 : vector<8x16xf32>
    %214 = arith.truncf %213 : vector<8x16xf32> to vector<8x16xbf16>
    %215 = vector.extract_strided_slice %184 {offsets = [0, 8], sizes = [16, 8], strides = [1, 1]} : vector<16x32xbf16> to vector<16x8xbf16>
    %cst_81 = arith.constant dense<0.000000e+00> : vector<8x8xf32>
    %216 = tpu.matmul %214, %215, %cst_81 {dimension_numbers = #tpu.dot_dimension_numbers<[1], [0], [0], [1], [0, 0, 1, 1], [], []>} : vector<8x16xbf16>, vector<16x8xbf16>, vector<8x8xf32> -> vector<8x8xf32>
    %217 = vector.extract_strided_slice %175 {offsets = [0, 16], sizes = [8, 8], strides = [1, 1]} : vector<8x32xbf16> to vector<8x8xbf16>
    %218 = vector.extract_strided_slice %183 {offsets = [0, 16], sizes = [16, 8], strides = [1, 1]} : vector<16x32xbf16> to vector<16x8xbf16>
    "tpu.trace_start"() <{level = 10 : i32, message = "qd,kd->qk"}> : () -> ()
    %cst_82 = arith.constant dense<0.000000e+00> : vector<8x16xf32>
    %219 = tpu.matmul %217, %218, %cst_82 {dimension_numbers = #tpu.dot_dimension_numbers<[1], [1], [0], [0], [0, 0, 1, 0], [], []>} : vector<8x8xbf16>, vector<16x8xbf16>, vector<8x16xf32> -> vector<8x16xf32>
    "tpu.trace_stop"() : () -> ()
    %cst_83 = arith.constant dense<0xFF800000> : vector<8xf32>
    %220 = vector.multi_reduction <maximumf>, %219, %cst_83 [1] : vector<8x16xf32> to vector<8xf32>
    %221 = vector.shape_cast %220 : vector<8xf32> to vector<8x1xf32>
    %222 = vector.broadcast %221 : vector<8x1xf32> to vector<8x16xf32>
    %223 = arith.subf %219, %222 : vector<8x16xf32>
    %224 = math.exp %223 : vector<8x16xf32>
    %cst_84 = arith.constant dense<0.000000e+00> : vector<8xf32>
    %225 = vector.multi_reduction <add>, %224, %cst_84 [1] : vector<8x16xf32> to vector<8xf32>
    %226 = vector.shape_cast %225 : vector<8xf32> to vector<8x1xf32>
    %227 = tpu.reciprocal %226 {approx = true} : vector<8x1xf32> -> vector<8x1xf32>
    %228 = vector.broadcast %227 : vector<8x1xf32> to vector<8x16xf32>
    %229 = arith.mulf %224, %228 : vector<8x16xf32>
    %230 = arith.truncf %229 : vector<8x16xf32> to vector<8x16xbf16>
    %231 = vector.extract_strided_slice %184 {offsets = [0, 16], sizes = [16, 8], strides = [1, 1]} : vector<16x32xbf16> to vector<16x8xbf16>
    %cst_85 = arith.constant dense<0.000000e+00> : vector<8x8xf32>
    %232 = tpu.matmul %230, %231, %cst_85 {dimension_numbers = #tpu.dot_dimension_numbers<[1], [0], [0], [1], [0, 0, 1, 1], [], []>} : vector<8x16xbf16>, vector<16x8xbf16>, vector<8x8xf32> -> vector<8x8xf32>
    %233 = vector.extract_strided_slice %175 {offsets = [0, 24], sizes = [8, 8], strides = [1, 1]} : vector<8x32xbf16> to vector<8x8xbf16>
    %234 = vector.extract_strided_slice %183 {offsets = [0, 24], sizes = [16, 8], strides = [1, 1]} : vector<16x32xbf16> to vector<16x8xbf16>
    "tpu.trace_start"() <{level = 10 : i32, message = "qd,kd->qk"}> : () -> ()
    %cst_86 = arith.constant dense<0.000000e+00> : vector<8x16xf32>
    %235 = tpu.matmul %233, %234, %cst_86 {dimension_numbers = #tpu.dot_dimension_numbers<[1], [1], [0], [0], [0, 0, 1, 0], [], []>} : vector<8x8xbf16>, vector<16x8xbf16>, vector<8x16xf32> -> vector<8x16xf32>
    "tpu.trace_stop"() : () -> ()
    %cst_87 = arith.constant dense<0xFF800000> : vector<8xf32>
    %236 = vector.multi_reduction <maximumf>, %235, %cst_87 [1] : vector<8x16xf32> to vector<8xf32>
    %237 = vector.shape_cast %236 : vector<8xf32> to vector<8x1xf32>
    %238 = vector.broadcast %237 : vector<8x1xf32> to vector<8x16xf32>
    %239 = arith.subf %235, %238 : vector<8x16xf32>
    %240 = math.exp %239 : vector<8x16xf32>
    %cst_88 = arith.constant dense<0.000000e+00> : vector<8xf32>
    %241 = vector.multi_reduction <add>, %240, %cst_88 [1] : vector<8x16xf32> to vector<8xf32>
    %242 = vector.shape_cast %241 : vector<8xf32> to vector<8x1xf32>
    %243 = tpu.reciprocal %242 {approx = true} : vector<8x1xf32> -> vector<8x1xf32>
    %244 = vector.broadcast %243 : vector<8x1xf32> to vector<8x16xf32>
    %245 = arith.mulf %240, %244 : vector<8x16xf32>
    %246 = arith.truncf %245 : vector<8x16xf32> to vector<8x16xbf16>
    %247 = vector.extract_strided_slice %184 {offsets = [0, 24], sizes = [16, 8], strides = [1, 1]} : vector<16x32xbf16> to vector<16x8xbf16>
    %cst_89 = arith.constant dense<0.000000e+00> : vector<8x8xf32>
    %248 = tpu.matmul %246, %247, %cst_89 {dimension_numbers = #tpu.dot_dimension_numbers<[1], [0], [0], [1], [0, 0, 1, 1], [], []>} : vector<8x16xbf16>, vector<16x8xbf16>, vector<8x8xf32> -> vector<8x8xf32>
    %249 = tpu.concatenate %200, %216, %232, %248 in 1 : vector<8x8xf32>, vector<8x8xf32>, vector<8x8xf32>, vector<8x8xf32> -> vector<8x32xf32>
    %250 = arith.truncf %249 : vector<8x32xf32> to vector<8x32xbf16>
    %c0_90 = arith.constant 0 : index
    %c0_91 = arith.constant 0 : index
    %251 = vector.load %arg20[%c0_90, %c0_91] : memref<32x32xbf16, #tpu.memory_space<vmem>>, vector<32x32xbf16>
    %cst_92 = arith.constant dense<0.000000e+00> : vector<8x32xf32>
    %252 = tpu.matmul %250, %251, %cst_92 {dimension_numbers = #tpu.dot_dimension_numbers<[1], [0], [0], [1], [0, 0, 1, 1], [], []>} : vector<8x32xbf16>, vector<32x32xbf16>, vector<8x32xf32> -> vector<8x32xf32>
    %c0_93 = arith.constant 0 : index
    %c0_94 = arith.constant 0 : index
    %253 = vector.load %arg21[%c0_93, %c0_94] : memref<1x32xf32, #tpu.memory_space<vmem>>, vector<1x32xf32>
    %254 = vector.broadcast %253 : vector<1x32xf32> to vector<8x32xf32>
    %255 = arith.addf %252, %254 : vector<8x32xf32>
    %256 = arith.addf %144, %255 : vector<8x32xf32>
    %cst_95 = arith.constant dense<0.000000e+00> : vector<8xf32>
    %257 = vector.multi_reduction <add>, %256, %cst_95 [1] : vector<8x32xf32> to vector<8xf32>
    %258 = vector.shape_cast %257 : vector<8xf32> to vector<8x1xf32>
    %cst_96 = arith.constant 3.200000e+01 : f32
    %259 = vector.broadcast %cst_96 : f32 to vector<8x1xf32>
    %260 = arith.divf %258, %259 : vector<8x1xf32>
    %261 = arith.mulf %256, %256 : vector<8x32xf32>
    %cst_97 = arith.constant dense<0.000000e+00> : vector<8xf32>
    %262 = vector.multi_reduction <add>, %261, %cst_97 [1] : vector<8x32xf32> to vector<8xf32>
    %263 = vector.shape_cast %262 : vector<8xf32> to vector<8x1xf32>
    %cst_98 = arith.constant 3.200000e+01 : f32
    %264 = vector.broadcast %cst_98 : f32 to vector<8x1xf32>
    %265 = arith.divf %263, %264 : vector<8x1xf32>
    %266 = arith.mulf %260, %260 : vector<8x1xf32>
    %267 = arith.subf %265, %266 : vector<8x1xf32>
    %268 = vector.broadcast %260 : vector<8x1xf32> to vector<8x32xf32>
    %269 = arith.subf %256, %268 : vector<8x32xf32>
    %cst_99 = arith.constant 9.99999974E-6 : f32
    %270 = vector.broadcast %cst_99 : f32 to vector<8x1xf32>
    %271 = arith.addf %267, %270 : vector<8x1xf32>
    %272 = math.rsqrt %271 : vector<8x1xf32>
    %273 = vector.broadcast %272 : vector<8x1xf32> to vector<8x32xf32>
    %274 = arith.mulf %269, %273 : vector<8x32xf32>
    %c0_100 = arith.constant 0 : index
    %c0_101 = arith.constant 0 : index
    %275 = vector.load %arg8[%c0_100, %c0_101] : memref<1x32xf32, #tpu.memory_space<vmem>>, vector<1x32xf32>
    %276 = vector.broadcast %275 : vector<1x32xf32> to vector<8x32xf32>
    %277 = arith.mulf %274, %276 : vector<8x32xf32>
    %c0_102 = arith.constant 0 : index
    %c0_103 = arith.constant 0 : index
    %278 = vector.load %arg9[%c0_102, %c0_103] : memref<1x32xf32, #tpu.memory_space<vmem>>, vector<1x32xf32>
    %279 = vector.broadcast %278 : vector<1x32xf32> to vector<8x32xf32>
    %280 = arith.addf %277, %279 : vector<8x32xf32>
    %281 = arith.truncf %280 : vector<8x32xf32> to vector<8x32xbf16>
    %c0_104 = arith.constant 0 : index
    %c0_105 = arith.constant 0 : index
    %282 = vector.load %arg22[%c0_104, %c0_105] : memref<32x64xbf16, #tpu.memory_space<vmem>>, vector<32x64xbf16>
    %cst_106 = arith.constant dense<0.000000e+00> : vector<8x64xf32>
    %283 = tpu.matmul %281, %282, %cst_106 {dimension_numbers = #tpu.dot_dimension_numbers<[1], [0], [0], [1], [0, 0, 1, 1], [], []>} : vector<8x32xbf16>, vector<32x64xbf16>, vector<8x64xf32> -> vector<8x64xf32>
    %c0_107 = arith.constant 0 : index
    %c0_108 = arith.constant 0 : index
    %284 = vector.load %arg23[%c0_107, %c0_108] : memref<1x64xf32, #tpu.memory_space<vmem>>, vector<1x64xf32>
    %285 = vector.broadcast %284 : vector<1x64xf32> to vector<8x64xf32>
    %286 = arith.addf %283, %285 : vector<8x64xf32>
    %cst_109 = arith.constant 0.000000e+00 : f32
    %287 = vector.broadcast %cst_109 : f32 to vector<8x64xf32>
    %288 = arith.maximumf %286, %287 : vector<8x64xf32>
    %289 = arith.truncf %288 : vector<8x64xf32> to vector<8x64xbf16>
    %c0_110 = arith.constant 0 : index
    %c0_111 = arith.constant 0 : index
    %290 = vector.load %arg24[%c0_110, %c0_111] : memref<64x32xbf16, #tpu.memory_space<vmem>>, vector<64x32xbf16>
    %cst_112 = arith.constant dense<0.000000e+00> : vector<8x32xf32>
    %291 = tpu.matmul %289, %290, %cst_112 {dimension_numbers = #tpu.dot_dimension_numbers<[1], [0], [0], [1], [0, 0, 1, 1], [], []>} : vector<8x64xbf16>, vector<64x32xbf16>, vector<8x32xf32> -> vector<8x32xf32>
    %c0_113 = arith.constant 0 : index
    %c0_114 = arith.constant 0 : index
    %292 = vector.load %arg25[%c0_113, %c0_114] : memref<1x32xf32, #tpu.memory_space<vmem>>, vector<1x32xf32>
    %293 = vector.broadcast %292 : vector<1x32xf32> to vector<8x32xf32>
    %294 = arith.addf %291, %293 : vector<8x32xf32>
    %295 = arith.addf %256, %294 : vector<8x32xf32>
    %c0_115 = arith.constant 0 : index
    %c0_116 = arith.constant 0 : index
    %c0_117 = arith.constant 0 : index
    %296 = vector.load %arg26[%c0_115, %c0_116, %c0_117] : memref<1x8x32xf32, #tpu.memory_space<vmem>>, vector<1x8x32xf32>
    %297 = vector.shape_cast %296 : vector<1x8x32xf32> to vector<8x32xf32>
    %298 = vector.shape_cast %295 : vector<8x32xf32> to vector<1x8x32xf32>
    tpu.vector_store %arg26[%c0_115, %c0_116, %c0_117], %298 {strides = array<i32>} : memref<1x8x32xf32, #tpu.memory_space<vmem>>, vector<1x8x32xf32>,
    return
  }
  func.func @transform_0(%arg0: i32, %arg1: i32) -> (i32, i32, i32) {
    %c0_i32 = arith.constant 0 : i32
    %c0_i32_0 = arith.constant 0 : i32
    %c0_i32_1 = arith.constant 0 : i32
    return %arg0, %c0_i32, %c0_i32_0 : i32, i32, i32
  }
  func.func @transform_1(%arg0: i32, %arg1: i32) -> (i32, i32, i32) {
    %c0_i32 = arith.constant 0 : i32
    %c0_i32_0 = arith.constant 0 : i32
    %c0_i32_1 = arith.constant 0 : i32
    return %arg0, %c0_i32, %c0_i32_0 : i32, i32, i32
  }
  func.func @transform_2(%arg0: i32, %arg1: i32) -> (i32, i32) {
    %c0_i32 = arith.constant 0 : i32
    %c0_i32_0 = arith.constant 0 : i32
    %c0_i32_1 = arith.constant 0 : i32
    return %c0_i32, %c0_i32_0 : i32, i32
  }
  func.func @transform_3(%arg0: i32, %arg1: i32) -> (i32, i32) {
    %c0_i32 = arith.constant 0 : i32
    %c0_i32_0 = arith.constant 0 : i32
    %c0_i32_1 = arith.constant 0 : i32
    return %c0_i32, %c0_i32_0 : i32, i32
  }
  func.func @transform_4(%arg0: i32, %arg1: i32) -> (i32, i32) {
    %c0_i32 = arith.constant 0 : i32
    %c0_i32_0 = arith.constant 0 : i32
    %c0_i32_1 = arith.constant 0 : i32
    return %c0_i32, %c0_i32_0 : i32, i32
  }
  func.func @transform_5(%arg0: i32, %arg1: i32) -> (i32, i32) {
    %c0_i32 = arith.constant 0 : i32
    %c0_i32_0 = arith.constant 0 : i32
    %c0_i32_1 = arith.constant 0 : i32
    return %c0_i32, %c0_i32_0 : i32, i32
  }
  func.func @transform_6(%arg0: i32, %arg1: i32) -> (i32, i32) {
    %c0_i32 = arith.constant 0 : i32
    %c0_i32_0 = arith.constant 0 : i32
    %c0_i32_1 = arith.constant 0 : i32
    return %c0_i32, %c0_i32_0 : i32, i32
  }
  func.func @transform_7(%arg0: i32, %arg1: i32) -> (i32, i32) {
    %c0_i32 = arith.constant 0 : i32
    %c0_i32_0 = arith.constant 0 : i32
    %c0_i32_1 = arith.constant 0 : i32
    return %c0_i32, %c0_i32_0 : i32, i32
  }
  func.func @transform_8(%arg0: i32, %arg1: i32) -> (i32, i32) {
    %c0_i32 = arith.constant 0 : i32
    %c0_i32_0 = arith.constant 0 : i32
    %c0_i32_1 = arith.constant 0 : i32
    return %c0_i32, %c0_i32_0 : i32, i32
  }
  func.func @transform_9(%arg0: i32, %arg1: i32) -> (i32, i32) {
    %c0_i32 = arith.constant 0 : i32
    %c0_i32_0 = arith.constant 0 : i32
    %c0_i32_1 = arith.constant 0 : i32
    return %c0_i32, %c0_i32_0 : i32, i32
  }
  func.func @transform_10(%arg0: i32, %arg1: i32) -> (i32, i32) {
    %c0_i32 = arith.constant 0 : i32
    %c0_i32_0 = arith.constant 0 : i32
    %c0_i32_1 = arith.constant 0 : i32
    return %c0_i32, %c0_i32_0 : i32, i32
  }
  func.func @transform_11(%arg0: i32, %arg1: i32) -> (i32, i32) {
    %c0_i32 = arith.constant 0 : i32
    %c0_i32_0 = arith.constant 0 : i32
    %c0_i32_1 = arith.constant 0 : i32
    return %c0_i32, %c0_i32_0 : i32, i32
  }
  func.func @transform_12(%arg0: i32, %arg1: i32) -> (i32, i32) {
    %c0_i32 = arith.constant 0 : i32
    %c0_i32_0 = arith.constant 0 : i32
    %c0_i32_1 = arith.constant 0 : i32
    return %c0_i32, %c0_i32_0 : i32, i32
  }
  func.func @transform_13(%arg0: i32, %arg1: i32) -> (i32, i32) {
    %c0_i32 = arith.constant 0 : i32
    %c0_i32_0 = arith.constant 0 : i32
    %c0_i32_1 = arith.constant 0 : i32
    return %c0_i32, %c0_i32_0 : i32, i32
  }
  func.func @transform_14(%arg0: i32, %arg1: i32) -> (i32, i32) {
    %c0_i32 = arith.constant 0 : i32
    %c0_i32_0 = arith.constant 0 : i32
    %c0_i32_1 = arith.constant 0 : i32
    return %c0_i32, %c0_i32_0 : i32, i32
  }
  func.func @transform_15(%arg0: i32, %arg1: i32) -> (i32, i32) {
    %c0_i32 = arith.constant 0 : i32
    %c0_i32_0 = arith.constant 0 : i32
    %c0_i32_1 = arith.constant 0 : i32
    return %c0_i32, %c0_i32_0 : i32, i32
  }
  func.func @transform_16(%arg0: i32, %arg1: i32) -> (i32, i32) {
    %c0_i32 = arith.constant 0 : i32
    %c0_i32_0 = arith.constant 0 : i32
    %c0_i32_1 = arith.constant 0 : i32
    return %c0_i32, %c0_i32_0 : i32, i32
  }
  func.func @transform_17(%arg0: i32, %arg1: i32) -> (i32, i32) {
    %c0_i32 = arith.constant 0 : i32
    %c0_i32_0 = arith.constant 0 : i32
    %c0_i32_1 = arith.constant 0 : i32
    return %c0_i32, %c0_i32_0 : i32, i32
  }
  func.func @transform_18(%arg0: i32, %arg1: i32) -> (i32, i32) {
    %c0_i32 = arith.constant 0 : i32
    %c0_i32_0 = arith.constant 0 : i32
    %c0_i32_1 = arith.constant 0 : i32
    return %c0_i32, %c0_i32_0 : i32, i32
  }
  func.func @transform_19(%arg0: i32, %arg1: i32) -> (i32, i32) {
    %c0_i32 = arith.constant 0 : i32
    %c0_i32_0 = arith.constant 0 : i32
    %c0_i32_1 = arith.constant 0 : i32
    return %c0_i32, %c0_i32_0 : i32, i32
  }
  func.func @transform_20(%arg0: i32, %arg1: i32) -> (i32, i32) {
    %c0_i32 = arith.constant 0 : i32
    %c0_i32_0 = arith.constant 0 : i32
    %c0_i32_1 = arith.constant 0 : i32
    return %c0_i32, %c0_i32_0 : i32, i32
  }
  func.func @transform_21(%arg0: i32, %arg1: i32) -> (i32, i32) {
    %c0_i32 = arith.constant 0 : i32
    %c0_i32_0 = arith.constant 0 : i32
    %c0_i32_1 = arith.constant 0 : i32
    return %c0_i32, %c0_i32_0 : i32, i32
  }
  func.func @transform_22(%arg0: i32, %arg1: i32) -> (i32, i32) {
    %c0_i32 = arith.constant 0 : i32
    %c0_i32_0 = arith.constant 0 : i32
    %c0_i32_1 = arith.constant 0 : i32
    return %c0_i32, %c0_i32_0 : i32, i32
  }
  func.func @transform_23(%arg0: i32, %arg1: i32) -> (i32, i32) {
    %c0_i32 = arith.constant 0 : i32
    %c0_i32_0 = arith.constant 0 : i32
    %c0_i32_1 = arith.constant 0 : i32
    return %c0_i32, %c0_i32_0 : i32, i32
  }
  func.func @transform_24(%arg0: i32, %arg1: i32) -> (i32, i32, i32) {
    %c0_i32 = arith.constant 0 : i32
    %c0_i32_0 = arith.constant 0 : i32
    return %arg0, %arg1, %c0_i32 : i32, i32, i32
  }
}

</mosaic_0001>

<llo_original>
// kernel: encoder_layer_with_pitch.1
$region0: #{encoder_layer_with_pitch.1}
  #allocation0 [shape = 'u32[]', space=smem, size = 0x4, offset = 0x4, fixed_abs, tag = 'smem constant byte address 0x4 - core index']
  #allocation1 [shape = 'u32[144,128]{1,0:T(1,128)}', space=vmem, size = 0x12000, scoped, tag = 'internal scratch']
  %s0 = inlined_call_operand.vmem [shape: f32[2,16,32], index: 0, kind: input, shape index: {}]
  %s1 = inlined_call_operand.vmem [shape: f32[2,16,32], index: 1, kind: input, shape index: {}]
  %s2 = inlined_call_operand.hbm [shape: f32[1,32], index: 2, kind: input, shape index: {}]
  %s3 = inlined_call_operand.hbm [shape: f32[1,32], index: 3, kind: input, shape index: {}]
  %s4 = inlined_call_operand.hbm [shape: f32[1,32], index: 4, kind: input, shape index: {}]
  %s5 = inlined_call_operand.hbm [shape: f32[1,32], index: 5, kind: input, shape index: {}]
  %s6 = inlined_call_operand.hbm [shape: f32[1,32], index: 6, kind: input, shape index: {}]
  %s7 = inlined_call_operand.hbm [shape: f32[1,32], index: 7, kind: input, shape index: {}]
  %s8 = inlined_call_operand.vmem [shape: bf16[32,32], index: 8, kind: input, shape index: {}]
  %s9 = inlined_call_operand.vmem [shape: f32[1,32], index: 9, kind: input, shape index: {}]
  %s10 = inlined_call_operand.vmem [shape: bf16[32,64], index: 10, kind: input, shape index: {}]
  %s11 = inlined_call_operand.hbm [shape: f32[1,64], index: 11, kind: input, shape index: {}]
  %s12 = inlined_call_operand.vmem [shape: bf16[32,32], index: 12, kind: input, shape index: {}]
  %s13 = inlined_call_operand.hbm [shape: f32[1,32], index: 13, kind: input, shape index: {}]
  %s14 = inlined_call_operand.hbm [shape: bf16[32,32], index: 14, kind: input, shape index: {}]
  %s15 = inlined_call_operand.hbm [shape: f32[1,32], index: 15, kind: input, shape index: {}]
  %s16 = inlined_call_operand.hbm [shape: bf16[32,64], index: 16, kind: input, shape index: {}]
  %s17 = inlined_call_operand.hbm [shape: f32[1,64], index: 17, kind: input, shape index: {}]
  %s18 = inlined_call_operand.hbm [shape: bf16[32,32], index: 18, kind: input, shape index: {}]
  %s19 = inlined_call_operand.hbm [shape: f32[1,32], index: 19, kind: input, shape index: {}]
  %s20 = inlined_call_operand.hbm [shape: bf16[32,64], index: 20, kind: input, shape index: {}]
  %s21 = inlined_call_operand.hbm [shape: f32[1,64], index: 21, kind: input, shape index: {}]
  %s22 = inlined_call_operand.vmem [shape: bf16[64,32], index: 22, kind: input, shape index: {}]
  %s23 = inlined_call_operand.hbm [shape: f32[1,32], index: 23, kind: input, shape index: {}]
  %s24 = inlined_call_operand.hbm [shape: f32[2,16,32], index: 24, kind: output, shape index: {}]
  %s25 = sld [smem:[#allocation0]]
  $region197: #{encoder_layer_with_pitch.1} parent=0
    _
  %s27 = ssub.s32 1, %s25
  %s28 = scalar_select 0, %s27, %s25
  $region1: #{encoder_layer_with_pitch.1} parent=0
    #allocation2 [shape = 'u8[512]{0}', space=vmem, size = 0x400, scoped, tag = 'input window, operand 2, single buffered']
    #allocation3 [shape = 's32[2]{0}', space=sflag, size = 0x8, scoped, tag = 'scoped memory for encoder_layer_with_pitch.1']
    #allocation4 [shape = 's32[2]{0}', space=sflag, size = 0x8, scoped, tag = 'scoped memory for encoder_layer_with_pitch.1']
    #allocation5 [shape = 'u8[512]{0}', space=vmem, size = 0x400, scoped, tag = 'input window, operand 3, single buffered']
    #allocation6 [shape = 's32[1]{0}', space=sflag, size = 0x4, scoped, tag = 'scoped memory for encoder_layer_with_pitch.1']
    #allocation7 [shape = 'u8[512]{0}', space=vmem, size = 0x400, scoped, tag = 'input window, operand 4, single buffered']
    #allocation8 [shape = 'u8[512]{0}', space=vmem, size = 0x400, scoped, tag = 'input window, operand 5, single buffered']
    #allocation9 [shape = 's32[1]{0}', space=sflag, size = 0x4, scoped, tag = 'scoped memory for encoder_layer_with_pitch.1']
    #allocation10 [shape = 'u8[512]{0}', space=vmem, size = 0x400, scoped, tag = 'input window, operand 6, single buffered']
    #allocation11 [shape = 'u8[512]{0}', space=vmem, size = 0x400, scoped, tag = 'input window, operand 7, single buffered']
    #allocation12 [shape = 's32[1]{0}', space=sflag, size = 0x4, scoped, tag = 'scoped memory for encoder_layer_with_pitch.1']
    #allocation13 [shape = 'u8[512]{0}', space=vmem, size = 0x400, scoped, tag = 'input window, operand 11, single buffered']
    #allocation14 [shape = 'u8[512]{0}', space=vmem, size = 0x400, scoped, tag = 'input window, operand 13, single buffered']
    #allocation15 [shape = 's32[1]{0}', space=sflag, size = 0x4, scoped, tag = 'scoped memory for encoder_layer_with_pitch.1']
    #allocation16 [shape = 'u8[8192]{0}', space=vmem, size = 0x2000, scoped, tag = 'input window, operand 14, single buffered']
    #allocation17 [shape = 'u8[512]{0}', space=vmem, size = 0x400, scoped, tag = 'input window, operand 15, single buffered']
    #allocation18 [shape = 's32[1]{0}', space=sflag, size = 0x4, scoped, tag = 'scoped memory for encoder_layer_with_pitch.1']
    #allocation19 [shape = 'u8[8192]{0}', space=vmem, size = 0x2000, scoped, tag = 'input window, operand 16, single buffered']
    #allocation20 [shape = 'u8[512]{0}', space=vmem, size = 0x400, scoped, tag = 'input window, operand 17, single buffered']
    #allocation21 [shape = 's32[1]{0}', space=sflag, size = 0x4, scoped, tag = 'scoped memory for encoder_layer_with_pitch.1']
    #allocation22 [shape = 'u8[8192]{0}', space=vmem, size = 0x2000, scoped, tag = 'input window, operand 18, single buffered']
    #allocation23 [shape = 'u8[512]{0}', space=vmem, size = 0x400, scoped, tag = 'input window, operand 19, single buffered']
    #allocation24 [shape = 's32[1]{0}', space=sflag, size = 0x4, scoped, tag = 'scoped memory for encoder_layer_with_pitch.1']
    #allocation25 [shape = 'u8[8192]{0}', space=vmem, size = 0x2000, scoped, tag = 'input window, operand 20, single buffered']
    #allocation26 [shape = 'u8[512]{0}', space=vmem, size = 0x400, scoped, tag = 'input window, operand 21, single buffered']
    #allocation27 [shape = 's32[1]{0}', space=sflag, size = 0x4, scoped, tag = 'scoped memory for encoder_layer_with_pitch.1']
    #allocation28 [shape = 'u8[512]{0}', space=vmem, size = 0x400, scoped, tag = 'input window, operand 23, single buffered']
    #allocation29 [shape = 'u8[8192]{0}', space=vmem, size = 0x2000, scoped, tag = 'output window, operand 0']
    %29 = vsyncpa [#allocation3], 0
    %30 = vsyncpa [#allocation6], 0
    %31 = vsyncpa [#allocation9], 0
    %32 = vsyncpa [#allocation12], 0
    %33 = vsyncpa [#allocation15], 0
    %34 = vsyncpa [#allocation18], 0
    %35 = vsyncpa [#allocation21], 0
    %36 = vsyncpa [#allocation24], 0
    %37 = vsyncpa [#allocation27], 0
    %38 = vsyncpa [#allocation4], 0
    %s39 = scalar_lea.sflag [#allocation4], 1
    %40 = vsyncpa %s39, 0
    loop: start=0, step=1, limit=6
    $region2: #{encoder_layer_with_pitch.1} parent=1 // loop_pre_header
      _
    $region3: #{encoder_layer_with_pitch.1} parent=1 // loop_header
      %s42 = sphi 0, %s46
      %p43 = scmp.ge.s32.totalorder %s42, 6
      %s49 = sphi 0, %s61
      %s50 = sphi 0, %s57
      %s51 = sphi 0, %s49
      %s52 = sphi 0, %s50
      %s53 = sphi 0, %s51
      %s54 = sphi 0, %s52
      %s64 = sphi 0, %s66
      %s67 = sphi 0, %s64
      %s68 = sphi 0, %s67
      %s84 = sphi 0, %s68
      %s90 = sphi 0, %s92
      %s93 = sphi 0, %s90
      %s94 = sphi 0, %s93
      %s110 = sphi 0, %s94
      %s114 = sphi 0, %s114
      %s116 = sphi 0, %s114
      %s117 = sphi 0, %s116
      %s131 = sphi 0, %s117
      %s135 = sphi 0, %s135
      %s137 = sphi 0, %s135
      %s138 = sphi 0, %s137
      %s152 = sphi 0, %s138
      %s156 = sphi 0, %s156
      %s158 = sphi 0, %s156
      %s159 = sphi 0, %s158
      %s173 = sphi 0, %s159
      %s177 = sphi 0, %s177
      %s179 = sphi 0, %s177
      %s180 = sphi 0, %s179
      %s194 = sphi 0, %s180
      %s198 = sphi 0, %s198
      %s200 = sphi 0, %s198
      %s201 = sphi 0, %s200
      %s215 = sphi 0, %s201
      %s219 = sphi 0, %s219
      %s221 = sphi 0, %s219
      %s222 = sphi 0, %s221
      %s236 = sphi 0, %s222
      %s240 = sphi 0, %s240
      %s242 = sphi 0, %s240
      %s243 = sphi 0, %s242
      %s257 = sphi 0, %s243
      %s261 = sphi 0, %s261
      %s263 = sphi 0, %s261
      %s264 = sphi 0, %s263
      %s278 = sphi 0, %s264
      %s282 = sphi 0, %s282
      %s284 = sphi 0, %s282
      %s285 = sphi 0, %s284
      %s299 = sphi 0, %s285
      %s303 = sphi 0, %s303
      %s305 = sphi 0, %s303
      %s306 = sphi 0, %s305
      %s320 = sphi 0, %s306
      %s324 = sphi 0, %s324
      %s326 = sphi 0, %s324
      %s327 = sphi 0, %s326
      %s341 = sphi 0, %s327
      %s345 = sphi 0, %s345
      %s347 = sphi 0, %s345
      %s348 = sphi 0, %s347
      %s362 = sphi 0, %s348
      %s366 = sphi 0, %s366
      %s368 = sphi 0, %s366
      %s369 = sphi 0, %s368
      %s383 = sphi 0, %s369
      %s387 = sphi 0, %s387
      %s389 = sphi 0, %s387
      %s390 = sphi 0, %s389
      %s404 = sphi 0, %s390
      %s408 = sphi 0, %s408
      %s410 = sphi 0, %s408
      %s411 = sphi 0, %s410
      %s425 = sphi 0, %s411
      %s429 = sphi 0, %s429
      %s431 = sphi 0, %s429
      %s432 = sphi 0, %s431
      %s446 = sphi 0, %s432
      %s450 = sphi 0, %s450
      %s452 = sphi 0, %s450
      %s453 = sphi 0, %s452
      %s467 = sphi 0, %s453
      %s471 = sphi 0, %s471
      %s473 = sphi 0, %s471
      %s474 = sphi 0, %s473
      %s488 = sphi 0, %s474
      %s492 = sphi 0, %s492
      %s494 = sphi 0, %s492
      %s495 = sphi 0, %s494
      %s509 = sphi 0, %s495
      %s513 = sphi 0, %s513
      %s515 = sphi 0, %s513
      %s516 = sphi 0, %s515
      %s530 = sphi 0, %s516
      %s534 = sphi 0, %s534
      %s536 = sphi 0, %s534
      %s537 = sphi 0, %s536
      %s551 = sphi 0, %s537
      %s555 = sphi 0, %s555
      %s557 = sphi 0, %s555
      %s558 = sphi 0, %s557
      %s572 = sphi 0, %s558
      %s580 = sphi 0, %s582
      %s583 = sphi 0, %s580
      %s584 = sphi 0, %s583
      %s600 = sphi 0, %s584
    $region4: #{encoder_layer_with_pitch.1} parent=1 // loop_header_branch
      %45 = sbr.rel (%p43) target = $region8
    $region5: #{encoder_layer_with_pitch.1} parent=1 // loop_body
      %s47 = ssub.s32 %s42, 1
      %s48 = ssub.s32 %s42, 2
      %s55 = sadd.s32 1, %s50
      %p56 = scmp.ge.s32.totalorder %s55, 2
      %s57 = scalar_select %p56, 0, %s55
      %s58 = sadd.s32 1, %s49
      %s59 = scalar_select %p56, %s58, %s49
      %p60 = scmp.ge.s32.totalorder %s59, 2
      %s61 = scalar_select %p60, 0, %s59
      %s62 = ssub.s32 %s49, %s61
      %p63 = scmp.eq.s32.totalorder %s62, 0
      %s65 = sadd.s32 %s64, 1
      %s66 = scalar_select %p63, %s64, %s65
      %p69 = pneg %p63
      %p70 = scmp.eq.s32.totalorder %s42, 3
      %p71 = por %p69, %p70
      %p72 = scmp.ne.s32.totalorder %s64, %s67
      %p73 = scmp.eq.s32.totalorder %s42, 0
      %p74 = por %p72, %p73
      %p75 = scmp.ne.s32.totalorder %s64, %s67
      %p76 = scmp.eq.s32.totalorder %s47, 3
      %p77 = por %p75, %p76
      %p78 = scmp.ne.s32.totalorder %s67, %s68
      %p79 = scmp.eq.s32.totalorder %s47, 0
      %p80 = por %p78, %p79
      %p81 = scmp.ne.s32.totalorder %s67, %s68
      %p82 = scmp.eq.s32.totalorder %s48, 3
      %p83 = por %p81, %p82
      %p85 = scmp.ne.s32.totalorder %s68, %s84
      %p86 = scmp.eq.s32.totalorder %s48, 0
      %p87 = por %p85, %p86
      %s88 = ssub.s32 %s49, %s61
      %p89 = scmp.eq.s32.totalorder %s88, 0
      %s91 = sadd.s32 %s90, 1
      %s92 = scalar_select %p89, %s90, %s91
      %p95 = pneg %p89
      %p96 = scmp.eq.s32.totalorder %s42, 3
      %p97 = por %p95, %p96
      %p98 = scmp.ne.s32.totalorder %s90, %s93
      %p99 = scmp.eq.s32.totalorder %s42, 0
      %p100 = por %p98, %p99
      %p101 = scmp.ne.s32.totalorder %s90, %s93
      %p102 = scmp.eq.s32.totalorder %s47, 3
      %p103 = por %p101, %p102
      %p104 = scmp.ne.s32.totalorder %s93, %s94
      %p105 = scmp.eq.s32.totalorder %s47, 0
      %p106 = por %p104, %p105
      %p107 = scmp.ne.s32.totalorder %s93, %s94
      %p108 = scmp.eq.s32.totalorder %s48, 3
      %p109 = por %p107, %p108
      %p111 = scmp.ne.s32.totalorder %s94, %s110
      %p112 = scmp.eq.s32.totalorder %s48, 0
      %p113 = por %p111, %p112
      %s115 = sadd.s32 %s114, 1
      %p118 = scmp.eq.s32.totalorder %s42, 3
      %p119 = scmp.ne.s32.totalorder %s114, %s116
      %p120 = scmp.eq.s32.totalorder %s42, 0
      %p121 = por %p119, %p120
      %p122 = scmp.ne.s32.totalorder %s114, %s116
      %p123 = scmp.eq.s32.totalorder %s47, 3
      %p124 = por %p122, %p123
      %p125 = scmp.ne.s32.totalorder %s116, %s117
      %p126 = scmp.eq.s32.totalorder %s47, 0
      %p127 = por %p125, %p126
      %p128 = scmp.ne.s32.totalorder %s116, %s117
      %p129 = scmp.eq.s32.totalorder %s48, 3
      %p130 = por %p128, %p129
      %p132 = scmp.ne.s32.totalorder %s117, %s131
      %p133 = scmp.eq.s32.totalorder %s48, 0
      %p134 = por %p132, %p133
      %s136 = sadd.s32 %s135, 1
      %p139 = scmp.eq.s32.totalorder %s42, 3
      %p140 = scmp.ne.s32.totalorder %s135, %s137
      %p141 = scmp.eq.s32.totalorder %s42, 0
      %p142 = por %p140, %p141
      %p143 = scmp.ne.s32.totalorder %s135, %s137
      %p144 = scmp.eq.s32.totalorder %s47, 3
      %p145 = por %p143, %p144
      %p146 = scmp.ne.s32.totalorder %s137, %s138
      %p147 = scmp.eq.s32.totalorder %s47, 0
      %p148 = por %p146, %p147
      %p149 = scmp.ne.s32.totalorder %s137, %s138
      %p150 = scmp.eq.s32.totalorder %s48, 3
      %p151 = por %p149, %p150
      %p153 = scmp.ne.s32.totalorder %s138, %s152
      %p154 = scmp.eq.s32.totalorder %s48, 0
      %p155 = por %p153, %p154
      %s157 = sadd.s32 %s156, 1
      %p160 = scmp.eq.s32.totalorder %s42, 3
      %p161 = scmp.ne.s32.totalorder %s156, %s158
      %p162 = scmp.eq.s32.totalorder %s42, 0
      %p163 = por %p161, %p162
      %p164 = scmp.ne.s32.totalorder %s156, %s158
      %p165 = scmp.eq.s32.totalorder %s47, 3
      %p166 = por %p164, %p165
      %p167 = scmp.ne.s32.totalorder %s158, %s159
      %p168 = scmp.eq.s32.totalorder %s47, 0
      %p169 = por %p167, %p168
      %p170 = scmp.ne.s32.totalorder %s158, %s159
      %p171 = scmp.eq.s32.totalorder %s48, 3
      %p172 = por %p170, %p171
      %p174 = scmp.ne.s32.totalorder %s159, %s173
      %p175 = scmp.eq.s32.totalorder %s48, 0
      %p176 = por %p174, %p175
      %s178 = sadd.s32 %s177, 1
      %p181 = scmp.eq.s32.totalorder %s42, 3
      %p182 = scmp.ne.s32.totalorder %s177, %s179
      %p183 = scmp.eq.s32.totalorder %s42, 0
      %p184 = por %p182, %p183
      %p185 = scmp.ne.s32.totalorder %s177, %s179
      %p186 = scmp.eq.s32.totalorder %s47, 3
      %p187 = por %p185, %p186
      %p188 = scmp.ne.s32.totalorder %s179, %s180
      %p189 = scmp.eq.s32.totalorder %s47, 0
      %p190 = por %p188, %p189
      %p191 = scmp.ne.s32.totalorder %s179, %s180
      %p192 = scmp.eq.s32.totalorder %s48, 3
      %p193 = por %p191, %p192
      %p195 = scmp.ne.s32.totalorder %s180, %s194
      %p196 = scmp.eq.s32.totalorder %s48, 0
      %p197 = por %p195, %p196
      %s199 = sadd.s32 %s198, 1
      %p202 = scmp.eq.s32.totalorder %s42, 3
      %p203 = scmp.ne.s32.totalorder %s198, %s200
      %p204 = scmp.eq.s32.totalorder %s42, 0
      %p205 = por %p203, %p204
      %p206 = scmp.ne.s32.totalorder %s198, %s200
      %p207 = scmp.eq.s32.totalorder %s47, 3
      %p208 = por %p206, %p207
      %p209 = scmp.ne.s32.totalorder %s200, %s201
      %p210 = scmp.eq.s32.totalorder %s47, 0
      %p211 = por %p209, %p210
      %p212 = scmp.ne.s32.totalorder %s200, %s201
      %p213 = scmp.eq.s32.totalorder %s48, 3
      %p214 = por %p212, %p213
      %p216 = scmp.ne.s32.totalorder %s201, %s215
      %p217 = scmp.eq.s32.totalorder %s48, 0
      %p218 = por %p216, %p217
      %s220 = sadd.s32 %s219, 1
      %p223 = scmp.eq.s32.totalorder %s42, 3
      %p224 = scmp.ne.s32.totalorder %s219, %s221
      %p225 = scmp.eq.s32.totalorder %s42, 0
      %p226 = por %p224, %p225
      %p227 = scmp.ne.s32.totalorder %s219, %s221
      %p228 = scmp.eq.s32.totalorder %s47, 3
      %p229 = por %p227, %p228
      %p230 = scmp.ne.s32.totalorder %s221, %s222
      %p231 = scmp.eq.s32.totalorder %s47, 0
      %p232 = por %p230, %p231
      %p233 = scmp.ne.s32.totalorder %s221, %s222
      %p234 = scmp.eq.s32.totalorder %s48, 3
      %p235 = por %p233, %p234
      %p237 = scmp.ne.s32.totalorder %s222, %s236
      %p238 = scmp.eq.s32.totalorder %s48, 0
      %p239 = por %p237, %p238
      %s241 = sadd.s32 %s240, 1
      %p244 = scmp.eq.s32.totalorder %s42, 3
      %p245 = scmp.ne.s32.totalorder %s240, %s242
      %p246 = scmp.eq.s32.totalorder %s42, 0
      %p247 = por %p245, %p246
      %p248 = scmp.ne.s32.totalorder %s240, %s242
      %p249 = scmp.eq.s32.totalorder %s47, 3
      %p250 = por %p248, %p249
      %p251 = scmp.ne.s32.totalorder %s242, %s243
      %p252 = scmp.eq.s32.totalorder %s47, 0
      %p253 = por %p251, %p252
      %p254 = scmp.ne.s32.totalorder %s242, %s243
      %p255 = scmp.eq.s32.totalorder %s48, 3
      %p256 = por %p254, %p255
      %p258 = scmp.ne.s32.totalorder %s243, %s257
      %p259 = scmp.eq.s32.totalorder %s48, 0
      %p260 = por %p258, %p259
      %s262 = sadd.s32 %s261, 1
      %p265 = scmp.eq.s32.totalorder %s42, 3
      %p266 = scmp.ne.s32.totalorder %s261, %s263
      %p267 = scmp.eq.s32.totalorder %s42, 0
      %p268 = por %p266, %p267
      %p269 = scmp.ne.s32.totalorder %s261, %s263
      %p270 = scmp.eq.s32.totalorder %s47, 3
      %p271 = por %p269, %p270
      %p272 = scmp.ne.s32.totalorder %s263, %s264
      %p273 = scmp.eq.s32.totalorder %s47, 0
      %p274 = por %p272, %p273
      %p275 = scmp.ne.s32.totalorder %s263, %s264
      %p276 = scmp.eq.s32.totalorder %s48, 3
      %p277 = por %p275, %p276
      %p279 = scmp.ne.s32.totalorder %s264, %s278
      %p280 = scmp.eq.s32.totalorder %s48, 0
      %p281 = por %p279, %p280
      %s283 = sadd.s32 %s282, 1
      %p286 = scmp.eq.s32.totalorder %s42, 3
      %p287 = scmp.ne.s32.totalorder %s282, %s284
      %p288 = scmp.eq.s32.totalorder %s42, 0
      %p289 = por %p287, %p288
      %p290 = scmp.ne.s32.totalorder %s282, %s284
      %p291 = scmp.eq.s32.totalorder %s47, 3
      %p292 = por %p290, %p291
      %p293 = scmp.ne.s32.totalorder %s284, %s285
      %p294 = scmp.eq.s32.totalorder %s47, 0
      %p295 = por %p293, %p294
      %p296 = scmp.ne.s32.totalorder %s284, %s285
      %p297 = scmp.eq.s32.totalorder %s48, 3
      %p298 = por %p296, %p297
      %p300 = scmp.ne.s32.totalorder %s285, %s299
      %p301 = scmp.eq.s32.totalorder %s48, 0
      %p302 = por %p300, %p301
      %s304 = sadd.s32 %s303, 1
      %p307 = scmp.eq.s32.totalorder %s42, 3
      %p308 = scmp.ne.s32.totalorder %s303, %s305
      %p309 = scmp.eq.s32.totalorder %s42, 0
      %p310 = por %p308, %p309
      %p311 = scmp.ne.s32.totalorder %s303, %s305
      %p312 = scmp.eq.s32.totalorder %s47, 3
      %p313 = por %p311, %p312
      %p314 = scmp.ne.s32.totalorder %s305, %s306
      %p315 = scmp.eq.s32.totalorder %s47, 0
      %p316 = por %p314, %p315
      %p317 = scmp.ne.s32.totalorder %s305, %s306
      %p318 = scmp.eq.s32.totalorder %s48, 3
      %p319 = por %p317, %p318
      %p321 = scmp.ne.s32.totalorder %s306, %s320
      %p322 = scmp.eq.s32.totalorder %s48, 0
      %p323 = por %p321, %p322
      %s325 = sadd.s32 %s324, 1
      %p328 = scmp.eq.s32.totalorder %s42, 3
      %p329 = scmp.ne.s32.totalorder %s324, %s326
      %p330 = scmp.eq.s32.totalorder %s42, 0
      %p331 = por %p329, %p330
      %p332 = scmp.ne.s32.totalorder %s324, %s326
      %p333 = scmp.eq.s32.totalorder %s47, 3
      %p334 = por %p332, %p333
      %p335 = scmp.ne.s32.totalorder %s326, %s327
      %p336 = scmp.eq.s32.totalorder %s47, 0
      %p337 = por %p335, %p336
      %p338 = scmp.ne.s32.totalorder %s326, %s327
      %p339 = scmp.eq.s32.totalorder %s48, 3
      %p340 = por %p338, %p339
      %p342 = scmp.ne.s32.totalorder %s327, %s341
      %p343 = scmp.eq.s32.totalorder %s48, 0
      %p344 = por %p342, %p343
      %s346 = sadd.s32 %s345, 1
      %p349 = scmp.eq.s32.totalorder %s42, 3
      %p350 = scmp.ne.s32.totalorder %s345, %s347
      %p351 = scmp.eq.s32.totalorder %s42, 0
      %p352 = por %p350, %p351
      %p353 = scmp.ne.s32.totalorder %s345, %s347
      %p354 = scmp.eq.s32.totalorder %s47, 3
      %p355 = por %p353, %p354
      %p356 = scmp.ne.s32.totalorder %s347, %s348
      %p357 = scmp.eq.s32.totalorder %s47, 0
      %p358 = por %p356, %p357
      %p359 = scmp.ne.s32.totalorder %s347, %s348
      %p360 = scmp.eq.s32.totalorder %s48, 3
      %p361 = por %p359, %p360
      %p363 = scmp.ne.s32.totalorder %s348, %s362
      %p364 = scmp.eq.s32.totalorder %s48, 0
      %p365 = por %p363, %p364
      %s367 = sadd.s32 %s366, 1
      %p370 = scmp.eq.s32.totalorder %s42, 3
      %p371 = scmp.ne.s32.totalorder %s366, %s368
      %p372 = scmp.eq.s32.totalorder %s42, 0
      %p373 = por %p371, %p372
      %p374 = scmp.ne.s32.totalorder %s366, %s368
      %p375 = scmp.eq.s32.totalorder %s47, 3
      %p376 = por %p374, %p375
      %p377 = scmp.ne.s32.totalorder %s368, %s369
      %p378 = scmp.eq.s32.totalorder %s47, 0
      %p379 = por %p377, %p378
      %p380 = scmp.ne.s32.totalorder %s368, %s369
      %p381 = scmp.eq.s32.totalorder %s48, 3
      %p382 = por %p380, %p381
      %p384 = scmp.ne.s32.totalorder %s369, %s383
      %p385 = scmp.eq.s32.totalorder %s48, 0
      %p386 = por %p384, %p385
      %s388 = sadd.s32 %s387, 1
      %p391 = scmp.eq.s32.totalorder %s42, 3
      %p392 = scmp.ne.s32.totalorder %s387, %s389
      %p393 = scmp.eq.s32.totalorder %s42, 0
      %p394 = por %p392, %p393
      %p395 = scmp.ne.s32.totalorder %s387, %s389
      %p396 = scmp.eq.s32.totalorder %s47, 3
      %p397 = por %p395, %p396
      %p398 = scmp.ne.s32.totalorder %s389, %s390
      %p399 = scmp.eq.s32.totalorder %s47, 0
      %p400 = por %p398, %p399
      %p401 = scmp.ne.s32.totalorder %s389, %s390
      %p402 = scmp.eq.s32.totalorder %s48, 3
      %p403 = por %p401, %p402
      %p405 = scmp.ne.s32.totalorder %s390, %s404
      %p406 = scmp.eq.s32.totalorder %s48, 0
      %p407 = por %p405, %p406
      %s409 = sadd.s32 %s408, 1
      %p412 = scmp.eq.s32.totalorder %s42, 3
      %p413 = scmp.ne.s32.totalorder %s408, %s410
      %p414 = scmp.eq.s32.totalorder %s42, 0
      %p415 = por %p413, %p414
      %p416 = scmp.ne.s32.totalorder %s408, %s410
      %p417 = scmp.eq.s32.totalorder %s47, 3
      %p418 = por %p416, %p417
      %p419 = scmp.ne.s32.totalorder %s410, %s411
      %p420 = scmp.eq.s32.totalorder %s47, 0
      %p421 = por %p419, %p420
      %p422 = scmp.ne.s32.totalorder %s410, %s411
      %p423 = scmp.eq.s32.totalorder %s48, 3
      %p424 = por %p422, %p423
      %p426 = scmp.ne.s32.totalorder %s411, %s425
      %p427 = scmp.eq.s32.totalorder %s48, 0
      %p428 = por %p426, %p427
      %s430 = sadd.s32 %s429, 1
      %p433 = scmp.eq.s32.totalorder %s42, 3
      %p434 = scmp.ne.s32.totalorder %s429, %s431
      %p435 = scmp.eq.s32.totalorder %s42, 0
      %p436 = por %p434, %p435
      %p437 = scmp.ne.s32.totalorder %s429, %s431
      %p438 = scmp.eq.s32.totalorder %s47, 3
      %p439 = por %p437, %p438
      %p440 = scmp.ne.s32.totalorder %s431, %s432
      %p441 = scmp.eq.s32.totalorder %s47, 0
      %p442 = por %p440, %p441
      %p443 = scmp.ne.s32.totalorder %s431, %s432
      %p444 = scmp.eq.s32.totalorder %s48, 3
      %p445 = por %p443, %p444
      %p447 = scmp.ne.s32.totalorder %s432, %s446
      %p448 = scmp.eq.s32.totalorder %s48, 0
      %p449 = por %p447, %p448
      %s451 = sadd.s32 %s450, 1
      %p454 = scmp.eq.s32.totalorder %s42, 3
      %p455 = scmp.ne.s32.totalorder %s450, %s452
      %p456 = scmp.eq.s32.totalorder %s42, 0
      %p457 = por %p455, %p456
      %p458 = scmp.ne.s32.totalorder %s450, %s452
      %p459 = scmp.eq.s32.totalorder %s47, 3
      %p460 = por %p458, %p459
      %p461 = scmp.ne.s32.totalorder %s452, %s453
      %p462 = scmp.eq.s32.totalorder %s47, 0
      %p463 = por %p461, %p462
      %p464 = scmp.ne.s32.totalorder %s452, %s453
      %p465 = scmp.eq.s32.totalorder %s48, 3
      %p466 = por %p464, %p465
      %p468 = scmp.ne.s32.totalorder %s453, %s467
      %p469 = scmp.eq.s32.totalorder %s48, 0
      %p470 = por %p468, %p469
      %s472 = sadd.s32 %s471, 1
      %p475 = scmp.eq.s32.totalorder %s42, 3
      %p476 = scmp.ne.s32.totalorder %s471, %s473
      %p477 = scmp.eq.s32.totalorder %s42, 0
      %p478 = por %p476, %p477
      %p479 = scmp.ne.s32.totalorder %s471, %s473
      %p480 = scmp.eq.s32.totalorder %s47, 3
      %p481 = por %p479, %p480
      %p482 = scmp.ne.s32.totalorder %s473, %s474
      %p483 = scmp.eq.s32.totalorder %s47, 0
      %p484 = por %p482, %p483
      %p485 = scmp.ne.s32.totalorder %s473, %s474
      %p486 = scmp.eq.s32.totalorder %s48, 3
      %p487 = por %p485, %p486
      %p489 = scmp.ne.s32.totalorder %s474, %s488
      %p490 = scmp.eq.s32.totalorder %s48, 0
      %p491 = por %p489, %p490
      %s493 = sadd.s32 %s492, 1
      %p496 = scmp.eq.s32.totalorder %s42, 3
      %p497 = scmp.ne.s32.totalorder %s492, %s494
      %p498 = scmp.eq.s32.totalorder %s42, 0
      %p499 = por %p497, %p498
      %p500 = scmp.ne.s32.totalorder %s492, %s494
      %p501 = scmp.eq.s32.totalorder %s47, 3
      %p502 = por %p500, %p501
      %p503 = scmp.ne.s32.totalorder %s494, %s495
      %p504 = scmp.eq.s32.totalorder %s47, 0
      %p505 = por %p503, %p504
      %p506 = scmp.ne.s32.totalorder %s494, %s495
      %p507 = scmp.eq.s32.totalorder %s48, 3
      %p508 = por %p506, %p507
      %p510 = scmp.ne.s32.totalorder %s495, %s509
      %p511 = scmp.eq.s32.totalorder %s48, 0
      %p512 = por %p510, %p511
      %s514 = sadd.s32 %s513, 1
      %p517 = scmp.eq.s32.totalorder %s42, 3
      %p518 = scmp.ne.s32.totalorder %s513, %s515
      %p519 = scmp.eq.s32.totalorder %s42, 0
      %p520 = por %p518, %p519
      %p521 = scmp.ne.s32.totalorder %s513, %s515
      %p522 = scmp.eq.s32.totalorder %s47, 3
      %p523 = por %p521, %p522
      %p524 = scmp.ne.s32.totalorder %s515, %s516
      %p525 = scmp.eq.s32.totalorder %s47, 0
      %p526 = por %p524, %p525
      %p527 = scmp.ne.s32.totalorder %s515, %s516
      %p528 = scmp.eq.s32.totalorder %s48, 3
      %p529 = por %p527, %p528
      %p531 = scmp.ne.s32.totalorder %s516, %s530
      %p532 = scmp.eq.s32.totalorder %s48, 0
      %p533 = por %p531, %p532
      %s535 = sadd.s32 %s534, 1
      %p538 = scmp.eq.s32.totalorder %s42, 3
      %p539 = scmp.ne.s32.totalorder %s534, %s536
      %p540 = scmp.eq.s32.totalorder %s42, 0
      %p541 = por %p539, %p540
      %p542 = scmp.ne.s32.totalorder %s534, %s536
      %p543 = scmp.eq.s32.totalorder %s47, 3
      %p544 = por %p542, %p543
      %p545 = scmp.ne.s32.totalorder %s536, %s537
      %p546 = scmp.eq.s32.totalorder %s47, 0
      %p547 = por %p545, %p546
      %p548 = scmp.ne.s32.totalorder %s536, %s537
      %p549 = scmp.eq.s32.totalorder %s48, 3
      %p550 = por %p548, %p549
      %p552 = scmp.ne.s32.totalorder %s537, %s551
      %p553 = scmp.eq.s32.totalorder %s48, 0
      %p554 = por %p552, %p553
      %s556 = sadd.s32 %s555, 1
      %p559 = scmp.eq.s32.totalorder %s42, 3
      %p560 = scmp.ne.s32.totalorder %s555, %s557
      %p561 = scmp.eq.s32.totalorder %s42, 0
      %p562 = por %p560, %p561
      %p563 = scmp.ne.s32.totalorder %s555, %s557
      %p564 = scmp.eq.s32.totalorder %s47, 3
      %p565 = por %p563, %p564
      %p566 = scmp.ne.s32.totalorder %s557, %s558
      %p567 = scmp.eq.s32.totalorder %s47, 0
      %p568 = por %p566, %p567
      %p569 = scmp.ne.s32.totalorder %s557, %s558
      %p570 = scmp.eq.s32.totalorder %s48, 3
      %p571 = por %p569, %p570
      %p573 = scmp.ne.s32.totalorder %s558, %s572
      %p574 = scmp.eq.s32.totalorder %s48, 0
      %p575 = por %p573, %p574
      %s576 = ssub.s32 %s49, %s61
      %s577 = ssub.s32 %s50, %s57
      %s578 = sor.u32 %s576, %s577
      %p579 = scmp.eq.s32.totalorder %s578, 0
      %s581 = sadd.s32 %s580, 1
      %s582 = scalar_select %p579, %s580, %s581
      %p585 = pneg %p579
      %p586 = scmp.eq.s32.totalorder %s42, 3
      %p587 = por %p585, %p586
      %p588 = scmp.ne.s32.totalorder %s580, %s583
      %p589 = scmp.eq.s32.totalorder %s42, 0
      %p590 = por %p588, %p589
      %p591 = scmp.ne.s32.totalorder %s580, %s583
      %p592 = scmp.eq.s32.totalorder %s47, 3
      %p593 = por %p591, %p592
      %p594 = scmp.ne.s32.totalorder %s583, %s584
      %p595 = scmp.eq.s32.totalorder %s47, 0
      %p596 = por %p594, %p595
      %p597 = scmp.ne.s32.totalorder %s583, %s584
      %p598 = scmp.eq.s32.totalorder %s48, 3
      %p599 = por %p597, %p598
      %p601 = scmp.ne.s32.totalorder %s584, %s600
      %p602 = scmp.eq.s32.totalorder %s48, 0
      %p603 = por %p601, %p602
      %p604 = scmp.le.s32.totalorder 1, %s42
      %p605 = scmp.lt.s32.totalorder %s42, 5
      %p606 = pnand %p604, %p605
      %p607 = pneg %p606
      // Predicated region
      $region9: #{encoder_layer_with_pitch.1} parent=5 // pred_check
        _
      $region10: #{encoder_layer_with_pitch.1} parent=5 // pred_check_branch
        %609 = sbr.rel (%p606) target = $region12
      $region11: #{encoder_layer_with_pitch.1} parent=5 // pred_region
        %s610 = ssub.s32 %s42, 1
        // Predicated region
        $region13: #{encoder_layer_with_pitch.1} parent=11 // pred_check
          %p611 = pneg %p127
        $region14: #{encoder_layer_with_pitch.1} parent=11 // pred_check_branch
          %613 = sbr.rel (%p611) target = $region16
        $region15: #{encoder_layer_with_pitch.1} parent=11 // pred_region
          %s615 = ssub.s32 16, 16
          %616 = vsyncadd [#allocation3], %s615
          %s618 = sshll.u32 [#allocation2], 4
          %s619 = int_to_ptr.vmem [resolvable:$true] %s618
          %621 = dma.hbm_to_vmem [thread:$0]  %s2, 16, %s619, [#allocation3]
        $region16: #{encoder_layer_with_pitch.1} parent=11 // pred_fallthru
          _
        // Predicated region
        $region17: #{encoder_layer_with_pitch.1} parent=11 // pred_check
          %p622 = pneg %p148
        $region18: #{encoder_layer_with_pitch.1} parent=11 // pred_check_branch
          %624 = sbr.rel (%p622) target = $region20
        $region19: #{encoder_layer_with_pitch.1} parent=11 // pred_region
          %s626 = ssub.s32 16, 16
          %627 = vsyncadd [#allocation6], %s626
          %s629 = sshll.u32 [#allocation5], 4
          %s630 = int_to_ptr.vmem [resolvable:$true] %s629
          %632 = dma.hbm_to_vmem [thread:$0]  %s3, 16, %s630, [#allocation6]
        $region20: #{encoder_layer_with_pitch.1} parent=11 // pred_fallthru
          _
        // Predicated region
        $region21: #{encoder_layer_with_pitch.1} parent=11 // pred_check
          %p633 = pneg %p169
        $region22: #{encoder_layer_with_pitch.1} parent=11 // pred_check_branch
          %635 = sbr.rel (%p633) target = $region24
        $region23: #{encoder_layer_with_pitch.1} parent=11 // pred_region
          %s637 = ssub.s32 16, 16
          %638 = vsyncadd [#allocation6], %s637
          %s640 = sshll.u32 [#allocation7], 4
          %s641 = int_to_ptr.vmem [resolvable:$true] %s640
          %643 = dma.hbm_to_vmem [thread:$0]  %s4, 16, %s641, [#allocation6]
        $region24: #{encoder_layer_with_pitch.1} parent=11 // pred_fallthru
          _
        // Predicated region
        $region25: #{encoder_layer_with_pitch.1} parent=11 // pred_check
          %p644 = pneg %p190
        $region26: #{encoder_layer_with_pitch.1} parent=11 // pred_check_branch
          %646 = sbr.rel (%p644) target = $region28
        $region27: #{encoder_layer_with_pitch.1} parent=11 // pred_region
          %s648 = ssub.s32 16, 16
          %649 = vsyncadd [#allocation9], %s648
          %s651 = sshll.u32 [#allocation8], 4
          %s652 = int_to_ptr.vmem [resolvable:$true] %s651
          %654 = dma.hbm_to_vmem [thread:$0]  %s5, 16, %s652, [#allocation9]
        $region28: #{encoder_layer_with_pitch.1} parent=11 // pred_fallthru
          _
        // Predicated region
        $region29: #{encoder_layer_with_pitch.1} parent=11 // pred_check
          %p655 = pneg %p211
        $region30: #{encoder_layer_with_pitch.1} parent=11 // pred_check_branch
          %657 = sbr.rel (%p655) target = $region32
        $region31: #{encoder_layer_with_pitch.1} parent=11 // pred_region
          %s659 = ssub.s32 16, 16
          %660 = vsyncadd [#allocation9], %s659
          %s662 = sshll.u32 [#allocation10], 4
          %s663 = int_to_ptr.vmem [resolvable:$true] %s662
          %665 = dma.hbm_to_vmem [thread:$0]  %s6, 16, %s663, [#allocation9]
        $region32: #{encoder_layer_with_pitch.1} parent=11 // pred_fallthru
          _
        // Predicated region
        $region33: #{encoder_layer_with_pitch.1} parent=11 // pred_check
          %p666 = pneg %p232
        $region34: #{encoder_layer_with_pitch.1} parent=11 // pred_check_branch
          %668 = sbr.rel (%p666) target = $region36
        $region35: #{encoder_layer_with_pitch.1} parent=11 // pred_region
          %s670 = ssub.s32 16, 16
          %671 = vsyncadd [#allocation12], %s670
          %s673 = sshll.u32 [#allocation11], 4
          %s674 = int_to_ptr.vmem [resolvable:$true] %s673
          %676 = dma.hbm_to_vmem [thread:$0]  %s7, 16, %s674, [#allocation12]
        $region36: #{encoder_layer_with_pitch.1} parent=11 // pred_fallthru
          _
        // Predicated region
        $region37: #{encoder_layer_with_pitch.1} parent=11 // pred_check
          %p677 = pneg %p253
        $region38: #{encoder_layer_with_pitch.1} parent=11 // pred_check_branch
          %679 = sbr.rel (%p677) target = $region40
        $region39: #{encoder_layer_with_pitch.1} parent=11 // pred_region
          _
        $region40: #{encoder_layer_with_pitch.1} parent=11 // pred_fallthru
          _
        // Predicated region
        $region41: #{encoder_layer_with_pitch.1} parent=11 // pred_check
          %p680 = pneg %p274
        $region42: #{encoder_layer_with_pitch.1} parent=11 // pred_check_branch
          %682 = sbr.rel (%p680) target = $region44
        $region43: #{encoder_layer_with_pitch.1} parent=11 // pred_region
          _
        $region44: #{encoder_layer_with_pitch.1} parent=11 // pred_fallthru
          _
        // Predicated region
        $region45: #{encoder_layer_with_pitch.1} parent=11 // pred_check
          %p683 = pneg %p295
        $region46: #{encoder_layer_with_pitch.1} parent=11 // pred_check_branch
          %685 = sbr.rel (%p683) target = $region48
        $region47: #{encoder_layer_with_pitch.1} parent=11 // pred_region
          _
        $region48: #{encoder_layer_with_pitch.1} parent=11 // pred_fallthru
          _
        // Predicated region
        $region49: #{encoder_layer_with_pitch.1} parent=11 // pred_check
          %p686 = pneg %p316
        $region50: #{encoder_layer_with_pitch.1} parent=11 // pred_check_branch
          %688 = sbr.rel (%p686) target = $region52
        $region51: #{encoder_layer_with_pitch.1} parent=11 // pred_region
          %s690 = ssub.s32 16, 16
          %691 = vsyncadd [#allocation12], %s690
          %s693 = sshll.u32 [#allocation13], 4
          %s694 = int_to_ptr.vmem [resolvable:$true] %s693
          %696 = dma.hbm_to_vmem [thread:$0]  %s11, 16, %s694, [#allocation12]
        $region52: #{encoder_layer_with_pitch.1} parent=11 // pred_fallthru
          _
        // Predicated region
        $region53: #{encoder_layer_with_pitch.1} parent=11 // pred_check
          %p697 = pneg %p337
        $region54: #{encoder_layer_with_pitch.1} parent=11 // pred_check_branch
          %699 = sbr.rel (%p697) target = $region56
        $region55: #{encoder_layer_with_pitch.1} parent=11 // pred_region
          _
        $region56: #{encoder_layer_with_pitch.1} parent=11 // pred_fallthru
          _
        // Predicated region
        $region57: #{encoder_layer_with_pitch.1} parent=11 // pred_check
          %p700 = pneg %p358
        $region58: #{encoder_layer_with_pitch.1} parent=11 // pred_check_branch
          %702 = sbr.rel (%p700) target = $region60
        $region59: #{encoder_layer_with_pitch.1} parent=11 // pred_region
          %s704 = ssub.s32 16, 16
          %705 = vsyncadd [#allocation15], %s704
          %s707 = sshll.u32 [#allocation14], 4
          %s708 = int_to_ptr.vmem [resolvable:$true] %s707
          %710 = dma.hbm_to_vmem [thread:$0]  %s13, 16, %s708, [#allocation15]
        $region60: #{encoder_layer_with_pitch.1} parent=11 // pred_fallthru
          _
        // Predicated region
        $region61: #{encoder_layer_with_pitch.1} parent=11 // pred_check
          %p711 = pneg %p379
        $region62: #{encoder_layer_with_pitch.1} parent=11 // pred_check_branch
          %713 = sbr.rel (%p711) target = $region64
        $region63: #{encoder_layer_with_pitch.1} parent=11 // pred_region
          %s715 = ssub.s32 256, 256
          %716 = vsyncadd [#allocation15], %s715
          %s717 = sshll.u32 [#allocation16], 4
          %s718 = int_to_ptr.vmem [resolvable:$true] %s717
          %723 = dma.hbm_to_vmem [thread:$0]  %s14, 256, %s718, [#allocation15], 64, 64, 4
        $region64: #{encoder_layer_with_pitch.1} parent=11 // pred_fallthru
          _
        // Predicated region
        $region65: #{encoder_layer_with_pitch.1} parent=11 // pred_check
          %p724 = pneg %p400
        $region66: #{encoder_layer_with_pitch.1} parent=11 // pred_check_branch
          %726 = sbr.rel (%p724) target = $region68
        $region67: #{encoder_layer_with_pitch.1} parent=11 // pred_region
          %s728 = ssub.s32 16, 16
          %729 = vsyncadd [#allocation18], %s728
          %s731 = sshll.u32 [#allocation17], 4
          %s732 = int_to_ptr.vmem [resolvable:$true] %s731
          %734 = dma.hbm_to_vmem [thread:$0]  %s15, 16, %s732, [#allocation18]
        $region68: #{encoder_layer_with_pitch.1} parent=11 // pred_fallthru
          _
        // Predicated region
        $region69: #{encoder_layer_with_pitch.1} parent=11 // pred_check
          %p735 = pneg %p421
        $region70: #{encoder_layer_with_pitch.1} parent=11 // pred_check_branch
          %737 = sbr.rel (%p735) target = $region72
        $region71: #{encoder_layer_with_pitch.1} parent=11 // pred_region
          %s739 = ssub.s32 256, 256
          %740 = vsyncadd [#allocation18], %s739
          %s741 = sshll.u32 [#allocation19], 4
          %s742 = int_to_ptr.vmem [resolvable:$true] %s741
          %747 = dma.hbm_to_vmem [thread:$0]  %s16, 256, %s742, [#allocation18], 64, 64, 4
        $region72: #{encoder_layer_with_pitch.1} parent=11 // pred_fallthru
          _
        // Predicated region
        $region73: #{encoder_layer_with_pitch.1} parent=11 // pred_check
          %p748 = pneg %p442
        $region74: #{encoder_layer_with_pitch.1} parent=11 // pred_check_branch
          %750 = sbr.rel (%p748) target = $region76
        $region75: #{encoder_layer_with_pitch.1} parent=11 // pred_region
          %s752 = ssub.s32 16, 16
          %753 = vsyncadd [#allocation21], %s752
          %s755 = sshll.u32 [#allocation20], 4
          %s756 = int_to_ptr.vmem [resolvable:$true] %s755
          %758 = dma.hbm_to_vmem [thread:$0]  %s17, 16, %s756, [#allocation21]
        $region76: #{encoder_layer_with_pitch.1} parent=11 // pred_fallthru
          _
        // Predicated region
        $region77: #{encoder_layer_with_pitch.1} parent=11 // pred_check
          %p759 = pneg %p463
        $region78: #{encoder_layer_with_pitch.1} parent=11 // pred_check_branch
          %761 = sbr.rel (%p759) target = $region80
        $region79: #{encoder_layer_with_pitch.1} parent=11 // pred_region
          %s763 = ssub.s32 256, 256
          %764 = vsyncadd [#allocation21], %s763
          %s765 = sshll.u32 [#allocation22], 4
          %s766 = int_to_ptr.vmem [resolvable:$true] %s765
          %771 = dma.hbm_to_vmem [thread:$0]  %s18, 256, %s766, [#allocation21], 64, 64, 4
        $region80: #{encoder_layer_with_pitch.1} parent=11 // pred_fallthru
          _
        // Predicated region
        $region81: #{encoder_layer_with_pitch.1} parent=11 // pred_check
          %p772 = pneg %p484
        $region82: #{encoder_layer_with_pitch.1} parent=11 // pred_check_branch
          %774 = sbr.rel (%p772) target = $region84
        $region83: #{encoder_layer_with_pitch.1} parent=11 // pred_region
          %s776 = ssub.s32 16, 16
          %777 = vsyncadd [#allocation24], %s776
          %s779 = sshll.u32 [#allocation23], 4
          %s780 = int_to_ptr.vmem [resolvable:$true] %s779
          %782 = dma.hbm_to_vmem [thread:$0]  %s19, 16, %s780, [#allocation24]
        $region84: #{encoder_layer_with_pitch.1} parent=11 // pred_fallthru
          _
        // Predicated region
        $region85: #{encoder_layer_with_pitch.1} parent=11 // pred_check
          %p783 = pneg %p505
        $region86: #{encoder_layer_with_pitch.1} parent=11 // pred_check_branch
          %785 = sbr.rel (%p783) target = $region88
        $region87: #{encoder_layer_with_pitch.1} parent=11 // pred_region
          %s787 = ssub.s32 256, 256
          %788 = vsyncadd [#allocation24], %s787
          %s789 = sshll.u32 [#allocation25], 4
          %s790 = int_to_ptr.vmem [resolvable:$true] %s789
          %795 = dma.hbm_to_vmem [thread:$0]  %s20, 256, %s790, [#allocation24], 64, 64, 4
        $region88: #{encoder_layer_with_pitch.1} parent=11 // pred_fallthru
          _
        // Predicated region
        $region89: #{encoder_layer_with_pitch.1} parent=11 // pred_check
          %p796 = pneg %p526
        $region90: #{encoder_layer_with_pitch.1} parent=11 // pred_check_branch
          %798 = sbr.rel (%p796) target = $region92
        $region91: #{encoder_layer_with_pitch.1} parent=11 // pred_region
          %s800 = ssub.s32 16, 16
          %801 = vsyncadd [#allocation27], %s800
          %s803 = sshll.u32 [#allocation26], 4
          %s804 = int_to_ptr.vmem [resolvable:$true] %s803
          %806 = dma.hbm_to_vmem [thread:$0]  %s21, 16, %s804, [#allocation27]
        $region92: #{encoder_layer_with_pitch.1} parent=11 // pred_fallthru
          _
        // Predicated region
        $region93: #{encoder_layer_with_pitch.1} parent=11 // pred_check
          %p807 = pneg %p547
        $region94: #{encoder_layer_with_pitch.1} parent=11 // pred_check_branch
          %809 = sbr.rel (%p807) target = $region96
        $region95: #{encoder_layer_with_pitch.1} parent=11 // pred_region
          _
        $region96: #{encoder_layer_with_pitch.1} parent=11 // pred_fallthru
          _
        // Predicated region
        $region97: #{encoder_layer_with_pitch.1} parent=11 // pred_check
          %p810 = pneg %p568
        $region98: #{encoder_layer_with_pitch.1} parent=11 // pred_check_branch
          %812 = sbr.rel (%p810) target = $region100
        $region99: #{encoder_layer_with_pitch.1} parent=11 // pred_region
          %s814 = ssub.s32 16, 16
          %815 = vsyncadd [#allocation27], %s814
          %s817 = sshll.u32 [#allocation28], 4
          %s818 = int_to_ptr.vmem [resolvable:$true] %s817
          %820 = dma.hbm_to_vmem [thread:$0]  %s23, 16, %s818, [#allocation27]
        $region100: #{encoder_layer_with_pitch.1} parent=11 // pred_fallthru
          _
      $region12: #{encoder_layer_with_pitch.1} parent=5 // pred_fallthru
        _
      %p821 = scmp.lt.s32.totalorder %s42, 4
      // Predicated region
      $region101: #{encoder_layer_with_pitch.1} parent=5 // pred_check
        %p822 = pneg %p821
      $region102: #{encoder_layer_with_pitch.1} parent=5 // pred_check_branch
        %824 = sbr.rel (%p822) target = $region104
      $region103: #{encoder_layer_with_pitch.1} parent=5 // pred_region
        // Predicated region
        $region105: #{encoder_layer_with_pitch.1} parent=103 // pred_check
          %p825 = pneg %p74
        $region106: #{encoder_layer_with_pitch.1} parent=103 // pred_check_branch
          %827 = sbr.rel (%p825) target = $region108
        $region107: #{encoder_layer_with_pitch.1} parent=103 // pred_region
          %p828 = scmp.lt.s32.totalorder %s49, 1
          %s829 = scalar_select %p828, %s49, 1
          %s830 = smul.addr %s829, 2
          %s831 = smul.addr %s830, 8
          %s832 = scalar_lea.vmem %s0, %s831
        $region108: #{encoder_layer_with_pitch.1} parent=103 // pred_fallthru
          _
        // Predicated region
        $region109: #{encoder_layer_with_pitch.1} parent=103 // pred_check
          %p833 = pneg %p100
        $region110: #{encoder_layer_with_pitch.1} parent=103 // pred_check_branch
          %835 = sbr.rel (%p833) target = $region112
        $region111: #{encoder_layer_with_pitch.1} parent=103 // pred_region
          %p836 = scmp.lt.s32.totalorder %s49, 1
          %s837 = scalar_select %p836, %s49, 1
          %s838 = smul.addr %s837, 2
          %s839 = smul.addr %s838, 8
          %s840 = scalar_lea.vmem %s1, %s839
        $region112: #{encoder_layer_with_pitch.1} parent=103 // pred_fallthru
          _
      $region104: #{encoder_layer_with_pitch.1} parent=5 // pred_fallthru
        _
      %p841 = scmp.le.s32.totalorder 1, %s42
      %p842 = scmp.lt.s32.totalorder %s42, 5
      %p843 = pnand %p841, %p842
      %p844 = pneg %p843
      // Predicated region
      $region113: #{encoder_layer_with_pitch.1} parent=5 // pred_check
        _
      $region114: #{encoder_layer_with_pitch.1} parent=5 // pred_check_branch
        %846 = sbr.rel (%p843) target = $region116
      $region115: #{encoder_layer_with_pitch.1} parent=5 // pred_region
        %s847 = ssub.s32 %s42, 1
        // Predicated region
        $region117: #{encoder_layer_with_pitch.1} parent=115 // pred_check
          %p848 = pneg %p127
        $region118: #{encoder_layer_with_pitch.1} parent=115 // pred_check_branch
          %850 = sbr.rel (%p848) target = $region120
        $region119: #{encoder_layer_with_pitch.1} parent=115 // pred_region
          %851 = dma.done [#allocation3], 16
        $region120: #{encoder_layer_with_pitch.1} parent=115 // pred_fallthru
          _
        // Predicated region
        $region121: #{encoder_layer_with_pitch.1} parent=115 // pred_check
          %p852 = pneg %p148
        $region122: #{encoder_layer_with_pitch.1} parent=115 // pred_check_branch
          %854 = sbr.rel (%p852) target = $region124
        $region123: #{encoder_layer_with_pitch.1} parent=115 // pred_region
          %855 = dma.done [#allocation6], 16
        $region124: #{encoder_layer_with_pitch.1} parent=115 // pred_fallthru
          _
        // Predicated region
        $region125: #{encoder_layer_with_pitch.1} parent=115 // pred_check
          %p856 = pneg %p169
        $region126: #{encoder_layer_with_pitch.1} parent=115 // pred_check_branch
          %858 = sbr.rel (%p856) target = $region128
        $region127: #{encoder_layer_with_pitch.1} parent=115 // pred_region
          %859 = dma.done [#allocation6], 16
        $region128: #{encoder_layer_with_pitch.1} parent=115 // pred_fallthru
          _
        // Predicated region
        $region129: #{encoder_layer_with_pitch.1} parent=115 // pred_check
          %p860 = pneg %p190
        $region130: #{encoder_layer_with_pitch.1} parent=115 // pred_check_branch
          %862 = sbr.rel (%p860) target = $region132
        $region131: #{encoder_layer_with_pitch.1} parent=115 // pred_region
          %863 = dma.done [#allocation9], 16
        $region132: #{encoder_layer_with_pitch.1} parent=115 // pred_fallthru
          _
        // Predicated region
        $region133: #{encoder_layer_with_pitch.1} parent=115 // pred_check
          %p864 = pneg %p211
        $region134: #{encoder_layer_with_pitch.1} parent=115 // pred_check_branch
          %866 = sbr.rel (%p864) target = $region136
        $region135: #{encoder_layer_with_pitch.1} parent=115 // pred_region
          %867 = dma.done [#allocation9], 16
        $region136: #{encoder_layer_with_pitch.1} parent=115 // pred_fallthru
          _
        // Predicated region
        $region137: #{encoder_layer_with_pitch.1} parent=115 // pred_check
          %p868 = pneg %p232
        $region138: #{encoder_layer_with_pitch.1} parent=115 // pred_check_branch
          %870 = sbr.rel (%p868) target = $region140
        $region139: #{encoder_layer_with_pitch.1} parent=115 // pred_region
          %871 = dma.done [#allocation12], 16
        $region140: #{encoder_layer_with_pitch.1} parent=115 // pred_fallthru
          _
        // Predicated region
        $region141: #{encoder_layer_with_pitch.1} parent=115 // pred_check
          %p872 = pneg %p316
        $region142: #{encoder_layer_with_pitch.1} parent=115 // pred_check_branch
          %874 = sbr.rel (%p872) target = $region144
        $region143: #{encoder_layer_with_pitch.1} parent=115 // pred_region
          %875 = dma.done [#allocation12], 16
        $region144: #{encoder_layer_with_pitch.1} parent=115 // pred_fallthru
          _
        // Predicated region
        $region145: #{encoder_layer_with_pitch.1} parent=115 // pred_check
          %p876 = pneg %p358
        $region146: #{encoder_layer_with_pitch.1} parent=115 // pred_check_branch
          %878 = sbr.rel (%p876) target = $region148
        $region147: #{encoder_layer_with_pitch.1} parent=115 // pred_region
          %879 = dma.done [#allocation15], 16
        $region148: #{encoder_layer_with_pitch.1} parent=115 // pred_fallthru
          _
        // Predicated region
        $region149: #{encoder_layer_with_pitch.1} parent=115 // pred_check
          %p880 = pneg %p379
        $region150: #{encoder_layer_with_pitch.1} parent=115 // pred_check_branch
          %882 = sbr.rel (%p880) target = $region152
        $region151: #{encoder_layer_with_pitch.1} parent=115 // pred_region
          %883 = dma.done [#allocation15], 256
        $region152: #{encoder_layer_with_pitch.1} parent=115 // pred_fallthru
          _
        // Predicated region
        $region153: #{encoder_layer_with_pitch.1} parent=115 // pred_check
          %p884 = pneg %p400
        $region154: #{encoder_layer_with_pitch.1} parent=115 // pred_check_branch
          %886 = sbr.rel (%p884) target = $region156
        $region155: #{encoder_layer_with_pitch.1} parent=115 // pred_region
          %887 = dma.done [#allocation18], 16
        $region156: #{encoder_layer_with_pitch.1} parent=115 // pred_fallthru
          _
        // Predicated region
        $region157: #{encoder_layer_with_pitch.1} parent=115 // pred_check
          %p888 = pneg %p421
        $region158: #{encoder_layer_with_pitch.1} parent=115 // pred_check_branch
          %890 = sbr.rel (%p888) target = $region160
        $region159: #{encoder_layer_with_pitch.1} parent=115 // pred_region
          %891 = dma.done [#allocation18], 256
        $region160: #{encoder_layer_with_pitch.1} parent=115 // pred_fallthru
          _
        // Predicated region
        $region161: #{encoder_layer_with_pitch.1} parent=115 // pred_check
          %p892 = pneg %p442
        $region162: #{encoder_layer_with_pitch.1} parent=115 // pred_check_branch
          %894 = sbr.rel (%p892) target = $region164
        $region163: #{encoder_layer_with_pitch.1} parent=115 // pred_region
          %895 = dma.done [#allocation21], 16
        $region164: #{encoder_layer_with_pitch.1} parent=115 // pred_fallthru
          _
        // Predicated region
        $region165: #{encoder_layer_with_pitch.1} parent=115 // pred_check
          %p896 = pneg %p463
        $region166: #{encoder_layer_with_pitch.1} parent=115 // pred_check_branch
          %898 = sbr.rel (%p896) target = $region168
        $region167: #{encoder_layer_with_pitch.1} parent=115 // pred_region
          %899 = dma.done [#allocation21], 256
        $region168: #{encoder_layer_with_pitch.1} parent=115 // pred_fallthru
          _
        // Predicated region
        $region169: #{encoder_layer_with_pitch.1} parent=115 // pred_check
          %p900 = pneg %p484
        $region170: #{encoder_layer_with_pitch.1} parent=115 // pred_check_branch
          %902 = sbr.rel (%p900) target = $region172
        $region171: #{encoder_layer_with_pitch.1} parent=115 // pred_region
          %903 = dma.done [#allocation24], 16
        $region172: #{encoder_layer_with_pitch.1} parent=115 // pred_fallthru
          _
        // Predicated region
        $region173: #{encoder_layer_with_pitch.1} parent=115 // pred_check
          %p904 = pneg %p505
        $region174: #{encoder_layer_with_pitch.1} parent=115 // pred_check_branch
          %906 = sbr.rel (%p904) target = $region176
        $region175: #{encoder_layer_with_pitch.1} parent=115 // pred_region
          %907 = dma.done [#allocation24], 256
        $region176: #{encoder_layer_with_pitch.1} parent=115 // pred_fallthru
          _
        // Predicated region
        $region177: #{encoder_layer_with_pitch.1} parent=115 // pred_check
          %p908 = pneg %p526
        $region178: #{encoder_layer_with_pitch.1} parent=115 // pred_check_branch
          %910 = sbr.rel (%p908) target = $region180
        $region179: #{encoder_layer_with_pitch.1} parent=115 // pred_region
          %911 = dma.done [#allocation27], 16
        $region180: #{encoder_layer_with_pitch.1} parent=115 // pred_fallthru
          _
        // Predicated region
        $region181: #{encoder_layer_with_pitch.1} parent=115 // pred_check
          %p912 = pneg %p568
        $region182: #{encoder_layer_with_pitch.1} parent=115 // pred_check_branch
          %914 = sbr.rel (%p912) target = $region184
        $region183: #{encoder_layer_with_pitch.1} parent=115 // pred_region
          %915 = dma.done [#allocation27], 16
        $region184: #{encoder_layer_with_pitch.1} parent=115 // pred_fallthru
          _
        %p916 = scmp.lt.s32.totalorder %s51, 1
        %s917 = scalar_select %p916, %s51, 1
        %s918 = smul.addr %s917, 2
        %s919 = smul.addr %s918, 8
        %s920 = scalar_lea.vmem %s0, %s919
        %p921 = pneg %p80
        %p922 = pneg %p77
        %p923 = scmp.lt.s32.totalorder %s51, 1
        %s924 = scalar_select %p923, %s51, 1
        %s925 = smul.addr %s924, 2
        %s926 = smul.addr %s925, 8
        %s927 = scalar_lea.vmem %s1, %s926
        %p928 = pneg %p106
        %p929 = pneg %p103
        %p930 = pneg %p127
        %p931 = pneg %p124
        %p932 = pneg %p148
        %p933 = pneg %p145
        %p934 = pneg %p169
        %p935 = pneg %p166
        %p936 = pneg %p190
        %p937 = pneg %p187
        %p938 = pneg %p211
        %p939 = pneg %p208
        %p940 = pneg %p232
        %p941 = pneg %p229
        %p942 = pneg %p253
        %p943 = pneg %p250
        %p944 = pneg %p274
        %p945 = pneg %p271
        %p946 = pneg %p295
        %p947 = pneg %p292
        %p948 = pneg %p316
        %p949 = pneg %p313
        %p950 = pneg %p337
        %p951 = pneg %p334
        %p952 = pneg %p358
        %p953 = pneg %p355
        %p954 = pneg %p379
        %p955 = pneg %p376
        %p956 = pneg %p400
        %p957 = pneg %p397
        %p958 = pneg %p421
        %p959 = pneg %p418
        %p960 = pneg %p442
        %p961 = pneg %p439
        %p962 = pneg %p463
        %p963 = pneg %p460
        %p964 = pneg %p484
        %p965 = pneg %p481
        %p966 = pneg %p505
        %p967 = pneg %p502
        %p968 = pneg %p526
        %p969 = pneg %p523
        %p970 = pneg %p547
        %p971 = pneg %p544
        %p972 = pneg %p568
        %p973 = pneg %p565
        %p974 = pneg %p596
        %p975 = pneg %p593
        %s976 = sand.u32 %s583, 1
        %s977 = scalar_lea.sflag [#allocation4], %s976
        %s978 = sand.u32 %s583, 1
        %s979 = smul.addr %s978, 8
        %s980 = scalar_lea.vmem [#allocation29], %s979
        %p981 = scmp.lt.s32.totalorder %s51, 1
        %s982 = scalar_select %p981, %s51, 1
        %s983 = smul.addr %s982, 2
        %s984 = smul.addr %s983, 8
        %s985 = scalar_lea.vmem %s0, %s984
        %p986 = scmp.lt.s32.totalorder %s51, 1
        %s987 = scalar_select %p986, %s51, 1
        %s988 = smul.addr %s987, 2
        %s989 = smul.addr %s988, 8
        %s990 = scalar_lea.vmem %s1, %s989
        %s992 = smul.u32 %s52, 8
        %v993 = vld [vmem:[%s985] sm:$0xff]
        %v994 = vld [vmem:[%s985 + $0x8] sm:$0xff]
        %s995 = scalar_lea.vmem %s985, %s992
        %v996 = vld [vmem:[%s995] sm:$0xff]
        %v997 = vld [vmem:[%s990] sm:$0xff]
        %v998 = vld [vmem:[%s990 + $0x8] sm:$0xff]
        %vm999 = vcmask 261120
        %v1000 = vsel %vm999, %v993, 0.0
        %1001 = vadd.xlane.f32.xlu0 %v1000
        %v1002 = vpop.xlane.xlu0 %1001
        %v1003 = vsel %vm999, %v994, 0.0
        %1004 = vadd.xlane.f32.xlu0 %v1003
        %v1005 = vpop.xlane.xlu0 %1004
        %v1006 = vrcp.pop 32.0
        %v1007 = vmul.f32 %v1002, %v1006
        %v1008 = vmul.f32 %v1005, %v1006
        %v1009 = vmul.f32 %v993, %v993
        %v1010 = vmul.f32 %v994, %v994
        %v1011 = vsel %vm999, %v1009, 0.0
        %1012 = vadd.xlane.f32.xlu0 %v1011
        %v1013 = vpop.xlane.xlu0 %1012
        %v1014 = vsel %vm999, %v1010, 0.0
        %1015 = vadd.xlane.f32.xlu0 %v1014
        %v1016 = vpop.xlane.xlu0 %1015
        %v1017 = vmul.f32 %v1013, %v1006
        %v1018 = vmul.f32 %v1016, %v1006
        %v1019 = vmul.f32 %v1007, %v1007
        %v1020 = vmul.f32 %v1008, %v1008
        %v1021 = vsub.f32 %v1017, %v1019
        %v1022 = vsub.f32 %v1018, %v1020
        %v1023 = vsub.f32 %v993, %v1007
        %v1024 = vsub.f32 %v994, %v1008
        %v1025 = vadd.f32 %v1021, 1e-05
        %v1026 = vadd.f32 %v1022, 1e-05
        %v1027 = vrsqrt.pop %v1025
        %v1028 = vrsqrt.pop %v1026
        %v1029 = vmul.f32 %v1023, %v1027
        %v1030 = vmul.f32 %v1024, %v1028
        %v1031 = vld [vmem:[#allocation2] sm:$0x1]
        %v1033 = vlaneseq
        %v1034 = vshrl.u32 %v1033, 7
        %v1035 = vsub.s32 0, %v1034
        %v1036 = vrot.slane %v1031, %v1035
        %v1038 = vmul.f32 %v1029, %v1036
        %v1039 = vmul.f32 %v1030, %v1036
        %v1040 = vld [vmem:[#allocation5] sm:$0x1]
        %v1042 = vlaneseq
        %v1043 = vshrl.u32 %v1042, 7
        %v1044 = vsub.s32 0, %v1043
        %v1045 = vrot.slane %v1040, %v1044
        %v1047 = vadd.f32 %v1038, %v1045
        %v1048 = vadd.f32 %v1039, %v1045
        %v1049 = vpack.c.bf16 %v1048, %v1047
        %v1050 = vsel %vm999, %v996, 0.0
        %1051 = vadd.xlane.f32.xlu0 %v1050
        %v1052 = vpop.xlane.xlu0 %1051
        %v1053 = vmul.f32 %v1052, %v1006
        %v1054 = vmul.f32 %v996, %v996
        %v1055 = vsel %vm999, %v1054, 0.0
        %1056 = vadd.xlane.f32.xlu0 %v1055
        %v1057 = vpop.xlane.xlu0 %1056
        %v1058 = vmul.f32 %v1057, %v1006
        %v1059 = vmul.f32 %v1053, %v1053
        %v1060 = vsub.f32 %v1058, %v1059
        %v1061 = vsub.f32 %v996, %v1053
        %v1062 = vadd.f32 %v1060, 1e-05
        %v1063 = vrsqrt.pop %v1062
        %v1064 = vmul.f32 %v1061, %v1063
        %v1065 = vmul.f32 %v1064, %v1036
        %v1066 = vadd.f32 %v1065, %v1045
        %v1067 = vpack.c.bf16 %v1066, %v1066
        %v1068 = vld [vmem:[%s8] sm:$0xf]
        %v1069 = vld [vmem:[%s8 + $0x4] sm:$0xf]
        %v1070 = vld [vmem:[%s8 + $0x8] sm:$0xf]
        %v1071 = vld [vmem:[%s8 + $0xc] sm:$0xf]
        %v1072 = vld [vmem:[%s9] sm:$0x1]
        %v1074 = vlaneseq
        %v1075 = vshrl.u32 %v1074, 7
        %v1076 = vsub.s32 0, %v1075
        %v1077 = vrot.slane %v1072, %v1076
        %v1083 = vunpack.c.l.b16 %v1068
        %v1084 = vunpack.c.l.b16 %v1069
        %v1085 = vunpack.c.l.b16 %v1070
        %v1086 = vunpack.c.l.b16 %v1071
        %v1087 = vpack.c.b16 %v1084, %v1083
        %v1088 = vpack.c.b16 %v1086, %v1085
        %v1092 = vsel %vm999, %v1067, 0
        %1094 = vmatprep.subr.bf16.mxu0 0
        %1095 = vmatpush1.bf16.msra.mxu0 %v1087
        %1096 = vmatprep.subr.bf16.mxu0 0
        %1097 = vmatpush1.bf16.msra.mxu0 %v1088
        %1098 = vmatprep.subr.bf16.mxu0 0
        %1099 = vmatpush1.bf16.msra.mxu0 0
        %1100 = vmatprep.subr.bf16.mxu0 0
        %1101 = vmatpush1.bf16.msra.mxu0 0
        %1102 = vmatprep.subr.bf16.mxu0 0
        %1103 = vmatpush1.bf16.msra.mxu0 0
        %1104 = vmatprep.subr.bf16.mxu0 0
        %1105 = vmatpush1.bf16.msra.mxu0 0
        %1106 = vmatprep.subr.bf16.mxu0 0
        %1107 = vmatpush1.bf16.msra.mxu0 0
        %1108 = vmatprep.subr.bf16.mxu0 0
        %1109 = vmatpush1.bf16.msra.mxu0 0
        %1110 = vmatprep.subr.bf16.mxu0 0
        %1111 = vmatpush1.bf16.msra.mxu0 0
        %1112 = vmatprep.subr.bf16.mxu0 0
        %1113 = vmatpush1.bf16.msra.mxu0 0
        %1114 = vmatprep.subr.bf16.mxu0 0
        %1115 = vmatpush1.bf16.msra.mxu0 0
        %1116 = vmatprep.subr.bf16.mxu0 0
        %1117 = vmatpush1.bf16.msra.mxu0 0
        %1118 = vmatprep.subr.bf16.mxu0 0
        %1119 = vmatpush1.bf16.msra.mxu0 0
        %1120 = vmatprep.subr.bf16.mxu0 0
        %1121 = vmatpush1.bf16.msra.mxu0 0
        %1122 = vmatprep.subr.bf16.mxu0 0
        %1123 = vmatpush1.bf16.msra.mxu0 0
        %1124 = vmatprep.subr.bf16.mxu0 0
        %1125 = vmatpush1.bf16.msra.mxu0 0
        %1126 = vmatprep.mubr.bf16.mxu0 0
        %1127 = vmatmul.mubr.bf16.gmra.mrb[0].mxu0 %v1092
        %v1128 = vpop.f32.mrb[0].mxu0
        %v1129 = vadd.f32 %v1077, %v1128
        %v1130 = vpop.f32.mrb[0].mxu0
        %v1131 = vpop.f32.mrb[0].mxu0
        %v1132 = vpop.f32.mrb[0].mxu0
        %1133 = vdwg.mxu0
        %v1134 = vpack.c.bf16 %v1129, %v1129
        %v1135 = vld [vmem:[%s10] sm:$0xf]
        %v1136 = vld [vmem:[%s10 + $0x4] sm:$0xf]
        %v1137 = vld [vmem:[%s10 + $0x8] sm:$0xf]
        %v1138 = vld [vmem:[%s10 + $0xc] sm:$0xf]
        %v1139 = vld [vmem:[#allocation13] sm:$0x1]
        %v1141 = vlaneseq
        %v1142 = vshrl.u32 %v1141, 7
        %v1143 = vsub.s32 0, %v1142
        %v1144 = vrot.slane %v1139, %v1143
        %v1150 = vunpack.c.l.b16 %v1135
        %v1151 = vunpack.c.l.b16 %v1136
        %v1152 = vunpack.c.l.b16 %v1137
        %v1153 = vunpack.c.l.b16 %v1138
        %v1154 = vpack.c.b16 %v1151, %v1150
        %v1155 = vpack.c.b16 %v1153, %v1152
        %v1159 = vsel %vm999, %v1049, 0
        %1161 = vmatprep.subr.bf16.mxu0 0
        %1162 = vmatpush1.bf16.msra.mxu0 %v1154
        %1163 = vmatprep.subr.bf16.mxu0 0
        %1164 = vmatpush1.bf16.msra.mxu0 %v1155
        %1165 = vmatprep.subr.bf16.mxu0 0
        %1166 = vmatpush1.bf16.msra.mxu0 0
        %1167 = vmatprep.subr.bf16.mxu0 0
        %1168 = vmatpush1.bf16.msra.mxu0 0
        %1169 = vmatprep.subr.bf16.mxu0 0
        %1170 = vmatpush1.bf16.msra.mxu0 0
        %1171 = vmatprep.subr.bf16.mxu0 0
        %1172 = vmatpush1.bf16.msra.mxu0 0
        %1173 = vmatprep.subr.bf16.mxu0 0
        %1174 = vmatpush1.bf16.msra.mxu0 0
        %1175 = vmatprep.subr.bf16.mxu0 0
        %1176 = vmatpush1.bf16.msra.mxu0 0
        %1177 = vmatprep.subr.bf16.mxu0 0
        %1178 = vmatpush1.bf16.msra.mxu0 0
        %1179 = vmatprep.subr.bf16.mxu0 0
        %1180 = vmatpush1.bf16.msra.mxu0 0
        %1181 = vmatprep.subr.bf16.mxu0 0
        %1182 = vmatpush1.bf16.msra.mxu0 0
        %1183 = vmatprep.subr.bf16.mxu0 0
        %1184 = vmatpush1.bf16.msra.mxu0 0
        %1185 = vmatprep.subr.bf16.mxu0 0
        %1186 = vmatpush1.bf16.msra.mxu0 0
        %1187 = vmatprep.subr.bf16.mxu0 0
        %1188 = vmatpush1.bf16.msra.mxu0 0
        %1189 = vmatprep.subr.bf16.mxu0 0
        %1190 = vmatpush1.bf16.msra.mxu0 0
        %1191 = vmatprep.subr.bf16.mxu0 0
        %1192 = vmatpush1.bf16.msra.mxu0 0
        %1193 = vmatprep.mubr.bf16.mxu0 0
        %1194 = vmatmul.mubr.bf16.gmra.mrb[0].mxu0 %v1159
        %v1195 = vpop.f32.mrb[0].mxu0
        %v1196 = vadd.f32 %v1144, %v1195
        %v1197 = vpop.f32.mrb[0].mxu0
        %v1198 = vpop.f32.mrb[0].mxu0
        %v1199 = vadd.f32 %v1144, %v1198
        %v1200 = vpop.f32.mrb[0].mxu0
        %1201 = vdwg.mxu0
        %v1202 = vpack.c.bf16 %v1199, %v1196
        %vm1203 = vcmask 64512
        %v1205 = vsel %vm1203, %v1134, 0
        %v1208 = vsel %vm1203, %v1202, 0
        %1210 = vmatprep.subr.bf16.mxu0 0
        %1211 = vmatpush1.bf16.xpose.msra.mxu0 %v1208
        %1212 = vmatprep.subr.bf16.mxu0 0
        %1213 = vmatpush1.bf16.xpose.msra.mxu0 0
        %1214 = vmatprep.subr.bf16.mxu0 0
        %1215 = vmatpush1.bf16.xpose.msra.mxu0 0
        %1216 = vmatprep.subr.bf16.mxu0 0
        %1217 = vmatpush1.bf16.xpose.msra.mxu0 0
        %1218 = vmatprep.subr.bf16.mxu0 0
        %1219 = vmatpush1.bf16.xpose.msra.mxu0 0
        %1220 = vmatprep.subr.bf16.mxu0 0
        %1221 = vmatpush1.bf16.xpose.msra.mxu0 0
        %1222 = vmatprep.subr.bf16.mxu0 0
        %1223 = vmatpush1.bf16.xpose.msra.mxu0 0
        %1224 = vmatprep.subr.bf16.mxu0 0
        %1225 = vmatpush1.bf16.xpose.msra.mxu0 0
        %1226 = vmatprep.subr.bf16.mxu0 0
        %1227 = vmatpush1.bf16.xpose.msra.mxu0 0
        %1228 = vmatprep.subr.bf16.mxu0 0
        %1229 = vmatpush1.bf16.xpose.msra.mxu0 0
        %1230 = vmatprep.subr.bf16.mxu0 0
        %1231 = vmatpush1.bf16.xpose.msra.mxu0 0
        %1232 = vmatprep.subr.bf16.mxu0 0
        %1233 = vmatpush1.bf16.xpose.msra.mxu0 0
        %1234 = vmatprep.subr.bf16.mxu0 0
        %1235 = vmatpush1.bf16.xpose.msra.mxu0 0
        %1236 = vmatprep.subr.bf16.mxu0 0
        %1237 = vmatpush1.bf16.xpose.msra.mxu0 0
        %1238 = vmatprep.subr.bf16.mxu0 0
        %1239 = vmatpush1.bf16.xpose.msra.mxu0 0
        %1240 = vmatprep.subr.bf16.mxu0 0
        %1241 = vmatpush1.bf16.xpose.msra.mxu0 0
        %1242 = vmatprep.mubr.bf16.mxu0 0
        %1243 = vmatmul.mubr.bf16.gmra.mrb[0].mxu0 %v1205
        %v1244 = vpop.f32.mrb[0].mxu0
        %v1245 = vadd.f32 0.0, %v1244
        %v1246 = vpop.f32.mrb[0].mxu0
        %v1247 = vpop.f32.mrb[0].mxu0
        %v1248 = vpop.f32.mrb[0].mxu0
        %1249 = vdwg.mxu0
        %vm1250 = vcmask 130048
        %v1251 = vsel %vm1250, %v1245, -inf
        %1252 = vmax.xlane.f32.xlu0 %v1251
        %v1253 = vpop.xlane.xlu0 %1252
        %v1254 = vsub.f32 %v1245, %v1253
        %v1255 = vmul.f32 %v1254, 1.442695
        %v1256 = vpow.pop %v1255
        %v1257 = vsel %vm1250, %v1256, 0.0
        %1258 = vadd.xlane.f32.xlu0 %v1257
        %v1259 = vpop.xlane.xlu0 %1258
        %v1260 = vrcp.pop %v1259
        %v1261 = vmul.f32 %v1256, %v1260
        %v1262 = vpack.c.bf16 %v1261, %v1261
        %1264 = vrot.lane.b32.xlu0 %v1202, 96
        %v1265 = vpop.permute.xlu0 %1264
        %v1268 = vsel %vm1250, %v1262, 0
        %1270 = vmatprep.subr.bf16.mxu0 0
        %1271 = vmatpush1.bf16.msra.mxu0 %v1265
        %1272 = vmatprep.subr.bf16.mxu0 0
        %1273 = vmatpush1.bf16.msra.mxu0 0
        %1274 = vmatprep.subr.bf16.mxu0 0
        %1275 = vmatpush1.bf16.msra.mxu0 0
        %1276 = vmatprep.subr.bf16.mxu0 0
        %1277 = vmatpush1.bf16.msra.mxu0 0
        %1278 = vmatprep.subr.bf16.mxu0 0
        %1279 = vmatpush1.bf16.msra.mxu0 0
        %1280 = vmatprep.subr.bf16.mxu0 0
        %1281 = vmatpush1.bf16.msra.mxu0 0
        %1282 = vmatprep.subr.bf16.mxu0 0
        %1283 = vmatpush1.bf16.msra.mxu0 0
        %1284 = vmatprep.subr.bf16.mxu0 0
        %1285 = vmatpush1.bf16.msra.mxu0 0
        %1286 = vmatprep.subr.bf16.mxu0 0
        %1287 = vmatpush1.bf16.msra.mxu0 0
        %1288 = vmatprep.subr.bf16.mxu0 0
        %1289 = vmatpush1.bf16.msra.mxu0 0
        %1290 = vmatprep.subr.bf16.mxu0 0
        %1291 = vmatpush1.bf16.msra.mxu0 0
        %1292 = vmatprep.subr.bf16.mxu0 0
        %1293 = vmatpush1.bf16.msra.mxu0 0
        %1294 = vmatprep.subr.bf16.mxu0 0
        %1295 = vmatpush1.bf16.msra.mxu0 0
        %1296 = vmatprep.subr.bf16.mxu0 0
        %1297 = vmatpush1.bf16.msra.mxu0 0
        %1298 = vmatprep.subr.bf16.mxu0 0
        %1299 = vmatpush1.bf16.msra.mxu0 0
        %1300 = vmatprep.subr.bf16.mxu0 0
        %1301 = vmatpush1.bf16.msra.mxu0 0
        %1302 = vmatprep.mubr.bf16.mxu0 0
        %1303 = vmatmul.mubr.bf16.gmra.mrb[0].mxu0 %v1268
        %v1304 = vpop.f32.mrb[0].mxu0
        %v1305 = vadd.f32 0.0, %v1304
        %v1306 = vpop.f32.mrb[0].mxu0
        %v1307 = vpop.f32.mrb[0].mxu0
        %v1308 = vpop.f32.mrb[0].mxu0
        %1309 = vdwg.mxu0
        %1311 = vrot.lane.b32.xlu0 %v1134, 120
        %v1312 = vpop.permute.xlu0 %1311
        %1313 = vrot.lane.b32.xlu0 %v1202, 120
        %v1314 = vpop.permute.xlu0 %1313
        %v1316 = vsel %vm1203, %v1312, 0
        %v1319 = vsel %vm1203, %v1314, 0
        %1321 = vmatprep.subr.bf16.mxu0 0
        %1322 = vmatpush1.bf16.xpose.msra.mxu0 %v1319
        %1323 = vmatprep.subr.bf16.mxu0 0
        %1324 = vmatpush1.bf16.xpose.msra.mxu0 0
        %1325 = vmatprep.subr.bf16.mxu0 0
        %1326 = vmatpush1.bf16.xpose.msra.mxu0 0
        %1327 = vmatprep.subr.bf16.mxu0 0
        %1328 = vmatpush1.bf16.xpose.msra.mxu0 0
        %1329 = vmatprep.subr.bf16.mxu0 0
        %1330 = vmatpush1.bf16.xpose.msra.mxu0 0
        %1331 = vmatprep.subr.bf16.mxu0 0
        %1332 = vmatpush1.bf16.xpose.msra.mxu0 0
        %1333 = vmatprep.subr.bf16.mxu0 0
        %1334 = vmatpush1.bf16.xpose.msra.mxu0 0
        %1335 = vmatprep.subr.bf16.mxu0 0
        %1336 = vmatpush1.bf16.xpose.msra.mxu0 0
        %1337 = vmatprep.subr.bf16.mxu0 0
        %1338 = vmatpush1.bf16.xpose.msra.mxu0 0
        %1339 = vmatprep.subr.bf16.mxu0 0
        %1340 = vmatpush1.bf16.xpose.msra.mxu0 0
        %1341 = vmatprep.subr.bf16.mxu0 0
        %1342 = vmatpush1.bf16.xpose.msra.mxu0 0
        %1343 = vmatprep.subr.bf16.mxu0 0
        %1344 = vmatpush1.bf16.xpose.msra.mxu0 0
        %1345 = vmatprep.subr.bf16.mxu0 0
        %1346 = vmatpush1.bf16.xpose.msra.mxu0 0
        %1347 = vmatprep.subr.bf16.mxu0 0
        %1348 = vmatpush1.bf16.xpose.msra.mxu0 0
        %1349 = vmatprep.subr.bf16.mxu0 0
        %1350 = vmatpush1.bf16.xpose.msra.mxu0 0
        %1351 = vmatprep.subr.bf16.mxu0 0
        %1352 = vmatpush1.bf16.xpose.msra.mxu0 0
        %1353 = vmatprep.mubr.bf16.mxu0 0
        %1354 = vmatmul.mubr.bf16.gmra.mrb[0].mxu0 %v1316
        %v1355 = vpop.f32.mrb[0].mxu0
        %v1356 = vadd.f32 0.0, %v1355
        %v1357 = vpop.f32.mrb[0].mxu0
        %v1358 = vpop.f32.mrb[0].mxu0
        %v1359 = vpop.f32.mrb[0].mxu0
        %1360 = vdwg.mxu0
        %v1361 = vsel %vm1250, %v1356, -inf
        %1362 = vmax.xlane.f32.xlu0 %v1361
        %v1363 = vpop.xlane.xlu0 %1362
        %v1364 = vsub.f32 %v1356, %v1363
        %v1365 = vmul.f32 %v1364, 1.442695
        %v1366 = vpow.pop %v1365
        %v1367 = vsel %vm1250, %v1366, 0.0
        %1368 = vadd.xlane.f32.xlu0 %v1367
        %v1369 = vpop.xlane.xlu0 %1368
        %v1370 = vrcp.pop %v1369
        %v1371 = vmul.f32 %v1366, %v1370
        %v1372 = vpack.c.bf16 %v1371, %v1371
        %1373 = vrot.lane.b32.xlu0 %v1202, 88
        %v1374 = vpop.permute.xlu0 %1373
        %v1377 = vsel %vm1250, %v1372, 0
        %1379 = vmatprep.subr.bf16.mxu0 0
        %1380 = vmatpush1.bf16.msra.mxu0 %v1374
        %1381 = vmatprep.subr.bf16.mxu0 0
        %1382 = vmatpush1.bf16.msra.mxu0 0
        %1383 = vmatprep.subr.bf16.mxu0 0
        %1384 = vmatpush1.bf16.msra.mxu0 0
        %1385 = vmatprep.subr.bf16.mxu0 0
        %1386 = vmatpush1.bf16.msra.mxu0 0
        %1387 = vmatprep.subr.bf16.mxu0 0
        %1388 = vmatpush1.bf16.msra.mxu0 0
        %1389 = vmatprep.subr.bf16.mxu0 0
        %1390 = vmatpush1.bf16.msra.mxu0 0
        %1391 = vmatprep.subr.bf16.mxu0 0
        %1392 = vmatpush1.bf16.msra.mxu0 0
        %1393 = vmatprep.subr.bf16.mxu0 0
        %1394 = vmatpush1.bf16.msra.mxu0 0
        %1395 = vmatprep.subr.bf16.mxu0 0
        %1396 = vmatpush1.bf16.msra.mxu0 0
        %1397 = vmatprep.subr.bf16.mxu0 0
        %1398 = vmatpush1.bf16.msra.mxu0 0
        %1399 = vmatprep.subr.bf16.mxu0 0
        %1400 = vmatpush1.bf16.msra.mxu0 0
        %1401 = vmatprep.subr.bf16.mxu0 0
        %1402 = vmatpush1.bf16.msra.mxu0 0
        %1403 = vmatprep.subr.bf16.mxu0 0
        %1404 = vmatpush1.bf16.msra.mxu0 0
        %1405 = vmatprep.subr.bf16.mxu0 0
        %1406 = vmatpush1.bf16.msra.mxu0 0
        %1407 = vmatprep.subr.bf16.mxu0 0
        %1408 = vmatpush1.bf16.msra.mxu0 0
        %1409 = vmatprep.subr.bf16.mxu0 0
        %1410 = vmatpush1.bf16.msra.mxu0 0
        %1411 = vmatprep.mubr.bf16.mxu0 0
        %1412 = vmatmul.mubr.bf16.gmra.mrb[0].mxu0 %v1377
        %v1413 = vpop.f32.mrb[0].mxu0
        %v1414 = vadd.f32 0.0, %v1413
        %v1415 = vpop.f32.mrb[0].mxu0
        %v1416 = vpop.f32.mrb[0].mxu0
        %v1417 = vpop.f32.mrb[0].mxu0
        %1418 = vdwg.mxu0
        %1419 = vrot.lane.b32.xlu0 %v1134, 112
        %v1420 = vpop.permute.xlu0 %1419
        %1421 = vrot.lane.b32.xlu0 %v1202, 112
        %v1422 = vpop.permute.xlu0 %1421
        %v1424 = vsel %vm1203, %v1420, 0
        %v1427 = vsel %vm1203, %v1422, 0
        %1429 = vmatprep.subr.bf16.mxu0 0
        %1430 = vmatpush1.bf16.xpose.msra.mxu0 %v1427
        %1431 = vmatprep.subr.bf16.mxu0 0
        %1432 = vmatpush1.bf16.xpose.msra.mxu0 0
        %1433 = vmatprep.subr.bf16.mxu0 0
        %1434 = vmatpush1.bf16.xpose.msra.mxu0 0
        %1435 = vmatprep.subr.bf16.mxu0 0
        %1436 = vmatpush1.bf16.xpose.msra.mxu0 0
        %1437 = vmatprep.subr.bf16.mxu0 0
        %1438 = vmatpush1.bf16.xpose.msra.mxu0 0
        %1439 = vmatprep.subr.bf16.mxu0 0
        %1440 = vmatpush1.bf16.xpose.msra.mxu0 0
        %1441 = vmatprep.subr.bf16.mxu0 0
        %1442 = vmatpush1.bf16.xpose.msra.mxu0 0
        %1443 = vmatprep.subr.bf16.mxu0 0
        %1444 = vmatpush1.bf16.xpose.msra.mxu0 0
        %1445 = vmatprep.subr.bf16.mxu0 0
        %1446 = vmatpush1.bf16.xpose.msra.mxu0 0
        %1447 = vmatprep.subr.bf16.mxu0 0
        %1448 = vmatpush1.bf16.xpose.msra.mxu0 0
        %1449 = vmatprep.subr.bf16.mxu0 0
        %1450 = vmatpush1.bf16.xpose.msra.mxu0 0
        %1451 = vmatprep.subr.bf16.mxu0 0
        %1452 = vmatpush1.bf16.xpose.msra.mxu0 0
        %1453 = vmatprep.subr.bf16.mxu0 0
        %1454 = vmatpush1.bf16.xpose.msra.mxu0 0
        %1455 = vmatprep.subr.bf16.mxu0 0
        %1456 = vmatpush1.bf16.xpose.msra.mxu0 0
        %1457 = vmatprep.subr.bf16.mxu0 0
        %1458 = vmatpush1.bf16.xpose.msra.mxu0 0
        %1459 = vmatprep.subr.bf16.mxu0 0
        %1460 = vmatpush1.bf16.xpose.msra.mxu0 0
        %1461 = vmatprep.mubr.bf16.mxu0 0
        %1462 = vmatmul.mubr.bf16.gmra.mrb[0].mxu0 %v1424
        %v1463 = vpop.f32.mrb[0].mxu0
        %v1464 = vadd.f32 0.0, %v1463
        %v1465 = vpop.f32.mrb[0].mxu0
        %v1466 = vpop.f32.mrb[0].mxu0
        %v1467 = vpop.f32.mrb[0].mxu0
        %1468 = vdwg.mxu0
        %v1469 = vsel %vm1250, %v1464, -inf
        %1470 = vmax.xlane.f32.xlu0 %v1469
        %v1471 = vpop.xlane.xlu0 %1470
        %v1472 = vsub.f32 %v1464, %v1471
        %v1473 = vmul.f32 %v1472, 1.442695
        %v1474 = vpow.pop %v1473
        %v1475 = vsel %vm1250, %v1474, 0.0
        %1476 = vadd.xlane.f32.xlu0 %v1475
        %v1477 = vpop.xlane.xlu0 %1476
        %v1478 = vrcp.pop %v1477
        %v1479 = vmul.f32 %v1474, %v1478
        %v1480 = vpack.c.bf16 %v1479, %v1479
        %1481 = vrot.lane.b32.xlu0 %v1202, 80
        %v1482 = vpop.permute.xlu0 %1481
        %v1485 = vsel %vm1250, %v1480, 0
        %1487 = vmatprep.subr.bf16.mxu0 0
        %1488 = vmatpush1.bf16.msra.mxu0 %v1482
        %1489 = vmatprep.subr.bf16.mxu0 0
        %1490 = vmatpush1.bf16.msra.mxu0 0
        %1491 = vmatprep.subr.bf16.mxu0 0
        %1492 = vmatpush1.bf16.msra.mxu0 0
        %1493 = vmatprep.subr.bf16.mxu0 0
        %1494 = vmatpush1.bf16.msra.mxu0 0
        %1495 = vmatprep.subr.bf16.mxu0 0
        %1496 = vmatpush1.bf16.msra.mxu0 0
        %1497 = vmatprep.subr.bf16.mxu0 0
        %1498 = vmatpush1.bf16.msra.mxu0 0
        %1499 = vmatprep.subr.bf16.mxu0 0
        %1500 = vmatpush1.bf16.msra.mxu0 0
        %1501 = vmatprep.subr.bf16.mxu0 0
        %1502 = vmatpush1.bf16.msra.mxu0 0
        %1503 = vmatprep.subr.bf16.mxu0 0
        %1504 = vmatpush1.bf16.msra.mxu0 0
        %1505 = vmatprep.subr.bf16.mxu0 0
        %1506 = vmatpush1.bf16.msra.mxu0 0
        %1507 = vmatprep.subr.bf16.mxu0 0
        %1508 = vmatpush1.bf16.msra.mxu0 0
        %1509 = vmatprep.subr.bf16.mxu0 0
        %1510 = vmatpush1.bf16.msra.mxu0 0
        %1511 = vmatprep.subr.bf16.mxu0 0
        %1512 = vmatpush1.bf16.msra.mxu0 0
        %1513 = vmatprep.subr.bf16.mxu0 0
        %1514 = vmatpush1.bf16.msra.mxu0 0
        %1515 = vmatprep.subr.bf16.mxu0 0
        %1516 = vmatpush1.bf16.msra.mxu0 0
        %1517 = vmatprep.subr.bf16.mxu0 0
        %1518 = vmatpush1.bf16.msra.mxu0 0
        %1519 = vmatprep.mubr.bf16.mxu0 0
        %1520 = vmatmul.mubr.bf16.gmra.mrb[0].mxu0 %v1485
        %v1521 = vpop.f32.mrb[0].mxu0
        %v1522 = vadd.f32 0.0, %v1521
        %v1523 = vpop.f32.mrb[0].mxu0
        %v1524 = vpop.f32.mrb[0].mxu0
        %v1525 = vpop.f32.mrb[0].mxu0
        %1526 = vdwg.mxu0
        %1527 = vrot.lane.b32.xlu0 %v1134, 104
        %v1528 = vpop.permute.xlu0 %1527
        %1529 = vrot.lane.b32.xlu0 %v1202, 104
        %v1530 = vpop.permute.xlu0 %1529
        %v1532 = vsel %vm1203, %v1528, 0
        %v1535 = vsel %vm1203, %v1530, 0
        %1537 = vmatprep.subr.bf16.mxu0 0
        %1538 = vmatpush1.bf16.xpose.msra.mxu0 %v1535
        %1539 = vmatprep.subr.bf16.mxu0 0
        %1540 = vmatpush1.bf16.xpose.msra.mxu0 0
        %1541 = vmatprep.subr.bf16.mxu0 0
        %1542 = vmatpush1.bf16.xpose.msra.mxu0 0
        %1543 = vmatprep.subr.bf16.mxu0 0
        %1544 = vmatpush1.bf16.xpose.msra.mxu0 0
        %1545 = vmatprep.subr.bf16.mxu0 0
        %1546 = vmatpush1.bf16.xpose.msra.mxu0 0
        %1547 = vmatprep.subr.bf16.mxu0 0
        %1548 = vmatpush1.bf16.xpose.msra.mxu0 0
        %1549 = vmatprep.subr.bf16.mxu0 0
        %1550 = vmatpush1.bf16.xpose.msra.mxu0 0
        %1551 = vmatprep.subr.bf16.mxu0 0
        %1552 = vmatpush1.bf16.xpose.msra.mxu0 0
        %1553 = vmatprep.subr.bf16.mxu0 0
        %1554 = vmatpush1.bf16.xpose.msra.mxu0 0
        %1555 = vmatprep.subr.bf16.mxu0 0
        %1556 = vmatpush1.bf16.xpose.msra.mxu0 0
        %1557 = vmatprep.subr.bf16.mxu0 0
        %1558 = vmatpush1.bf16.xpose.msra.mxu0 0
        %1559 = vmatprep.subr.bf16.mxu0 0
        %1560 = vmatpush1.bf16.xpose.msra.mxu0 0
        %1561 = vmatprep.subr.bf16.mxu0 0
        %1562 = vmatpush1.bf16.xpose.msra.mxu0 0
        %1563 = vmatprep.subr.bf16.mxu0 0
        %1564 = vmatpush1.bf16.xpose.msra.mxu0 0
        %1565 = vmatprep.subr.bf16.mxu0 0
        %1566 = vmatpush1.bf16.xpose.msra.mxu0 0
        %1567 = vmatprep.subr.bf16.mxu0 0
        %1568 = vmatpush1.bf16.xpose.msra.mxu0 0
        %1569 = vmatprep.mubr.bf16.mxu0 0
        %1570 = vmatmul.mubr.bf16.gmra.mrb[0].mxu0 %v1532
        %v1571 = vpop.f32.mrb[0].mxu0
        %v1572 = vadd.f32 0.0, %v1571
        %v1573 = vpop.f32.mrb[0].mxu0
        %v1574 = vpop.f32.mrb[0].mxu0
        %v1575 = vpop.f32.mrb[0].mxu0
        %1576 = vdwg.mxu0
        %v1577 = vsel %vm1250, %v1572, -inf
        %1578 = vmax.xlane.f32.xlu0 %v1577
        %v1579 = vpop.xlane.xlu0 %1578
        %v1580 = vsub.f32 %v1572, %v1579
        %v1581 = vmul.f32 %v1580, 1.442695
        %v1582 = vpow.pop %v1581
        %v1583 = vsel %vm1250, %v1582, 0.0
        %1584 = vadd.xlane.f32.xlu0 %v1583
        %v1585 = vpop.xlane.xlu0 %1584
        %v1586 = vrcp.pop %v1585
        %v1587 = vmul.f32 %v1582, %v1586
        %v1588 = vpack.c.bf16 %v1587, %v1587
        %1589 = vrot.lane.b32.xlu0 %v1202, 72
        %v1590 = vpop.permute.xlu0 %1589
        %v1593 = vsel %vm1250, %v1588, 0
        %1595 = vmatprep.subr.bf16.mxu0 0
        %1596 = vmatpush1.bf16.msra.mxu0 %v1590
        %1597 = vmatprep.subr.bf16.mxu0 0
        %1598 = vmatpush1.bf16.msra.mxu0 0
        %1599 = vmatprep.subr.bf16.mxu0 0
        %1600 = vmatpush1.bf16.msra.mxu0 0
        %1601 = vmatprep.subr.bf16.mxu0 0
        %1602 = vmatpush1.bf16.msra.mxu0 0
        %1603 = vmatprep.subr.bf16.mxu0 0
        %1604 = vmatpush1.bf16.msra.mxu0 0
        %1605 = vmatprep.subr.bf16.mxu0 0
        %1606 = vmatpush1.bf16.msra.mxu0 0
        %1607 = vmatprep.subr.bf16.mxu0 0
        %1608 = vmatpush1.bf16.msra.mxu0 0
        %1609 = vmatprep.subr.bf16.mxu0 0
        %1610 = vmatpush1.bf16.msra.mxu0 0
        %1611 = vmatprep.subr.bf16.mxu0 0
        %1612 = vmatpush1.bf16.msra.mxu0 0
        %1613 = vmatprep.subr.bf16.mxu0 0
        %1614 = vmatpush1.bf16.msra.mxu0 0
        %1615 = vmatprep.subr.bf16.mxu0 0
        %1616 = vmatpush1.bf16.msra.mxu0 0
        %1617 = vmatprep.subr.bf16.mxu0 0
        %1618 = vmatpush1.bf16.msra.mxu0 0
        %1619 = vmatprep.subr.bf16.mxu0 0
        %1620 = vmatpush1.bf16.msra.mxu0 0
        %1621 = vmatprep.subr.bf16.mxu0 0
        %1622 = vmatpush1.bf16.msra.mxu0 0
        %1623 = vmatprep.subr.bf16.mxu0 0
        %1624 = vmatpush1.bf16.msra.mxu0 0
        %1625 = vmatprep.subr.bf16.mxu0 0
        %1626 = vmatpush1.bf16.msra.mxu0 0
        %1627 = vmatprep.mubr.bf16.mxu0 0
        %1628 = vmatmul.mubr.bf16.gmra.mrb[0].mxu0 %v1593
        %v1629 = vpop.f32.mrb[0].mxu0
        %v1630 = vadd.f32 0.0, %v1629
        %v1631 = vpop.f32.mrb[0].mxu0
        %v1632 = vpop.f32.mrb[0].mxu0
        %v1633 = vpop.f32.mrb[0].mxu0
        %1634 = vdwg.mxu0
        %1636 = vrot.lane.b32.xlu0 %v1414, 8
        %v1637 = vpop.permute.xlu0 %1636
        %1640 = vrot.lane.b32.xlu0 %v1522, 16
        %v1641 = vpop.permute.xlu0 %1640
        %1644 = vrot.lane.b32.xlu0 %v1630, 24
        %v1645 = vpop.permute.xlu0 %1644
        %v1647 = vsel %vm1203, %v1305, %v1637
        %v1648 = vsel %vm1250, %v1647, %v1641
        %vm1649 = vcmask 195584
        %v1650 = vsel %vm1649, %v1648, %v1645
        %v1651 = vpack.c.bf16 %v1650, %v1650
        %v1652 = vld [vmem:[%s12] sm:$0xf]
        %v1653 = vld [vmem:[%s12 + $0x4] sm:$0xf]
        %v1654 = vld [vmem:[%s12 + $0x8] sm:$0xf]
        %v1655 = vld [vmem:[%s12 + $0xc] sm:$0xf]
        %v1656 = vld [vmem:[#allocation14] sm:$0x1]
        %v1658 = vlaneseq
        %v1659 = vshrl.u32 %v1658, 7
        %v1660 = vsub.s32 0, %v1659
        %v1661 = vrot.slane %v1656, %v1660
        %v1667 = vunpack.c.l.b16 %v1652
        %v1668 = vunpack.c.l.b16 %v1653
        %v1669 = vunpack.c.l.b16 %v1654
        %v1670 = vunpack.c.l.b16 %v1655
        %v1671 = vpack.c.b16 %v1668, %v1667
        %v1672 = vpack.c.b16 %v1670, %v1669
        %v1676 = vsel %vm999, %v1651, 0
        %1678 = vmatprep.subr.bf16.mxu0 0
        %1679 = vmatpush1.bf16.msra.mxu0 %v1671
        %1680 = vmatprep.subr.bf16.mxu0 0
        %1681 = vmatpush1.bf16.msra.mxu0 %v1672
        %1682 = vmatprep.subr.bf16.mxu0 0
        %1683 = vmatpush1.bf16.msra.mxu0 0
        %1684 = vmatprep.subr.bf16.mxu0 0
        %1685 = vmatpush1.bf16.msra.mxu0 0
        %1686 = vmatprep.subr.bf16.mxu0 0
        %1687 = vmatpush1.bf16.msra.mxu0 0
        %1688 = vmatprep.subr.bf16.mxu0 0
        %1689 = vmatpush1.bf16.msra.mxu0 0
        %1690 = vmatprep.subr.bf16.mxu0 0
        %1691 = vmatpush1.bf16.msra.mxu0 0
        %1692 = vmatprep.subr.bf16.mxu0 0
        %1693 = vmatpush1.bf16.msra.mxu0 0
        %1694 = vmatprep.subr.bf16.mxu0 0
        %1695 = vmatpush1.bf16.msra.mxu0 0
        %1696 = vmatprep.subr.bf16.mxu0 0
        %1697 = vmatpush1.bf16.msra.mxu0 0
        %1698 = vmatprep.subr.bf16.mxu0 0
        %1699 = vmatpush1.bf16.msra.mxu0 0
        %1700 = vmatprep.subr.bf16.mxu0 0
        %1701 = vmatpush1.bf16.msra.mxu0 0
        %1702 = vmatprep.subr.bf16.mxu0 0
        %1703 = vmatpush1.bf16.msra.mxu0 0
        %1704 = vmatprep.subr.bf16.mxu0 0
        %1705 = vmatpush1.bf16.msra.mxu0 0
        %1706 = vmatprep.subr.bf16.mxu0 0
        %1707 = vmatpush1.bf16.msra.mxu0 0
        %1708 = vmatprep.subr.bf16.mxu0 0
        %1709 = vmatpush1.bf16.msra.mxu0 0
        %1710 = vmatprep.mubr.bf16.mxu0 0
        %1711 = vmatmul.mubr.bf16.gmra.mrb[0].mxu0 %v1676
        %v1712 = vpop.f32.mrb[0].mxu0
        %v1713 = vadd.f32 %v1661, %v1712
        %v1714 = vpop.f32.mrb[0].mxu0
        %v1715 = vpop.f32.mrb[0].mxu0
        %v1716 = vpop.f32.mrb[0].mxu0
        %1717 = vdwg.mxu0
        %v1718 = vadd.f32 %v996, %v1713
        %v1719 = vsel %vm999, %v1718, 0.0
        %1720 = vadd.xlane.f32.xlu0 %v1719
        %v1721 = vpop.xlane.xlu0 %1720
        %v1722 = vmul.f32 %v1721, %v1006
        %v1723 = vmul.f32 %v1718, %v1718
        %v1724 = vsel %vm999, %v1723, 0.0
        %1725 = vadd.xlane.f32.xlu0 %v1724
        %v1726 = vpop.xlane.xlu0 %1725
        %v1727 = vmul.f32 %v1726, %v1006
        %v1728 = vmul.f32 %v1722, %v1722
        %v1729 = vsub.f32 %v1727, %v1728
        %v1730 = vsub.f32 %v1718, %v1722
        %v1731 = vadd.f32 %v1729, 1e-05
        %v1732 = vrsqrt.pop %v1731
        %v1733 = vmul.f32 %v1730, %v1732
        %v1734 = vld [vmem:[#allocation7] sm:$0x1]
        %v1736 = vlaneseq
        %v1737 = vshrl.u32 %v1736, 7
        %v1738 = vsub.s32 0, %v1737
        %v1739 = vrot.slane %v1734, %v1738
        %v1741 = vmul.f32 %v1733, %v1739
        %v1742 = vld [vmem:[#allocation8] sm:$0x1]
        %v1744 = vlaneseq
        %v1745 = vshrl.u32 %v1744, 7
        %v1746 = vsub.s32 0, %v1745
        %v1747 = vrot.slane %v1742, %v1746
        %v1749 = vadd.f32 %v1741, %v1747
        %v1750 = vpack.c.bf16 %v1749, %v1749
        %v1751 = vld [vmem:[#allocation16] sm:$0xf]
        %v1752 = vld [vmem:[#allocation16 + $0x4] sm:$0xf]
        %v1753 = vld [vmem:[#allocation16 + $0x8] sm:$0xf]
        %v1754 = vld [vmem:[#allocation16 + $0xc] sm:$0xf]
        %v1755 = vld [vmem:[#allocation17] sm:$0x1]
        %v1757 = vlaneseq
        %v1758 = vshrl.u32 %v1757, 7
        %v1759 = vsub.s32 0, %v1758
        %v1760 = vrot.slane %v1755, %v1759
        %v1766 = vunpack.c.l.b16 %v1751
        %v1767 = vunpack.c.l.b16 %v1752
        %v1768 = vunpack.c.l.b16 %v1753
        %v1769 = vunpack.c.l.b16 %v1754
        %v1770 = vpack.c.b16 %v1767, %v1766
        %v1771 = vpack.c.b16 %v1769, %v1768
        %v1775 = vsel %vm999, %v1750, 0
        %1777 = vmatprep.subr.bf16.mxu0 0
        %1778 = vmatpush1.bf16.msra.mxu0 %v1770
        %1779 = vmatprep.subr.bf16.mxu0 0
        %1780 = vmatpush1.bf16.msra.mxu0 %v1771
        %1781 = vmatprep.subr.bf16.mxu0 0
        %1782 = vmatpush1.bf16.msra.mxu0 0
        %1783 = vmatprep.subr.bf16.mxu0 0
        %1784 = vmatpush1.bf16.msra.mxu0 0
        %1785 = vmatprep.subr.bf16.mxu0 0
        %1786 = vmatpush1.bf16.msra.mxu0 0
        %1787 = vmatprep.subr.bf16.mxu0 0
        %1788 = vmatpush1.bf16.msra.mxu0 0
        %1789 = vmatprep.subr.bf16.mxu0 0
        %1790 = vmatpush1.bf16.msra.mxu0 0
        %1791 = vmatprep.subr.bf16.mxu0 0
        %1792 = vmatpush1.bf16.msra.mxu0 0
        %1793 = vmatprep.subr.bf16.mxu0 0
        %1794 = vmatpush1.bf16.msra.mxu0 0
        %1795 = vmatprep.subr.bf16.mxu0 0
        %1796 = vmatpush1.bf16.msra.mxu0 0
        %1797 = vmatprep.subr.bf16.mxu0 0
        %1798 = vmatpush1.bf16.msra.mxu0 0
        %1799 = vmatprep.subr.bf16.mxu0 0
        %1800 = vmatpush1.bf16.msra.mxu0 0
        %1801 = vmatprep.subr.bf16.mxu0 0
        %1802 = vmatpush1.bf16.msra.mxu0 0
        %1803 = vmatprep.subr.bf16.mxu0 0
        %1804 = vmatpush1.bf16.msra.mxu0 0
        %1805 = vmatprep.subr.bf16.mxu0 0
        %1806 = vmatpush1.bf16.msra.mxu0 0
        %1807 = vmatprep.subr.bf16.mxu0 0
        %1808 = vmatpush1.bf16.msra.mxu0 0
        %1809 = vmatprep.mubr.bf16.mxu0 0
        %1810 = vmatmul.mubr.bf16.gmra.mrb[0].mxu0 %v1775
        %v1811 = vpop.f32.mrb[0].mxu0
        %v1812 = vadd.f32 %v1760, %v1811
        %v1813 = vpop.f32.mrb[0].mxu0
        %v1814 = vpop.f32.mrb[0].mxu0
        %v1815 = vpop.f32.mrb[0].mxu0
        %1816 = vdwg.mxu0
        %v1817 = vpack.c.bf16 %v1812, %v1812
        %v1818 = vpack.c.bf16 %v998, %v997
        %v1819 = vld [vmem:[#allocation19] sm:$0xf]
        %v1820 = vld [vmem:[#allocation19 + $0x4] sm:$0xf]
        %v1821 = vld [vmem:[#allocation19 + $0x8] sm:$0xf]
        %v1822 = vld [vmem:[#allocation19 + $0xc] sm:$0xf]
        %v1823 = vld [vmem:[#allocation20] sm:$0x1]
        %v1825 = vlaneseq
        %v1826 = vshrl.u32 %v1825, 7
        %v1827 = vsub.s32 0, %v1826
        %v1828 = vrot.slane %v1823, %v1827
        %v1834 = vunpack.c.l.b16 %v1819
        %v1835 = vunpack.c.l.b16 %v1820
        %v1836 = vunpack.c.l.b16 %v1821
        %v1837 = vunpack.c.l.b16 %v1822
        %v1838 = vpack.c.b16 %v1835, %v1834
        %v1839 = vpack.c.b16 %v1837, %v1836
        %v1843 = vsel %vm999, %v1818, 0
        %1845 = vmatprep.subr.bf16.mxu0 0
        %1846 = vmatpush1.bf16.msra.mxu0 %v1838
        %1847 = vmatprep.subr.bf16.mxu0 0
        %1848 = vmatpush1.bf16.msra.mxu0 %v1839
        %1849 = vmatprep.subr.bf16.mxu0 0
        %1850 = vmatpush1.bf16.msra.mxu0 0
        %1851 = vmatprep.subr.bf16.mxu0 0
        %1852 = vmatpush1.bf16.msra.mxu0 0
        %1853 = vmatprep.subr.bf16.mxu0 0
        %1854 = vmatpush1.bf16.msra.mxu0 0
        %1855 = vmatprep.subr.bf16.mxu0 0
        %1856 = vmatpush1.bf16.msra.mxu0 0
        %1857 = vmatprep.subr.bf16.mxu0 0
        %1858 = vmatpush1.bf16.msra.mxu0 0
        %1859 = vmatprep.subr.bf16.mxu0 0
        %1860 = vmatpush1.bf16.msra.mxu0 0
        %1861 = vmatprep.subr.bf16.mxu0 0
        %1862 = vmatpush1.bf16.msra.mxu0 0
        %1863 = vmatprep.subr.bf16.mxu0 0
        %1864 = vmatpush1.bf16.msra.mxu0 0
        %1865 = vmatprep.subr.bf16.mxu0 0
        %1866 = vmatpush1.bf16.msra.mxu0 0
        %1867 = vmatprep.subr.bf16.mxu0 0
        %1868 = vmatpush1.bf16.msra.mxu0 0
        %1869 = vmatprep.subr.bf16.mxu0 0
        %1870 = vmatpush1.bf16.msra.mxu0 0
        %1871 = vmatprep.subr.bf16.mxu0 0
        %1872 = vmatpush1.bf16.msra.mxu0 0
        %1873 = vmatprep.subr.bf16.mxu0 0
        %1874 = vmatpush1.bf16.msra.mxu0 0
        %1875 = vmatprep.subr.bf16.mxu0 0
        %1876 = vmatpush1.bf16.msra.mxu0 0
        %1877 = vmatprep.mubr.bf16.mxu0 0
        %1878 = vmatmul.mubr.bf16.gmra.mrb[0].mxu0 %v1843
        %v1879 = vpop.f32.mrb[0].mxu0
        %v1880 = vadd.f32 %v1828, %v1879
        %v1881 = vpop.f32.mrb[0].mxu0
        %v1882 = vpop.f32.mrb[0].mxu0
        %v1883 = vadd.f32 %v1828, %v1882
        %v1884 = vpop.f32.mrb[0].mxu0
        %1885 = vdwg.mxu0
        %v1886 = vpack.c.bf16 %v1883, %v1880
        %v1888 = vsel %vm1203, %v1817, 0
        %v1891 = vsel %vm1203, %v1886, 0
        %1893 = vmatprep.subr.bf16.mxu0 0
        %1894 = vmatpush1.bf16.xpose.msra.mxu0 %v1891
        %1895 = vmatprep.subr.bf16.mxu0 0
        %1896 = vmatpush1.bf16.xpose.msra.mxu0 0
        %1897 = vmatprep.subr.bf16.mxu0 0
        %1898 = vmatpush1.bf16.xpose.msra.mxu0 0
        %1899 = vmatprep.subr.bf16.mxu0 0
        %1900 = vmatpush1.bf16.xpose.msra.mxu0 0
        %1901 = vmatprep.subr.bf16.mxu0 0
        %1902 = vmatpush1.bf16.xpose.msra.mxu0 0
        %1903 = vmatprep.subr.bf16.mxu0 0
        %1904 = vmatpush1.bf16.xpose.msra.mxu0 0
        %1905 = vmatprep.subr.bf16.mxu0 0
        %1906 = vmatpush1.bf16.xpose.msra.mxu0 0
        %1907 = vmatprep.subr.bf16.mxu0 0
        %1908 = vmatpush1.bf16.xpose.msra.mxu0 0
        %1909 = vmatprep.subr.bf16.mxu0 0
        %1910 = vmatpush1.bf16.xpose.msra.mxu0 0
        %1911 = vmatprep.subr.bf16.mxu0 0
        %1912 = vmatpush1.bf16.xpose.msra.mxu0 0
        %1913 = vmatprep.subr.bf16.mxu0 0
        %1914 = vmatpush1.bf16.xpose.msra.mxu0 0
        %1915 = vmatprep.subr.bf16.mxu0 0
        %1916 = vmatpush1.bf16.xpose.msra.mxu0 0
        %1917 = vmatprep.subr.bf16.mxu0 0
        %1918 = vmatpush1.bf16.xpose.msra.mxu0 0
        %1919 = vmatprep.subr.bf16.mxu0 0
        %1920 = vmatpush1.bf16.xpose.msra.mxu0 0
        %1921 = vmatprep.subr.bf16.mxu0 0
        %1922 = vmatpush1.bf16.xpose.msra.mxu0 0
        %1923 = vmatprep.subr.bf16.mxu0 0
        %1924 = vmatpush1.bf16.xpose.msra.mxu0 0
        %1925 = vmatprep.mubr.bf16.mxu0 0
        %1926 = vmatmul.mubr.bf16.gmra.mrb[0].mxu0 %v1888
        %v1927 = vpop.f32.mrb[0].mxu0
        %v1928 = vadd.f32 0.0, %v1927
        %v1929 = vpop.f32.mrb[0].mxu0
        %v1930 = vpop.f32.mrb[0].mxu0
        %v1931 = vpop.f32.mrb[0].mxu0
        %1932 = vdwg.mxu0
        %v1933 = vsel %vm1250, %v1928, -inf
        %1934 = vmax.xlane.f32.xlu0 %v1933
        %v1935 = vpop.xlane.xlu0 %1934
        %v1936 = vsub.f32 %v1928, %v1935
        %v1937 = vmul.f32 %v1936, 1.442695
        %v1938 = vpow.pop %v1937
        %v1939 = vsel %vm1250, %v1938, 0.0
        %1940 = vadd.xlane.f32.xlu0 %v1939
        %v1941 = vpop.xlane.xlu0 %1940
        %v1942 = vrcp.pop %v1941
        %v1943 = vmul.f32 %v1938, %v1942
        %v1944 = vpack.c.bf16 %v1943, %v1943
        %1946 = vrot.lane.b32.xlu0 %v1886, 96
        %v1947 = vpop.permute.xlu0 %1946
        %v1950 = vsel %vm1250, %v1944, 0
        %1952 = vmatprep.subr.bf16.mxu0 0
        %1953 = vmatpush1.bf16.msra.mxu0 %v1947
        %1954 = vmatprep.subr.bf16.mxu0 0
        %1955 = vmatpush1.bf16.msra.mxu0 0
        %1956 = vmatprep.subr.bf16.mxu0 0
        %1957 = vmatpush1.bf16.msra.mxu0 0
        %1958 = vmatprep.subr.bf16.mxu0 0
        %1959 = vmatpush1.bf16.msra.mxu0 0
        %1960 = vmatprep.subr.bf16.mxu0 0
        %1961 = vmatpush1.bf16.msra.mxu0 0
        %1962 = vmatprep.subr.bf16.mxu0 0
        %1963 = vmatpush1.bf16.msra.mxu0 0
        %1964 = vmatprep.subr.bf16.mxu0 0
        %1965 = vmatpush1.bf16.msra.mxu0 0
        %1966 = vmatprep.subr.bf16.mxu0 0
        %1967 = vmatpush1.bf16.msra.mxu0 0
        %1968 = vmatprep.subr.bf16.mxu0 0
        %1969 = vmatpush1.bf16.msra.mxu0 0
        %1970 = vmatprep.subr.bf16.mxu0 0
        %1971 = vmatpush1.bf16.msra.mxu0 0
        %1972 = vmatprep.subr.bf16.mxu0 0
        %1973 = vmatpush1.bf16.msra.mxu0 0
        %1974 = vmatprep.subr.bf16.mxu0 0
        %1975 = vmatpush1.bf16.msra.mxu0 0
        %1976 = vmatprep.subr.bf16.mxu0 0
        %1977 = vmatpush1.bf16.msra.mxu0 0
        %1978 = vmatprep.subr.bf16.mxu0 0
        %1979 = vmatpush1.bf16.msra.mxu0 0
        %1980 = vmatprep.subr.bf16.mxu0 0
        %1981 = vmatpush1.bf16.msra.mxu0 0
        %1982 = vmatprep.subr.bf16.mxu0 0
        %1983 = vmatpush1.bf16.msra.mxu0 0
        %1984 = vmatprep.mubr.bf16.mxu0 0
        %1985 = vmatmul.mubr.bf16.gmra.mrb[0].mxu0 %v1950
        %v1986 = vpop.f32.mrb[0].mxu0
        %v1987 = vadd.f32 0.0, %v1986
        %v1988 = vpop.f32.mrb[0].mxu0
        %v1989 = vpop.f32.mrb[0].mxu0
        %v1990 = vpop.f32.mrb[0].mxu0
        %1991 = vdwg.mxu0
        %1993 = vrot.lane.b32.xlu0 %v1817, 120
        %v1994 = vpop.permute.xlu0 %1993
        %1995 = vrot.lane.b32.xlu0 %v1886, 120
        %v1996 = vpop.permute.xlu0 %1995
        %v1998 = vsel %vm1203, %v1994, 0
        %v2001 = vsel %vm1203, %v1996, 0
        %2003 = vmatprep.subr.bf16.mxu0 0
        %2004 = vmatpush1.bf16.xpose.msra.mxu0 %v2001
        %2005 = vmatprep.subr.bf16.mxu0 0
        %2006 = vmatpush1.bf16.xpose.msra.mxu0 0
        %2007 = vmatprep.subr.bf16.mxu0 0
        %2008 = vmatpush1.bf16.xpose.msra.mxu0 0
        %2009 = vmatprep.subr.bf16.mxu0 0
        %2010 = vmatpush1.bf16.xpose.msra.mxu0 0
        %2011 = vmatprep.subr.bf16.mxu0 0
        %2012 = vmatpush1.bf16.xpose.msra.mxu0 0
        %2013 = vmatprep.subr.bf16.mxu0 0
        %2014 = vmatpush1.bf16.xpose.msra.mxu0 0
        %2015 = vmatprep.subr.bf16.mxu0 0
        %2016 = vmatpush1.bf16.xpose.msra.mxu0 0
        %2017 = vmatprep.subr.bf16.mxu0 0
        %2018 = vmatpush1.bf16.xpose.msra.mxu0 0
        %2019 = vmatprep.subr.bf16.mxu0 0
        %2020 = vmatpush1.bf16.xpose.msra.mxu0 0
        %2021 = vmatprep.subr.bf16.mxu0 0
        %2022 = vmatpush1.bf16.xpose.msra.mxu0 0
        %2023 = vmatprep.subr.bf16.mxu0 0
        %2024 = vmatpush1.bf16.xpose.msra.mxu0 0
        %2025 = vmatprep.subr.bf16.mxu0 0
        %2026 = vmatpush1.bf16.xpose.msra.mxu0 0
        %2027 = vmatprep.subr.bf16.mxu0 0
        %2028 = vmatpush1.bf16.xpose.msra.mxu0 0
        %2029 = vmatprep.subr.bf16.mxu0 0
        %2030 = vmatpush1.bf16.xpose.msra.mxu0 0
        %2031 = vmatprep.subr.bf16.mxu0 0
        %2032 = vmatpush1.bf16.xpose.msra.mxu0 0
        %2033 = vmatprep.subr.bf16.mxu0 0
        %2034 = vmatpush1.bf16.xpose.msra.mxu0 0
        %2035 = vmatprep.mubr.bf16.mxu0 0
        %2036 = vmatmul.mubr.bf16.gmra.mrb[0].mxu0 %v1998
        %v2037 = vpop.f32.mrb[0].mxu0
        %v2038 = vadd.f32 0.0, %v2037
        %v2039 = vpop.f32.mrb[0].mxu0
        %v2040 = vpop.f32.mrb[0].mxu0
        %v2041 = vpop.f32.mrb[0].mxu0
        %2042 = vdwg.mxu0
        %v2043 = vsel %vm1250, %v2038, -inf
        %2044 = vmax.xlane.f32.xlu0 %v2043
        %v2045 = vpop.xlane.xlu0 %2044
        %v2046 = vsub.f32 %v2038, %v2045
        %v2047 = vmul.f32 %v2046, 1.442695
        %v2048 = vpow.pop %v2047
        %v2049 = vsel %vm1250, %v2048, 0.0
        %2050 = vadd.xlane.f32.xlu0 %v2049
        %v2051 = vpop.xlane.xlu0 %2050
        %v2052 = vrcp.pop %v2051
        %v2053 = vmul.f32 %v2048, %v2052
        %v2054 = vpack.c.bf16 %v2053, %v2053
        %2055 = vrot.lane.b32.xlu0 %v1886, 88
        %v2056 = vpop.permute.xlu0 %2055
        %v2059 = vsel %vm1250, %v2054, 0
        %2061 = vmatprep.subr.bf16.mxu0 0
        %2062 = vmatpush1.bf16.msra.mxu0 %v2056
        %2063 = vmatprep.subr.bf16.mxu0 0
        %2064 = vmatpush1.bf16.msra.mxu0 0
        %2065 = vmatprep.subr.bf16.mxu0 0
        %2066 = vmatpush1.bf16.msra.mxu0 0
        %2067 = vmatprep.subr.bf16.mxu0 0
        %2068 = vmatpush1.bf16.msra.mxu0 0
        %2069 = vmatprep.subr.bf16.mxu0 0
        %2070 = vmatpush1.bf16.msra.mxu0 0
        %2071 = vmatprep.subr.bf16.mxu0 0
        %2072 = vmatpush1.bf16.msra.mxu0 0
        %2073 = vmatprep.subr.bf16.mxu0 0
        %2074 = vmatpush1.bf16.msra.mxu0 0
        %2075 = vmatprep.subr.bf16.mxu0 0
        %2076 = vmatpush1.bf16.msra.mxu0 0
        %2077 = vmatprep.subr.bf16.mxu0 0
        %2078 = vmatpush1.bf16.msra.mxu0 0
        %2079 = vmatprep.subr.bf16.mxu0 0
        %2080 = vmatpush1.bf16.msra.mxu0 0
        %2081 = vmatprep.subr.bf16.mxu0 0
        %2082 = vmatpush1.bf16.msra.mxu0 0
        %2083 = vmatprep.subr.bf16.mxu0 0
        %2084 = vmatpush1.bf16.msra.mxu0 0
        %2085 = vmatprep.subr.bf16.mxu0 0
        %2086 = vmatpush1.bf16.msra.mxu0 0
        %2087 = vmatprep.subr.bf16.mxu0 0
        %2088 = vmatpush1.bf16.msra.mxu0 0
        %2089 = vmatprep.subr.bf16.mxu0 0
        %2090 = vmatpush1.bf16.msra.mxu0 0
        %2091 = vmatprep.subr.bf16.mxu0 0
        %2092 = vmatpush1.bf16.msra.mxu0 0
        %2093 = vmatprep.mubr.bf16.mxu0 0
        %2094 = vmatmul.mubr.bf16.gmra.mrb[0].mxu0 %v2059
        %v2095 = vpop.f32.mrb[0].mxu0
        %v2096 = vadd.f32 0.0, %v2095
        %v2097 = vpop.f32.mrb[0].mxu0
        %v2098 = vpop.f32.mrb[0].mxu0
        %v2099 = vpop.f32.mrb[0].mxu0
        %2100 = vdwg.mxu0
        %2101 = vrot.lane.b32.xlu0 %v1817, 112
        %v2102 = vpop.permute.xlu0 %2101
        %2103 = vrot.lane.b32.xlu0 %v1886, 112
        %v2104 = vpop.permute.xlu0 %2103
        %v2106 = vsel %vm1203, %v2102, 0
        %v2109 = vsel %vm1203, %v2104, 0
        %2111 = vmatprep.subr.bf16.mxu0 0
        %2112 = vmatpush1.bf16.xpose.msra.mxu0 %v2109
        %2113 = vmatprep.subr.bf16.mxu0 0
        %2114 = vmatpush1.bf16.xpose.msra.mxu0 0
        %2115 = vmatprep.subr.bf16.mxu0 0
        %2116 = vmatpush1.bf16.xpose.msra.mxu0 0
        %2117 = vmatprep.subr.bf16.mxu0 0
        %2118 = vmatpush1.bf16.xpose.msra.mxu0 0
        %2119 = vmatprep.subr.bf16.mxu0 0
        %2120 = vmatpush1.bf16.xpose.msra.mxu0 0
        %2121 = vmatprep.subr.bf16.mxu0 0
        %2122 = vmatpush1.bf16.xpose.msra.mxu0 0
        %2123 = vmatprep.subr.bf16.mxu0 0
        %2124 = vmatpush1.bf16.xpose.msra.mxu0 0
        %2125 = vmatprep.subr.bf16.mxu0 0
        %2126 = vmatpush1.bf16.xpose.msra.mxu0 0
        %2127 = vmatprep.subr.bf16.mxu0 0
        %2128 = vmatpush1.bf16.xpose.msra.mxu0 0
        %2129 = vmatprep.subr.bf16.mxu0 0
        %2130 = vmatpush1.bf16.xpose.msra.mxu0 0
        %2131 = vmatprep.subr.bf16.mxu0 0
        %2132 = vmatpush1.bf16.xpose.msra.mxu0 0
        %2133 = vmatprep.subr.bf16.mxu0 0
        %2134 = vmatpush1.bf16.xpose.msra.mxu0 0
        %2135 = vmatprep.subr.bf16.mxu0 0
        %2136 = vmatpush1.bf16.xpose.msra.mxu0 0
        %2137 = vmatprep.subr.bf16.mxu0 0
        %2138 = vmatpush1.bf16.xpose.msra.mxu0 0
        %2139 = vmatprep.subr.bf16.mxu0 0
        %2140 = vmatpush1.bf16.xpose.msra.mxu0 0
        %2141 = vmatprep.subr.bf16.mxu0 0
        %2142 = vmatpush1.bf16.xpose.msra.mxu0 0
        %2143 = vmatprep.mubr.bf16.mxu0 0
        %2144 = vmatmul.mubr.bf16.gmra.mrb[0].mxu0 %v2106
        %v2145 = vpop.f32.mrb[0].mxu0
        %v2146 = vadd.f32 0.0, %v2145
        %v2147 = vpop.f32.mrb[0].mxu0
        %v2148 = vpop.f32.mrb[0].mxu0
        %v2149 = vpop.f32.mrb[0].mxu0
        %2150 = vdwg.mxu0
        %v2151 = vsel %vm1250, %v2146, -inf
        %2152 = vmax.xlane.f32.xlu0 %v2151
        %v2153 = vpop.xlane.xlu0 %2152
        %v2154 = vsub.f32 %v2146, %v2153
        %v2155 = vmul.f32 %v2154, 1.442695
        %v2156 = vpow.pop %v2155
        %v2157 = vsel %vm1250, %v2156, 0.0
        %2158 = vadd.xlane.f32.xlu0 %v2157
        %v2159 = vpop.xlane.xlu0 %2158
        %v2160 = vrcp.pop %v2159
        %v2161 = vmul.f32 %v2156, %v2160
        %v2162 = vpack.c.bf16 %v2161, %v2161
        %2163 = vrot.lane.b32.xlu0 %v1886, 80
        %v2164 = vpop.permute.xlu0 %2163
        %v2167 = vsel %vm1250, %v2162, 0
        %2169 = vmatprep.subr.bf16.mxu0 0
        %2170 = vmatpush1.bf16.msra.mxu0 %v2164
        %2171 = vmatprep.subr.bf16.mxu0 0
        %2172 = vmatpush1.bf16.msra.mxu0 0
        %2173 = vmatprep.subr.bf16.mxu0 0
        %2174 = vmatpush1.bf16.msra.mxu0 0
        %2175 = vmatprep.subr.bf16.mxu0 0
        %2176 = vmatpush1.bf16.msra.mxu0 0
        %2177 = vmatprep.subr.bf16.mxu0 0
        %2178 = vmatpush1.bf16.msra.mxu0 0
        %2179 = vmatprep.subr.bf16.mxu0 0
        %2180 = vmatpush1.bf16.msra.mxu0 0
        %2181 = vmatprep.subr.bf16.mxu0 0
        %2182 = vmatpush1.bf16.msra.mxu0 0
        %2183 = vmatprep.subr.bf16.mxu0 0
        %2184 = vmatpush1.bf16.msra.mxu0 0
        %2185 = vmatprep.subr.bf16.mxu0 0
        %2186 = vmatpush1.bf16.msra.mxu0 0
        %2187 = vmatprep.subr.bf16.mxu0 0
        %2188 = vmatpush1.bf16.msra.mxu0 0
        %2189 = vmatprep.subr.bf16.mxu0 0
        %2190 = vmatpush1.bf16.msra.mxu0 0
        %2191 = vmatprep.subr.bf16.mxu0 0
        %2192 = vmatpush1.bf16.msra.mxu0 0
        %2193 = vmatprep.subr.bf16.mxu0 0
        %2194 = vmatpush1.bf16.msra.mxu0 0
        %2195 = vmatprep.subr.bf16.mxu0 0
        %2196 = vmatpush1.bf16.msra.mxu0 0
        %2197 = vmatprep.subr.bf16.mxu0 0
        %2198 = vmatpush1.bf16.msra.mxu0 0
        %2199 = vmatprep.subr.bf16.mxu0 0
        %2200 = vmatpush1.bf16.msra.mxu0 0
        %2201 = vmatprep.mubr.bf16.mxu0 0
        %2202 = vmatmul.mubr.bf16.gmra.mrb[0].mxu0 %v2167
        %v2203 = vpop.f32.mrb[0].mxu0
        %v2204 = vadd.f32 0.0, %v2203
        %v2205 = vpop.f32.mrb[0].mxu0
        %v2206 = vpop.f32.mrb[0].mxu0
        %v2207 = vpop.f32.mrb[0].mxu0
        %2208 = vdwg.mxu0
        %2209 = vrot.lane.b32.xlu0 %v1817, 104
        %v2210 = vpop.permute.xlu0 %2209
        %2211 = vrot.lane.b32.xlu0 %v1886, 104
        %v2212 = vpop.permute.xlu0 %2211
        %v2214 = vsel %vm1203, %v2210, 0
        %v2217 = vsel %vm1203, %v2212, 0
        %2219 = vmatprep.subr.bf16.mxu0 0
        %2220 = vmatpush1.bf16.xpose.msra.mxu0 %v2217
        %2221 = vmatprep.subr.bf16.mxu0 0
        %2222 = vmatpush1.bf16.xpose.msra.mxu0 0
        %2223 = vmatprep.subr.bf16.mxu0 0
        %2224 = vmatpush1.bf16.xpose.msra.mxu0 0
        %2225 = vmatprep.subr.bf16.mxu0 0
        %2226 = vmatpush1.bf16.xpose.msra.mxu0 0
        %2227 = vmatprep.subr.bf16.mxu0 0
        %2228 = vmatpush1.bf16.xpose.msra.mxu0 0
        %2229 = vmatprep.subr.bf16.mxu0 0
        %2230 = vmatpush1.bf16.xpose.msra.mxu0 0
        %2231 = vmatprep.subr.bf16.mxu0 0
        %2232 = vmatpush1.bf16.xpose.msra.mxu0 0
        %2233 = vmatprep.subr.bf16.mxu0 0
        %2234 = vmatpush1.bf16.xpose.msra.mxu0 0
        %2235 = vmatprep.subr.bf16.mxu0 0
        %2236 = vmatpush1.bf16.xpose.msra.mxu0 0
        %2237 = vmatprep.subr.bf16.mxu0 0
        %2238 = vmatpush1.bf16.xpose.msra.mxu0 0
        %2239 = vmatprep.subr.bf16.mxu0 0
        %2240 = vmatpush1.bf16.xpose.msra.mxu0 0
        %2241 = vmatprep.subr.bf16.mxu0 0
        %2242 = vmatpush1.bf16.xpose.msra.mxu0 0
        %2243 = vmatprep.subr.bf16.mxu0 0
        %2244 = vmatpush1.bf16.xpose.msra.mxu0 0
        %2245 = vmatprep.subr.bf16.mxu0 0
        %2246 = vmatpush1.bf16.xpose.msra.mxu0 0
        %2247 = vmatprep.subr.bf16.mxu0 0
        %2248 = vmatpush1.bf16.xpose.msra.mxu0 0
        %2249 = vmatprep.subr.bf16.mxu0 0
        %2250 = vmatpush1.bf16.xpose.msra.mxu0 0
        %2251 = vmatprep.mubr.bf16.mxu0 0
        %2252 = vmatmul.mubr.bf16.gmra.mrb[0].mxu0 %v2214
        %v2253 = vpop.f32.mrb[0].mxu0
        %v2254 = vadd.f32 0.0, %v2253
        %v2255 = vpop.f32.mrb[0].mxu0
        %v2256 = vpop.f32.mrb[0].mxu0
        %v2257 = vpop.f32.mrb[0].mxu0
        %2258 = vdwg.mxu0
        %v2259 = vsel %vm1250, %v2254, -inf
        %2260 = vmax.xlane.f32.xlu0 %v2259
        %v2261 = vpop.xlane.xlu0 %2260
        %v2262 = vsub.f32 %v2254, %v2261
        %v2263 = vmul.f32 %v2262, 1.442695
        %v2264 = vpow.pop %v2263
        %v2265 = vsel %vm1250, %v2264, 0.0
        %2266 = vadd.xlane.f32.xlu0 %v2265
        %v2267 = vpop.xlane.xlu0 %2266
        %v2268 = vrcp.pop %v2267
        %v2269 = vmul.f32 %v2264, %v2268
        %v2270 = vpack.c.bf16 %v2269, %v2269
        %2271 = vrot.lane.b32.xlu0 %v1886, 72
        %v2272 = vpop.permute.xlu0 %2271
        %v2275 = vsel %vm1250, %v2270, 0
        %2277 = vmatprep.subr.bf16.mxu0 0
        %2278 = vmatpush1.bf16.msra.mxu0 %v2272
        %2279 = vmatprep.subr.bf16.mxu0 0
        %2280 = vmatpush1.bf16.msra.mxu0 0
        %2281 = vmatprep.subr.bf16.mxu0 0
        %2282 = vmatpush1.bf16.msra.mxu0 0
        %2283 = vmatprep.subr.bf16.mxu0 0
        %2284 = vmatpush1.bf16.msra.mxu0 0
        %2285 = vmatprep.subr.bf16.mxu0 0
        %2286 = vmatpush1.bf16.msra.mxu0 0
        %2287 = vmatprep.subr.bf16.mxu0 0
        %2288 = vmatpush1.bf16.msra.mxu0 0
        %2289 = vmatprep.subr.bf16.mxu0 0
        %2290 = vmatpush1.bf16.msra.mxu0 0
        %2291 = vmatprep.subr.bf16.mxu0 0
        %2292 = vmatpush1.bf16.msra.mxu0 0
        %2293 = vmatprep.subr.bf16.mxu0 0
        %2294 = vmatpush1.bf16.msra.mxu0 0
        %2295 = vmatprep.subr.bf16.mxu0 0
        %2296 = vmatpush1.bf16.msra.mxu0 0
        %2297 = vmatprep.subr.bf16.mxu0 0
        %2298 = vmatpush1.bf16.msra.mxu0 0
        %2299 = vmatprep.subr.bf16.mxu0 0
        %2300 = vmatpush1.bf16.msra.mxu0 0
        %2301 = vmatprep.subr.bf16.mxu0 0
        %2302 = vmatpush1.bf16.msra.mxu0 0
        %2303 = vmatprep.subr.bf16.mxu0 0
        %2304 = vmatpush1.bf16.msra.mxu0 0
        %2305 = vmatprep.subr.bf16.mxu0 0
        %2306 = vmatpush1.bf16.msra.mxu0 0
        %2307 = vmatprep.subr.bf16.mxu0 0
        %2308 = vmatpush1.bf16.msra.mxu0 0
        %2309 = vmatprep.mubr.bf16.mxu0 0
        %2310 = vmatmul.mubr.bf16.gmra.mrb[0].mxu0 %v2275
        %v2311 = vpop.f32.mrb[0].mxu0
        %v2312 = vadd.f32 0.0, %v2311
        %v2313 = vpop.f32.mrb[0].mxu0
        %v2314 = vpop.f32.mrb[0].mxu0
        %v2315 = vpop.f32.mrb[0].mxu0
        %2316 = vdwg.mxu0
        %2318 = vrot.lane.b32.xlu0 %v2096, 8
        %v2319 = vpop.permute.xlu0 %2318
        %2322 = vrot.lane.b32.xlu0 %v2204, 16
        %v2323 = vpop.permute.xlu0 %2322
        %2326 = vrot.lane.b32.xlu0 %v2312, 24
        %v2327 = vpop.permute.xlu0 %2326
        %v2329 = vsel %vm1203, %v1987, %v2319
        %v2330 = vsel %vm1250, %v2329, %v2323
        %v2331 = vsel %vm1649, %v2330, %v2327
        %v2332 = vpack.c.bf16 %v2331, %v2331
        %v2333 = vld [vmem:[#allocation22] sm:$0xf]
        %v2334 = vld [vmem:[#allocation22 + $0x4] sm:$0xf]
        %v2335 = vld [vmem:[#allocation22 + $0x8] sm:$0xf]
        %v2336 = vld [vmem:[#allocation22 + $0xc] sm:$0xf]
        %v2337 = vld [vmem:[#allocation23] sm:$0x1]
        %v2339 = vlaneseq
        %v2340 = vshrl.u32 %v2339, 7
        %v2341 = vsub.s32 0, %v2340
        %v2342 = vrot.slane %v2337, %v2341
        %v2348 = vunpack.c.l.b16 %v2333
        %v2349 = vunpack.c.l.b16 %v2334
        %v2350 = vunpack.c.l.b16 %v2335
        %v2351 = vunpack.c.l.b16 %v2336
        %v2352 = vpack.c.b16 %v2349, %v2348
        %v2353 = vpack.c.b16 %v2351, %v2350
        %v2357 = vsel %vm999, %v2332, 0
        %2359 = vmatprep.subr.bf16.mxu0 0
        %2360 = vmatpush1.bf16.msra.mxu0 %v2352
        %2361 = vmatprep.subr.bf16.mxu0 0
        %2362 = vmatpush1.bf16.msra.mxu0 %v2353
        %2363 = vmatprep.subr.bf16.mxu0 0
        %2364 = vmatpush1.bf16.msra.mxu0 0
        %2365 = vmatprep.subr.bf16.mxu0 0
        %2366 = vmatpush1.bf16.msra.mxu0 0
        %2367 = vmatprep.subr.bf16.mxu0 0
        %2368 = vmatpush1.bf16.msra.mxu0 0
        %2369 = vmatprep.subr.bf16.mxu0 0
        %2370 = vmatpush1.bf16.msra.mxu0 0
        %2371 = vmatprep.subr.bf16.mxu0 0
        %2372 = vmatpush1.bf16.msra.mxu0 0
        %2373 = vmatprep.subr.bf16.mxu0 0
        %2374 = vmatpush1.bf16.msra.mxu0 0
        %2375 = vmatprep.subr.bf16.mxu0 0
        %2376 = vmatpush1.bf16.msra.mxu0 0
        %2377 = vmatprep.subr.bf16.mxu0 0
        %2378 = vmatpush1.bf16.msra.mxu0 0
        %2379 = vmatprep.subr.bf16.mxu0 0
        %2380 = vmatpush1.bf16.msra.mxu0 0
        %2381 = vmatprep.subr.bf16.mxu0 0
        %2382 = vmatpush1.bf16.msra.mxu0 0
        %2383 = vmatprep.subr.bf16.mxu0 0
        %2384 = vmatpush1.bf16.msra.mxu0 0
        %2385 = vmatprep.subr.bf16.mxu0 0
        %2386 = vmatpush1.bf16.msra.mxu0 0
        %2387 = vmatprep.subr.bf16.mxu0 0
        %2388 = vmatpush1.bf16.msra.mxu0 0
        %2389 = vmatprep.subr.bf16.mxu0 0
        %2390 = vmatpush1.bf16.msra.mxu0 0
        %2391 = vmatprep.mubr.bf16.mxu0 0
        %2392 = vmatmul.mubr.bf16.gmra.mrb[0].mxu0 %v2357
        %v2393 = vpop.f32.mrb[0].mxu0
        %v2394 = vadd.f32 %v2342, %v2393
        %v2395 = vpop.f32.mrb[0].mxu0
        %v2396 = vpop.f32.mrb[0].mxu0
        %v2397 = vpop.f32.mrb[0].mxu0
        %2398 = vdwg.mxu0
        %v2399 = vadd.f32 %v1718, %v2394
        %v2400 = vsel %vm999, %v2399, 0.0
        %2401 = vadd.xlane.f32.xlu0 %v2400
        %v2402 = vpop.xlane.xlu0 %2401
        %v2403 = vmul.f32 %v2402, %v1006
        %v2404 = vmul.f32 %v2399, %v2399
        %v2405 = vsel %vm999, %v2404, 0.0
        %2406 = vadd.xlane.f32.xlu0 %v2405
        %v2407 = vpop.xlane.xlu0 %2406
        %v2408 = vmul.f32 %v2407, %v1006
        %v2409 = vmul.f32 %v2403, %v2403
        %v2410 = vsub.f32 %v2408, %v2409
        %v2411 = vsub.f32 %v2399, %v2403
        %v2412 = vadd.f32 %v2410, 1e-05
        %v2413 = vrsqrt.pop %v2412
        %v2414 = vmul.f32 %v2411, %v2413
        %v2415 = vld [vmem:[#allocation10] sm:$0x1]
        %v2417 = vlaneseq
        %v2418 = vshrl.u32 %v2417, 7
        %v2419 = vsub.s32 0, %v2418
        %v2420 = vrot.slane %v2415, %v2419
        %v2422 = vmul.f32 %v2414, %v2420
        %v2423 = vld [vmem:[#allocation11] sm:$0x1]
        %v2425 = vlaneseq
        %v2426 = vshrl.u32 %v2425, 7
        %v2427 = vsub.s32 0, %v2426
        %v2428 = vrot.slane %v2423, %v2427
        %v2430 = vadd.f32 %v2422, %v2428
        %v2431 = vpack.c.bf16 %v2430, %v2430
        %v2432 = vld [vmem:[#allocation25] sm:$0xf]
        %v2433 = vld [vmem:[#allocation25 + $0x4] sm:$0xf]
        %v2434 = vld [vmem:[#allocation25 + $0x8] sm:$0xf]
        %v2435 = vld [vmem:[#allocation25 + $0xc] sm:$0xf]
        %v2436 = vld [vmem:[#allocation26] sm:$0x1]
        %v2438 = vlaneseq
        %v2439 = vshrl.u32 %v2438, 7
        %v2440 = vsub.s32 0, %v2439
        %v2441 = vrot.slane %v2436, %v2440
        %v2447 = vunpack.c.l.b16 %v2432
        %v2448 = vunpack.c.l.b16 %v2433
        %v2449 = vunpack.c.l.b16 %v2434
        %v2450 = vunpack.c.l.b16 %v2435
        %v2451 = vpack.c.b16 %v2448, %v2447
        %v2452 = vpack.c.b16 %v2450, %v2449
        %v2456 = vsel %vm999, %v2431, 0
        %2458 = vmatprep.subr.bf16.mxu0 0
        %2459 = vmatpush1.bf16.msra.mxu0 %v2451
        %2460 = vmatprep.subr.bf16.mxu0 0
        %2461 = vmatpush1.bf16.msra.mxu0 %v2452
        %2462 = vmatprep.subr.bf16.mxu0 0
        %2463 = vmatpush1.bf16.msra.mxu0 0
        %2464 = vmatprep.subr.bf16.mxu0 0
        %2465 = vmatpush1.bf16.msra.mxu0 0
        %2466 = vmatprep.subr.bf16.mxu0 0
        %2467 = vmatpush1.bf16.msra.mxu0 0
        %2468 = vmatprep.subr.bf16.mxu0 0
        %2469 = vmatpush1.bf16.msra.mxu0 0
        %2470 = vmatprep.subr.bf16.mxu0 0
        %2471 = vmatpush1.bf16.msra.mxu0 0
        %2472 = vmatprep.subr.bf16.mxu0 0
        %2473 = vmatpush1.bf16.msra.mxu0 0
        %2474 = vmatprep.subr.bf16.mxu0 0
        %2475 = vmatpush1.bf16.msra.mxu0 0
        %2476 = vmatprep.subr.bf16.mxu0 0
        %2477 = vmatpush1.bf16.msra.mxu0 0
        %2478 = vmatprep.subr.bf16.mxu0 0
        %2479 = vmatpush1.bf16.msra.mxu0 0
        %2480 = vmatprep.subr.bf16.mxu0 0
        %2481 = vmatpush1.bf16.msra.mxu0 0
        %2482 = vmatprep.subr.bf16.mxu0 0
        %2483 = vmatpush1.bf16.msra.mxu0 0
        %2484 = vmatprep.subr.bf16.mxu0 0
        %2485 = vmatpush1.bf16.msra.mxu0 0
        %2486 = vmatprep.subr.bf16.mxu0 0
        %2487 = vmatpush1.bf16.msra.mxu0 0
        %2488 = vmatprep.subr.bf16.mxu0 0
        %2489 = vmatpush1.bf16.msra.mxu0 0
        %2490 = vmatprep.mubr.bf16.mxu0 0
        %2491 = vmatmul.mubr.bf16.gmra.mrb[0].mxu0 %v2456
        %v2492 = vpop.f32.mrb[0].mxu0
        %v2493 = vadd.f32 %v2441, %v2492
        %v2494 = vpop.f32.mrb[0].mxu0
        %v2495 = vpop.f32.mrb[0].mxu0
        %v2496 = vpop.f32.mrb[0].mxu0
        %2497 = vdwg.mxu0
        %v2498 = vmax.f32 %v2493, 0.0
        %v2499 = vpack.c.bf16 %v2498, %v2498
        %v2500 = vld [vmem:[%s22] sm:$0xf]
        %v2501 = vld [vmem:[%s22 + $0x4] sm:$0xf]
        %v2502 = vld [vmem:[%s22 + $0x8] sm:$0xf]
        %v2503 = vld [vmem:[%s22 + $0xc] sm:$0xf]
        %v2504 = vld [vmem:[%s22 + $0x10] sm:$0xf]
        %v2505 = vld [vmem:[%s22 + $0x14] sm:$0xf]
        %v2506 = vld [vmem:[%s22 + $0x18] sm:$0xf]
        %v2507 = vld [vmem:[%s22 + $0x1c] sm:$0xf]
        %v2508 = vld [vmem:[#allocation28] sm:$0x1]
        %v2510 = vlaneseq
        %v2511 = vshrl.u32 %v2510, 7
        %v2512 = vsub.s32 0, %v2511
        %v2513 = vrot.slane %v2508, %v2512
        %v2523 = vunpack.c.l.b16 %v2500
        %v2524 = vunpack.c.l.b16 %v2501
        %v2525 = vunpack.c.l.b16 %v2502
        %v2526 = vunpack.c.l.b16 %v2503
        %v2527 = vunpack.c.l.b16 %v2504
        %v2528 = vunpack.c.l.b16 %v2505
        %v2529 = vunpack.c.l.b16 %v2506
        %v2530 = vunpack.c.l.b16 %v2507
        %v2531 = vpack.c.b16 %v2524, %v2523
        %v2532 = vpack.c.b16 %v2526, %v2525
        %v2533 = vpack.c.b16 %v2528, %v2527
        %v2534 = vpack.c.b16 %v2530, %v2529
        %vm2539 = vcmask 523264
        %v2541 = vsel %vm2539, %v2499, 0
        %2543 = vmatprep.subr.bf16.mxu0 0
        %2544 = vmatpush1.bf16.msra.mxu0 %v2531
        %2545 = vmatprep.subr.bf16.mxu0 0
        %2546 = vmatpush1.bf16.msra.mxu0 %v2532
        %2547 = vmatprep.subr.bf16.mxu0 0
        %2548 = vmatpush1.bf16.msra.mxu0 %v2533
        %2549 = vmatprep.subr.bf16.mxu0 0
        %2550 = vmatpush1.bf16.msra.mxu0 %v2534
        %2551 = vmatprep.subr.bf16.mxu0 0
        %2552 = vmatpush1.bf16.msra.mxu0 0
        %2553 = vmatprep.subr.bf16.mxu0 0
        %2554 = vmatpush1.bf16.msra.mxu0 0
        %2555 = vmatprep.subr.bf16.mxu0 0
        %2556 = vmatpush1.bf16.msra.mxu0 0
        %2557 = vmatprep.subr.bf16.mxu0 0
        %2558 = vmatpush1.bf16.msra.mxu0 0
        %2559 = vmatprep.subr.bf16.mxu0 0
        %2560 = vmatpush1.bf16.msra.mxu0 0
        %2561 = vmatprep.subr.bf16.mxu0 0
        %2562 = vmatpush1.bf16.msra.mxu0 0
        %2563 = vmatprep.subr.bf16.mxu0 0
        %2564 = vmatpush1.bf16.msra.mxu0 0
        %2565 = vmatprep.subr.bf16.mxu0 0
        %2566 = vmatpush1.bf16.msra.mxu0 0
        %2567 = vmatprep.subr.bf16.mxu0 0
        %2568 = vmatpush1.bf16.msra.mxu0 0
        %2569 = vmatprep.subr.bf16.mxu0 0
        %2570 = vmatpush1.bf16.msra.mxu0 0
        %2571 = vmatprep.subr.bf16.mxu0 0
        %2572 = vmatpush1.bf16.msra.mxu0 0
        %2573 = vmatprep.subr.bf16.mxu0 0
        %2574 = vmatpush1.bf16.msra.mxu0 0
        %2575 = vmatprep.mubr.bf16.mxu0 0
        %2576 = vmatmul.mubr.bf16.gmra.mrb[0].mxu0 %v2541
        %v2577 = vpop.f32.mrb[0].mxu0
        %v2578 = vadd.f32 %v2513, %v2577
        %v2579 = vpop.f32.mrb[0].mxu0
        %v2580 = vpop.f32.mrb[0].mxu0
        %v2581 = vpop.f32.mrb[0].mxu0
        %2582 = vdwg.mxu0
        %v2583 = vadd.f32 %v2399, %v2578
        %2584 = vst.msk [vmem:[%s980] sm:$0xff] %vm999, %v2583
        %s2585 = sand.u32 %s583, 1
        %s2586 = scalar_lea.sflag [#allocation4], %s2585
        %s2587 = sand.u32 %s583, 1
        %s2588 = smul.addr %s2587, 8
        %s2589 = scalar_lea.vmem [#allocation29], %s2588
        // Predicated region
        $region185: #{encoder_layer_with_pitch.1} parent=115 // pred_check
          %p2590 = pneg %p593
        $region186: #{encoder_layer_with_pitch.1} parent=115 // pred_check_branch
          %2592 = sbr.rel (%p2590) target = $region188
        $region187: #{encoder_layer_with_pitch.1} parent=115 // pred_region
          %s2594 = ssub.s32 128, 128
          %2595 = vsyncadd %s2586, %s2594
          %s2596 = smul.addr %s51, 2
          %s2597 = sadd.s32 %s52, %s2596
          %s2598 = smul.addr %s2597, 128
          %s2599 = scalar_lea.hbm %s24, %s2598
          %s2601 = sshll.u32 %s2589, 4
          %s2602 = int_to_ptr.vmem [resolvable:$true] %s2601
          %2604 = dma.vmem_to_hbm [thread:$0]  %s2602, 128, %s2599, %s2586
        $region188: #{encoder_layer_with_pitch.1} parent=115 // pred_fallthru
          _
      $region116: #{encoder_layer_with_pitch.1} parent=5 // pred_fallthru
        _
      %p2605 = scmp.le.s32.totalorder 2, %s42
      // Predicated region
      $region189: #{encoder_layer_with_pitch.1} parent=5 // pred_check
        %p2606 = pneg %p2605
      $region190: #{encoder_layer_with_pitch.1} parent=5 // pred_check_branch
        %2608 = sbr.rel (%p2606) target = $region192
      $region191: #{encoder_layer_with_pitch.1} parent=5 // pred_region
        %s2609 = ssub.s32 %s42, 2
        // Predicated region
        $region193: #{encoder_layer_with_pitch.1} parent=191 // pred_check
          %p2610 = pneg %p599
        $region194: #{encoder_layer_with_pitch.1} parent=191 // pred_check_branch
          %2612 = sbr.rel (%p2610) target = $region196
        $region195: #{encoder_layer_with_pitch.1} parent=191 // pred_region
          %s2613 = sand.u32 %s584, 1
          %s2614 = scalar_lea.sflag [#allocation4], %s2613
          %s2615 = sand.u32 %s584, 1
          %s2616 = smul.addr %s2615, 8
          %s2617 = scalar_lea.vmem [#allocation29], %s2616
          %2618 = dma.done %s2614, 128
        $region196: #{encoder_layer_with_pitch.1} parent=191 // pred_fallthru
          _
      $region192: #{encoder_layer_with_pitch.1} parent=5 // pred_fallthru
        _
    $region6: #{encoder_layer_with_pitch.1} parent=1 // loop_footer
      %s46 = sadd.s32 1, %s42
    $region7: #{encoder_layer_with_pitch.1} parent=1 // loop_footer_branch
      %41 = sbr.rel target = $region3
    $region8: #{encoder_layer_with_pitch.1} parent=1 // loop_exit
      _
    %2619 = vsyncpa [#allocation3], 1
    %s2620 = scalar_lea.sflag [#allocation3], 1
    %2621 = vsyncpa %s2620, 1
    %2622 = vsyncpa [#allocation6], 1
    %2623 = vsyncpa [#allocation9], 1
    %2624 = vsyncpa [#allocation12], 1
    %2625 = vsyncpa [#allocation15], 1
    %2626 = vsyncpa [#allocation18], 1
    %2627 = vsyncpa [#allocation21], 1
    %2628 = vsyncpa [#allocation24], 1
    %2629 = vsyncpa [#allocation27], 1
    %2630 = vsyncpa [#allocation4], 1
    %s2631 = scalar_lea.sflag [#allocation4], 1
    %2632 = vsyncpa %s2631, 1

</llo_original>
